<compile_context>
chip_gen: v6e
topology: v6e:2x2x1
jax: 0.10.0
libtpu: 0.0.40
codegen_flags: <defaults>
</compile_context>

<pallas_src>
import functools

import numpy as np
import jax
import jax.numpy as jnp
from jax import lax
from jax.experimental import pallas as pl
from jax.experimental.pallas import tpu as pltpu

LEAKY_SLOPE = 0.2
BN_EPS = 1e-5
LANES = 128
KSIZE = 4                 # every conv layer is Conv2d(k=4, stride=2, pad=1)
TAPS = KSIZE * KSIZE


# ----------------------------------------------------------------------------
# In-kernel helpers
# ----------------------------------------------------------------------------
def _bn_lrelu(z, gamma, beta):
    """Training-mode BatchNorm (single-pass stats) + LeakyReLU(0.2).

    z: (C, B*H*W) f32, channel-major. gamma/beta: (C, 1) f32.
    """
    m = z.shape[1]
    inv_m = 1.0 / m
    s1 = jnp.sum(z, axis=1, keepdims=True)
    s2 = jnp.sum(z * z, axis=1, keepdims=True)
    mean = s1 * inv_m
    var = jnp.maximum(s2 * inv_m - mean * mean, 0.0)   # biased var (PyTorch train)
    scale = gamma * lax.rsqrt(var + BN_EPS)
    shift = beta - mean * scale
    y = z * scale + shift
    return jnp.maximum(y, LEAKY_SLOPE * y)


def _classifier_kernel(patch1_ref, w1_ref, g1_ref, b1_ref,
                       g2sel_ref, w2_ref, g2_ref, b2_ref,
                       g3sel_ref, w3_ref, g3_ref, b3_ref,
                       gfsel_ref, wf_ref, bf_ref,
                       out_ref,
                       p2_ref, p3_ref, pf_ref,
                       *, c1, c2, c3, fc_taps):
    # ---- layer 1: host-side im2col -> single MXU contraction ---------------
    # Conv biases are omitted on purpose: training-mode BatchNorm subtracts the
    # per-channel batch mean, which cancels any constant per-channel bias.
    z1 = jnp.dot(w1_ref[...], patch1_ref[...],
                 preferred_element_type=jnp.float32)          # (c1, B*d1*d1)
    y1 = _bn_lrelu(z1, g1_ref[...], b1_ref[...]).astype(jnp.bfloat16)

    # ---- layer 2: 16 constant gathers -> stacked patch -> ONE weight matmul
    for t in range(TAPS):
        p2_ref[t * c1:(t + 1) * c1, :] = jnp.dot(
            y1, g2sel_ref[t], preferred_element_type=jnp.float32)
    z2 = jnp.dot(w2_ref[...], p2_ref[...].astype(jnp.bfloat16),
                 preferred_element_type=jnp.float32)          # (c2, B*d2*d2)
    y2 = _bn_lrelu(z2, g2_ref[...], b2_ref[...]).astype(jnp.bfloat16)

    # ---- layer 3 ------------------------------------------------------------
    for t in range(TAPS):
        p3_ref[t * c2:(t + 1) * c2, :] = jnp.dot(
            y2, g3sel_ref[t], preferred_element_type=jnp.float32)
    z3 = jnp.dot(w3_ref[...], p3_ref[...].astype(jnp.bfloat16),
                 preferred_element_type=jnp.float32)          # (c3, B*d3*d3)
    y3 = _bn_lrelu(z3, g3_ref[...], b3_ref[...]).astype(jnp.bfloat16)

    # ---- fc as a (d3 x d3) valid conv; selection lane-padded to 128 so the
    # ---- final store is a full, unmasked (o_pad, 128) tile ------------------
    for t in range(fc_taps):
        pf_ref[t * c3:(t + 1) * c3, :] = jnp.dot(
            y3, gfsel_ref[t], preferred_element_type=jnp.float32)
    zf = jnp.dot(wf_ref[...], pf_ref[...].astype(jnp.bfloat16),
                 preferred_element_type=jnp.float32)          # (o_pad, 128)
    out_ref[...] = zf + bf_ref[...]


# ----------------------------------------------------------------------------
# Host-side (trace-time) constant geometry & parameter layout
# ----------------------------------------------------------------------------
def _sel_matrices_np(batch, s_in, s_out, k, stride, pad):
    """Per-tap one-hot column-selection matrices (k*k, B*s_in^2, B*s_out^2)."""
    m_in = batch * s_in * s_in
    m_out = batch * s_out * s_out
    g = np.zeros((k * k, m_in, m_out), np.float32)
    for b in range(batch):
        for oh in range(s_out):
            for ow in range(s_out):
                col = (b * s_out + oh) * s_out + ow
                for kh in range(k):
                    for kw in range(k):
                        ih = stride * oh + kh - pad
                        iw = stride * ow + kw - pad
                        if 0 <= ih < s_in and 0 <= iw < s_in:
                            row = (b * s_in + ih) * s_in + iw
                            g[kh * k + kw, row, col] = 1.0
    return g


def _full_spec(shape):
    nd = len(shape)
    return pl.BlockSpec(shape, lambda *_: (0,) * nd)


def classifier_forward(params, x):
    """x: (B, 1, dside, dside) float32 NCHW. Returns (B, num_classes) logits."""
    B, _, D, _ = x.shape
    C1 = params["w1"].shape[0]
    C2 = params["w2"].shape[0]
    C3 = params["w3"].shape[0]
    O = params["wfc"].shape[0]
    d1, d2, d3 = D // 2, D // 4, D // 8
    assert d3 >= 1 and B <= LANES, "toy-size fused kernel; tile for larger shapes"
    m1, m2, m3 = B * d1 * d1, B * d2 * d2, B * d3 * d3
    o_pad = max(8, ((O + 7) // 8) * 8)
    fc_taps = d3 * d3

    # ---- layer-1 im2col on the host (single input channel) -----------------
    xp = jnp.pad(x[:, 0].astype(jnp.float32), ((0, 0), (1, 1), (1, 1)))
    taps = [xp[:, kh:kh + 2 * d1:2, kw:kw + 2 * d1:2]
            for kh in range(KSIZE) for kw in range(KSIZE)]
    patch1 = jnp.stack(taps, axis=0).reshape(TAPS, m1).astype(jnp.bfloat16)

    # ---- host-stacked weights (conv biases cancelled by training-mode BN) --
    w1s = params["w1"].reshape(C1, TAPS).astype(jnp.bfloat16)
    w2s = jnp.transpose(params["w2"], (0, 2, 3, 1)).reshape(C2, TAPS * C1).astype(jnp.bfloat16)
    w3s = jnp.transpose(params["w3"], (0, 2, 3, 1)).reshape(C3, TAPS * C2).astype(jnp.bfloat16)
    wf = params["wfc"].reshape(O, C3, d3, d3)
    wfs = jnp.pad(jnp.transpose(wf, (0, 2, 3, 1)).reshape(O, fc_taps * C3),
                  ((0, o_pad - O), (0, 0))).astype(jnp.bfloat16)
    bfc = jnp.pad(params["bfc"], (0, o_pad - O)).reshape(o_pad, 1).astype(jnp.float32)

    col = lambda v: v.reshape(-1, 1).astype(jnp.float32)
    g1, be1 = col(params["g1"]), col(params["be1"])
    g2, be2 = col(params["g2"]), col(params["be2"])
    g3, be3 = col(params["g3"]), col(params["be3"])

    # ---- host-built constant selection matrices (pure geometry, bf16) ------
    g2sel = jnp.asarray(_sel_matrices_np(B, d1, d2, KSIZE, 2, 1), jnp.bfloat16)
    g3sel = jnp.asarray(_sel_matrices_np(B, d2, d3, KSIZE, 2, 1), jnp.bfloat16)
    gfnp = _sel_matrices_np(B, d3, 1, d3, 1, 0)            # fc == (d3 x d3) valid conv
    gfnp = np.pad(gfnp, ((0, 0), (0, 0), (0, LANES - B)))  # lane-dense logits tile
    gfsel = jnp.asarray(gfnp, jnp.bfloat16)

    args = (patch1, w1s, g1, be1,
            g2sel, w2s, g2, be2,
            g3sel, w3s, g3, be3,
            gfsel, wfs, bfc)

    flops = 2 * (C1 * TAPS * m1
                 + TAPS * C1 * m1 * m2 + C2 * (TAPS * C1) * m2
                 + TAPS * C2 * m2 * m3 + C3 * (TAPS * C2) * m3
                 + fc_taps * C3 * m3 * LANES + o_pad * (fc_taps * C3) * LANES)
    bytes_accessed = int(sum(int(np.prod(a.shape)) * a.dtype.itemsize for a in args)
                         + o_pad * LANES * 4)

    kernel = functools.partial(_classifier_kernel, c1=C1, c2=C2, c3=C3,
                               fc_taps=fc_taps)
    out = pl.pallas_call(
        kernel,
        out_shape=jax.ShapeDtypeStruct((o_pad, LANES), jnp.float32),
        grid=(1,),
        in_specs=[_full_spec(a.shape) for a in args],
        out_specs=_full_spec((o_pad, LANES)),
        scratch_shapes=[
            pltpu.VMEM((TAPS * C1, m2), jnp.float32),        # layer-2 patch
            pltpu.VMEM((TAPS * C2, m3), jnp.float32),        # layer-3 patch
            pltpu.VMEM((fc_taps * C3, LANES), jnp.float32),  # fc patch (lane-padded)
        ],
        compiler_params=pltpu.CompilerParams(
            dimension_semantics=("arbitrary",),
            vmem_limit_bytes=32 * 1024 * 1024,
        ),
        cost_estimate=pl.CostEstimate(flops=flops,
                                      transcendentals=C1 + C2 + C3,
                                      bytes_accessed=bytes_accessed),
    )(*args)
    # Slice off lane/row padding and return PyTorch-convention (B, num_classes).
    return out[:O, :B].T


# ----------------------------------------------------------------------------
# Deterministic synthetic parameters (same shapes as the PyTorch module)
# ----------------------------------------------------------------------------
def init_params(key, dside, num_channels, num_classes):
    ks = jax.random.split(key, 8)
    c1, c2, c3 = num_channels, num_channels * 2, num_channels * 4

    def conv_w(k_, cout, cin):
        fan_in = cin * 4 * 4
        bound = 1.0 / jnp.sqrt(fan_in)
        return jax.random.uniform(k_, (cout, cin, 4, 4), jnp.float32, -bound, bound)

    def vec(k_, n, fan_in):
        bound = 1.0 / jnp.sqrt(fan_in)
        return jax.random.uniform(k_, (n,), jnp.float32, -bound, bound)

    fc_in = c3 * (dside // 8) * (dside // 8)
    # Conv biases b1/b2/b3 are kept for shape fidelity with the PyTorch module
    # but are mathematically cancelled by training-mode BatchNorm, so the fused
    # kernel does not consume them.
    params = {
        "w1": conv_w(ks[0], c1, 1), "b1": vec(ks[1], c1, 1 * 16),
        "g1": jnp.ones((c1,), jnp.float32), "be1": jnp.zeros((c1,), jnp.float32),
        "w2": conv_w(ks[2], c2, c1), "b2": vec(ks[3], c2, c1 * 16),
        "g2": jnp.ones((c2,), jnp.float32), "be2": jnp.zeros((c2,), jnp.float32),
        "w3": conv_w(ks[4], c3, c2), "b3": vec(ks[5], c3, c2 * 16),
        "g3": jnp.ones((c3,), jnp.float32), "be3": jnp.zeros((c3,), jnp.float32),
        "wfc": jax.random.uniform(ks[6], (num_classes, fc_in), jnp.float32,
                                  -1.0 / jnp.sqrt(fc_in), 1.0 / jnp.sqrt(fc_in)),
        "bfc": vec(ks[7], num_classes, fc_in),
    }
    return params


if __name__ == "__main__":
    dside, num_channels, num_classes, batch = 16, 4, 3, 2
    key = jax.random.PRNGKey(0)
    kx, kp = jax.random.split(key)
    x = jax.random.normal(kx, (batch, 1, dside, dside), jnp.float32)
    params = init_params(kp, dside, num_channels, num_classes)

    fwd = jax.jit(classifier_forward)
    logits = fwd(params, x)
    jax.block_until_ready(logits)
    assert logits.shape == (batch, num_classes)
    print("KERNEL_OK")
</pallas_src>

<mosaic_0001>
module attributes {stable_mosaic.version = 11 : i64} {
  func.func @_classifier_kernel(%arg0: i32, %arg1: memref<16x128xbf16, #tpu.memory_space<vmem>>, %arg2: memref<4x16xbf16, #tpu.memory_space<vmem>>, %arg3: memref<4x1xf32, #tpu.memory_space<vmem>>, %arg4: memref<4x1xf32, #tpu.memory_space<vmem>>, %arg5: memref<16x128x32xbf16, #tpu.memory_space<vmem>>, %arg6: memref<8x64xbf16, #tpu.memory_space<vmem>>, %arg7: memref<8x1xf32, #tpu.memory_space<vmem>>, %arg8: memref<8x1xf32, #tpu.memory_space<vmem>>, %arg9: memref<16x32x8xbf16, #tpu.memory_space<vmem>>, %arg10: memref<16x128xbf16, #tpu.memory_space<vmem>>, %arg11: memref<16x1xf32, #tpu.memory_space<vmem>>, %arg12: memref<16x1xf32, #tpu.memory_space<vmem>>, %arg13: memref<4x8x128xbf16, #tpu.memory_space<vmem>>, %arg14: memref<8x64xbf16, #tpu.memory_space<vmem>>, %arg15: memref<8x1xf32, #tpu.memory_space<vmem>>, %arg16: memref<8x128xf32, #tpu.memory_space<vmem>>, %arg17: memref<64x32xf32, #tpu.memory_space<vmem>>, %arg18: memref<128x8xf32, #tpu.memory_space<vmem>>, %arg19: memref<64x128xf32, #tpu.memory_space<vmem>>) attributes {dimension_semantics = [#tpu.dimension_semantics<arbitrary>], iteration_bounds = array<i64: 1>, scalar_prefetch = 0 : i64, scratch_operands = 3 : i64, tpu.core_type = #tpu.core_type<tc>, window_params = [{pipeline_mode = #tpu.pipeline_mode<synchronous>, transform_indices = @transform_0, window_bounds = array<i64: 16, 128>}, {pipeline_mode = #tpu.pipeline_mode<synchronous>, transform_indices = @transform_1, window_bounds = array<i64: 4, 16>}, {pipeline_mode = #tpu.pipeline_mode<synchronous>, transform_indices = @transform_2, window_bounds = array<i64: 4, 1>}, {pipeline_mode = #tpu.pipeline_mode<synchronous>, transform_indices = @transform_3, window_bounds = array<i64: 4, 1>}, {pipeline_mode = #tpu.pipeline_mode<synchronous>, transform_indices = @transform_4, window_bounds = array<i64: 16, 128, 32>}, {pipeline_mode = #tpu.pipeline_mode<synchronous>, transform_indices = @transform_5, window_bounds = array<i64: 8, 64>}, {pipeline_mode = #tpu.pipeline_mode<synchronous>, transform_indices = @transform_6, window_bounds = array<i64: 8, 1>}, {pipeline_mode = #tpu.pipeline_mode<synchronous>, transform_indices = @transform_7, window_bounds = array<i64: 8, 1>}, {pipeline_mode = #tpu.pipeline_mode<synchronous>, transform_indices = @transform_8, window_bounds = array<i64: 16, 32, 8>}, {pipeline_mode = #tpu.pipeline_mode<synchronous>, transform_indices = @transform_9, window_bounds = array<i64: 16, 128>}, {pipeline_mode = #tpu.pipeline_mode<synchronous>, transform_indices = @transform_10, window_bounds = array<i64: 16, 1>}, {pipeline_mode = #tpu.pipeline_mode<synchronous>, transform_indices = @transform_11, window_bounds = array<i64: 16, 1>}, {pipeline_mode = #tpu.pipeline_mode<synchronous>, transform_indices = @transform_12, window_bounds = array<i64: 4, 8, 128>}, {pipeline_mode = #tpu.pipeline_mode<synchronous>, transform_indices = @transform_13, window_bounds = array<i64: 8, 64>}, {pipeline_mode = #tpu.pipeline_mode<synchronous>, transform_indices = @transform_14, window_bounds = array<i64: 8, 1>}, {pipeline_mode = #tpu.pipeline_mode<synchronous>, transform_indices = @transform_15, window_bounds = array<i64: 8, 128>}]} {
    %c0 = arith.constant 0 : index
    %c0_0 = arith.constant 0 : index
    %0 = vector.load %arg2[%c0, %c0_0] : memref<4x16xbf16, #tpu.memory_space<vmem>>, vector<4x16xbf16>
    %c0_1 = arith.constant 0 : index
    %c0_2 = arith.constant 0 : index
    %1 = vector.load %arg1[%c0_1, %c0_2] : memref<16x128xbf16, #tpu.memory_space<vmem>>, vector<16x128xbf16>
    %cst = arith.constant dense<0.000000e+00> : vector<4x128xf32>
    %2 = tpu.matmul %0, %1, %cst {dimension_numbers = #tpu.dot_dimension_numbers<[1], [0], [0], [1], [0, 0, 1, 1], [], []>} : vector<4x16xbf16>, vector<16x128xbf16>, vector<4x128xf32> -> vector<4x128xf32>
    %c0_3 = arith.constant 0 : index
    %c0_4 = arith.constant 0 : index
    %3 = vector.load %arg3[%c0_3, %c0_4] : memref<4x1xf32, #tpu.memory_space<vmem>>, vector<4x1xf32>
    %c0_5 = arith.constant 0 : index
    %c0_6 = arith.constant 0 : index
    %4 = vector.load %arg4[%c0_5, %c0_6] : memref<4x1xf32, #tpu.memory_space<vmem>>, vector<4x1xf32>
    %cst_7 = arith.constant dense<0.000000e+00> : vector<4xf32>
    %5 = vector.multi_reduction <add>, %2, %cst_7 [1] : vector<4x128xf32> to vector<4xf32>
    %6 = vector.shape_cast %5 : vector<4xf32> to vector<4x1xf32>
    %7 = arith.mulf %2, %2 : vector<4x128xf32>
    %cst_8 = arith.constant dense<0.000000e+00> : vector<4xf32>
    %8 = vector.multi_reduction <add>, %7, %cst_8 [1] : vector<4x128xf32> to vector<4xf32>
    %9 = vector.shape_cast %8 : vector<4xf32> to vector<4x1xf32>
    %cst_9 = arith.constant 7.812500e-03 : f32
    %10 = vector.broadcast %cst_9 : f32 to vector<4x1xf32>
    %11 = arith.mulf %6, %10 : vector<4x1xf32>
    %cst_10 = arith.constant 7.812500e-03 : f32
    %12 = vector.broadcast %cst_10 : f32 to vector<4x1xf32>
    %13 = arith.mulf %9, %12 : vector<4x1xf32>
    %14 = arith.mulf %11, %11 : vector<4x1xf32>
    %15 = arith.subf %13, %14 : vector<4x1xf32>
    %cst_11 = arith.constant 0.000000e+00 : f32
    %16 = vector.broadcast %cst_11 : f32 to vector<4x1xf32>
    %17 = arith.maximumf %15, %16 : vector<4x1xf32>
    %cst_12 = arith.constant 9.99999974E-6 : f32
    %18 = vector.broadcast %cst_12 : f32 to vector<4x1xf32>
    %19 = arith.addf %17, %18 : vector<4x1xf32>
    %20 = math.rsqrt %19 : vector<4x1xf32>
    %21 = arith.mulf %3, %20 : vector<4x1xf32>
    %22 = arith.mulf %11, %21 : vector<4x1xf32>
    %23 = arith.subf %4, %22 : vector<4x1xf32>
    %24 = vector.broadcast %21 : vector<4x1xf32> to vector<4x128xf32>
    %25 = arith.mulf %2, %24 : vector<4x128xf32>
    %26 = vector.broadcast %23 : vector<4x1xf32> to vector<4x128xf32>
    %27 = arith.addf %25, %26 : vector<4x128xf32>
    %cst_13 = arith.constant 2.000000e-01 : f32
    %28 = vector.broadcast %cst_13 : f32 to vector<4x128xf32>
    %29 = arith.mulf %28, %27 : vector<4x128xf32>
    %30 = arith.maximumf %27, %29 : vector<4x128xf32>
    %31 = arith.truncf %30 : vector<4x128xf32> to vector<4x128xbf16>
    %c0_14 = arith.constant 0 : index
    %c0_15 = arith.constant 0 : index
    %c0_16 = arith.constant 0 : index
    %32 = vector.load %arg5[%c0_14, %c0_15, %c0_16] : memref<16x128x32xbf16, #tpu.memory_space<vmem>>, vector<1x128x32xbf16>
    %33 = vector.shape_cast %32 : vector<1x128x32xbf16> to vector<128x32xbf16>
    %cst_17 = arith.constant dense<0.000000e+00> : vector<4x32xf32>
    %34 = tpu.matmul %31, %33, %cst_17 {dimension_numbers = #tpu.dot_dimension_numbers<[1], [0], [0], [1], [0, 0, 1, 1], [], []>} : vector<4x128xbf16>, vector<128x32xbf16>, vector<4x32xf32> -> vector<4x32xf32>
    %c0_18 = arith.constant 0 : index
    %c0_19 = arith.constant 0 : index
    %35 = vector.load %arg17[%c0_18, %c0_19] : memref<64x32xf32, #tpu.memory_space<vmem>>, vector<4x32xf32>
    tpu.vector_store %arg17[%c0_18, %c0_19], %34 {strides = array<i32>} : memref<64x32xf32, #tpu.memory_space<vmem>>, vector<4x32xf32>,
    %c1 = arith.constant 1 : index
    %c0_20 = arith.constant 0 : index
    %c0_21 = arith.constant 0 : index
    %36 = vector.load %arg5[%c1, %c0_20, %c0_21] : memref<16x128x32xbf16, #tpu.memory_space<vmem>>, vector<1x128x32xbf16>
    %37 = vector.shape_cast %36 : vector<1x128x32xbf16> to vector<128x32xbf16>
    %cst_22 = arith.constant dense<0.000000e+00> : vector<4x32xf32>
    %38 = tpu.matmul %31, %37, %cst_22 {dimension_numbers = #tpu.dot_dimension_numbers<[1], [0], [0], [1], [0, 0, 1, 1], [], []>} : vector<4x128xbf16>, vector<128x32xbf16>, vector<4x32xf32> -> vector<4x32xf32>
    %c4 = arith.constant 4 : index
    %c0_23 = arith.constant 0 : index
    %39 = vector.load %arg17[%c4, %c0_23] : memref<64x32xf32, #tpu.memory_space<vmem>>, vector<4x32xf32>
    tpu.vector_store %arg17[%c4, %c0_23], %38 {strides = array<i32>} : memref<64x32xf32, #tpu.memory_space<vmem>>, vector<4x32xf32>,
    %c2 = arith.constant 2 : index
    %c0_24 = arith.constant 0 : index
    %c0_25 = arith.constant 0 : index
    %40 = vector.load %arg5[%c2, %c0_24, %c0_25] : memref<16x128x32xbf16, #tpu.memory_space<vmem>>, vector<1x128x32xbf16>
    %41 = vector.shape_cast %40 : vector<1x128x32xbf16> to vector<128x32xbf16>
    %cst_26 = arith.constant dense<0.000000e+00> : vector<4x32xf32>
    %42 = tpu.matmul %31, %41, %cst_26 {dimension_numbers = #tpu.dot_dimension_numbers<[1], [0], [0], [1], [0, 0, 1, 1], [], []>} : vector<4x128xbf16>, vector<128x32xbf16>, vector<4x32xf32> -> vector<4x32xf32>
    %c8 = arith.constant 8 : index
    %c0_27 = arith.constant 0 : index
    %43 = vector.load %arg17[%c8, %c0_27] : memref<64x32xf32, #tpu.memory_space<vmem>>, vector<4x32xf32>
    tpu.vector_store %arg17[%c8, %c0_27], %42 {strides = array<i32>} : memref<64x32xf32, #tpu.memory_space<vmem>>, vector<4x32xf32>,
    %c3 = arith.constant 3 : index
    %c0_28 = arith.constant 0 : index
    %c0_29 = arith.constant 0 : index
    %44 = vector.load %arg5[%c3, %c0_28, %c0_29] : memref<16x128x32xbf16, #tpu.memory_space<vmem>>, vector<1x128x32xbf16>
    %45 = vector.shape_cast %44 : vector<1x128x32xbf16> to vector<128x32xbf16>
    %cst_30 = arith.constant dense<0.000000e+00> : vector<4x32xf32>
    %46 = tpu.matmul %31, %45, %cst_30 {dimension_numbers = #tpu.dot_dimension_numbers<[1], [0], [0], [1], [0, 0, 1, 1], [], []>} : vector<4x128xbf16>, vector<128x32xbf16>, vector<4x32xf32> -> vector<4x32xf32>
    %c12 = arith.constant 12 : index
    %c0_31 = arith.constant 0 : index
    %47 = vector.load %arg17[%c12, %c0_31] : memref<64x32xf32, #tpu.memory_space<vmem>>, vector<4x32xf32>
    tpu.vector_store %arg17[%c12, %c0_31], %46 {strides = array<i32>} : memref<64x32xf32, #tpu.memory_space<vmem>>, vector<4x32xf32>,
    %c4_32 = arith.constant 4 : index
    %c0_33 = arith.constant 0 : index
    %c0_34 = arith.constant 0 : index
    %48 = vector.load %arg5[%c4_32, %c0_33, %c0_34] : memref<16x128x32xbf16, #tpu.memory_space<vmem>>, vector<1x128x32xbf16>
    %49 = vector.shape_cast %48 : vector<1x128x32xbf16> to vector<128x32xbf16>
    %cst_35 = arith.constant dense<0.000000e+00> : vector<4x32xf32>
    %50 = tpu.matmul %31, %49, %cst_35 {dimension_numbers = #tpu.dot_dimension_numbers<[1], [0], [0], [1], [0, 0, 1, 1], [], []>} : vector<4x128xbf16>, vector<128x32xbf16>, vector<4x32xf32> -> vector<4x32xf32>
    %c16 = arith.constant 16 : index
    %c0_36 = arith.constant 0 : index
    %51 = vector.load %arg17[%c16, %c0_36] : memref<64x32xf32, #tpu.memory_space<vmem>>, vector<4x32xf32>
    tpu.vector_store %arg17[%c16, %c0_36], %50 {strides = array<i32>} : memref<64x32xf32, #tpu.memory_space<vmem>>, vector<4x32xf32>,
    %c5 = arith.constant 5 : index
    %c0_37 = arith.constant 0 : index
    %c0_38 = arith.constant 0 : index
    %52 = vector.load %arg5[%c5, %c0_37, %c0_38] : memref<16x128x32xbf16, #tpu.memory_space<vmem>>, vector<1x128x32xbf16>
    %53 = vector.shape_cast %52 : vector<1x128x32xbf16> to vector<128x32xbf16>
    %cst_39 = arith.constant dense<0.000000e+00> : vector<4x32xf32>
    %54 = tpu.matmul %31, %53, %cst_39 {dimension_numbers = #tpu.dot_dimension_numbers<[1], [0], [0], [1], [0, 0, 1, 1], [], []>} : vector<4x128xbf16>, vector<128x32xbf16>, vector<4x32xf32> -> vector<4x32xf32>
    %c20 = arith.constant 20 : index
    %c0_40 = arith.constant 0 : index
    %55 = vector.load %arg17[%c20, %c0_40] : memref<64x32xf32, #tpu.memory_space<vmem>>, vector<4x32xf32>
    tpu.vector_store %arg17[%c20, %c0_40], %54 {strides = array<i32>} : memref<64x32xf32, #tpu.memory_space<vmem>>, vector<4x32xf32>,
    %c6 = arith.constant 6 : index
    %c0_41 = arith.constant 0 : index
    %c0_42 = arith.constant 0 : index
    %56 = vector.load %arg5[%c6, %c0_41, %c0_42] : memref<16x128x32xbf16, #tpu.memory_space<vmem>>, vector<1x128x32xbf16>
    %57 = vector.shape_cast %56 : vector<1x128x32xbf16> to vector<128x32xbf16>
    %cst_43 = arith.constant dense<0.000000e+00> : vector<4x32xf32>
    %58 = tpu.matmul %31, %57, %cst_43 {dimension_numbers = #tpu.dot_dimension_numbers<[1], [0], [0], [1], [0, 0, 1, 1], [], []>} : vector<4x128xbf16>, vector<128x32xbf16>, vector<4x32xf32> -> vector<4x32xf32>
    %c24 = arith.constant 24 : index
    %c0_44 = arith.constant 0 : index
    %59 = vector.load %arg17[%c24, %c0_44] : memref<64x32xf32, #tpu.memory_space<vmem>>, vector<4x32xf32>
    tpu.vector_store %arg17[%c24, %c0_44], %58 {strides = array<i32>} : memref<64x32xf32, #tpu.memory_space<vmem>>, vector<4x32xf32>,
    %c7 = arith.constant 7 : index
    %c0_45 = arith.constant 0 : index
    %c0_46 = arith.constant 0 : index
    %60 = vector.load %arg5[%c7, %c0_45, %c0_46] : memref<16x128x32xbf16, #tpu.memory_space<vmem>>, vector<1x128x32xbf16>
    %61 = vector.shape_cast %60 : vector<1x128x32xbf16> to vector<128x32xbf16>
    %cst_47 = arith.constant dense<0.000000e+00> : vector<4x32xf32>
    %62 = tpu.matmul %31, %61, %cst_47 {dimension_numbers = #tpu.dot_dimension_numbers<[1], [0], [0], [1], [0, 0, 1, 1], [], []>} : vector<4x128xbf16>, vector<128x32xbf16>, vector<4x32xf32> -> vector<4x32xf32>
    %c28 = arith.constant 28 : index
    %c0_48 = arith.constant 0 : index
    %63 = vector.load %arg17[%c28, %c0_48] : memref<64x32xf32, #tpu.memory_space<vmem>>, vector<4x32xf32>
    tpu.vector_store %arg17[%c28, %c0_48], %62 {strides = array<i32>} : memref<64x32xf32, #tpu.memory_space<vmem>>, vector<4x32xf32>,
    %c8_49 = arith.constant 8 : index
    %c0_50 = arith.constant 0 : index
    %c0_51 = arith.constant 0 : index
    %64 = vector.load %arg5[%c8_49, %c0_50, %c0_51] : memref<16x128x32xbf16, #tpu.memory_space<vmem>>, vector<1x128x32xbf16>
    %65 = vector.shape_cast %64 : vector<1x128x32xbf16> to vector<128x32xbf16>
    %cst_52 = arith.constant dense<0.000000e+00> : vector<4x32xf32>
    %66 = tpu.matmul %31, %65, %cst_52 {dimension_numbers = #tpu.dot_dimension_numbers<[1], [0], [0], [1], [0, 0, 1, 1], [], []>} : vector<4x128xbf16>, vector<128x32xbf16>, vector<4x32xf32> -> vector<4x32xf32>
    %c32 = arith.constant 32 : index
    %c0_53 = arith.constant 0 : index
    %67 = vector.load %arg17[%c32, %c0_53] : memref<64x32xf32, #tpu.memory_space<vmem>>, vector<4x32xf32>
    tpu.vector_store %arg17[%c32, %c0_53], %66 {strides = array<i32>} : memref<64x32xf32, #tpu.memory_space<vmem>>, vector<4x32xf32>,
    %c9 = arith.constant 9 : index
    %c0_54 = arith.constant 0 : index
    %c0_55 = arith.constant 0 : index
    %68 = vector.load %arg5[%c9, %c0_54, %c0_55] : memref<16x128x32xbf16, #tpu.memory_space<vmem>>, vector<1x128x32xbf16>
    %69 = vector.shape_cast %68 : vector<1x128x32xbf16> to vector<128x32xbf16>
    %cst_56 = arith.constant dense<0.000000e+00> : vector<4x32xf32>
    %70 = tpu.matmul %31, %69, %cst_56 {dimension_numbers = #tpu.dot_dimension_numbers<[1], [0], [0], [1], [0, 0, 1, 1], [], []>} : vector<4x128xbf16>, vector<128x32xbf16>, vector<4x32xf32> -> vector<4x32xf32>
    %c36 = arith.constant 36 : index
    %c0_57 = arith.constant 0 : index
    %71 = vector.load %arg17[%c36, %c0_57] : memref<64x32xf32, #tpu.memory_space<vmem>>, vector<4x32xf32>
    tpu.vector_store %arg17[%c36, %c0_57], %70 {strides = array<i32>} : memref<64x32xf32, #tpu.memory_space<vmem>>, vector<4x32xf32>,
    %c10 = arith.constant 10 : index
    %c0_58 = arith.constant 0 : index
    %c0_59 = arith.constant 0 : index
    %72 = vector.load %arg5[%c10, %c0_58, %c0_59] : memref<16x128x32xbf16, #tpu.memory_space<vmem>>, vector<1x128x32xbf16>
    %73 = vector.shape_cast %72 : vector<1x128x32xbf16> to vector<128x32xbf16>
    %cst_60 = arith.constant dense<0.000000e+00> : vector<4x32xf32>
    %74 = tpu.matmul %31, %73, %cst_60 {dimension_numbers = #tpu.dot_dimension_numbers<[1], [0], [0], [1], [0, 0, 1, 1], [], []>} : vector<4x128xbf16>, vector<128x32xbf16>, vector<4x32xf32> -> vector<4x32xf32>
    %c40 = arith.constant 40 : index
    %c0_61 = arith.constant 0 : index
    %75 = vector.load %arg17[%c40, %c0_61] : memref<64x32xf32, #tpu.memory_space<vmem>>, vector<4x32xf32>
    tpu.vector_store %arg17[%c40, %c0_61], %74 {strides = array<i32>} : memref<64x32xf32, #tpu.memory_space<vmem>>, vector<4x32xf32>,
    %c11 = arith.constant 11 : index
    %c0_62 = arith.constant 0 : index
    %c0_63 = arith.constant 0 : index
    %76 = vector.load %arg5[%c11, %c0_62, %c0_63] : memref<16x128x32xbf16, #tpu.memory_space<vmem>>, vector<1x128x32xbf16>
    %77 = vector.shape_cast %76 : vector<1x128x32xbf16> to vector<128x32xbf16>
    %cst_64 = arith.constant dense<0.000000e+00> : vector<4x32xf32>
    %78 = tpu.matmul %31, %77, %cst_64 {dimension_numbers = #tpu.dot_dimension_numbers<[1], [0], [0], [1], [0, 0, 1, 1], [], []>} : vector<4x128xbf16>, vector<128x32xbf16>, vector<4x32xf32> -> vector<4x32xf32>
    %c44 = arith.constant 44 : index
    %c0_65 = arith.constant 0 : index
    %79 = vector.load %arg17[%c44, %c0_65] : memref<64x32xf32, #tpu.memory_space<vmem>>, vector<4x32xf32>
    tpu.vector_store %arg17[%c44, %c0_65], %78 {strides = array<i32>} : memref<64x32xf32, #tpu.memory_space<vmem>>, vector<4x32xf32>,
    %c12_66 = arith.constant 12 : index
    %c0_67 = arith.constant 0 : index
    %c0_68 = arith.constant 0 : index
    %80 = vector.load %arg5[%c12_66, %c0_67, %c0_68] : memref<16x128x32xbf16, #tpu.memory_space<vmem>>, vector<1x128x32xbf16>
    %81 = vector.shape_cast %80 : vector<1x128x32xbf16> to vector<128x32xbf16>
    %cst_69 = arith.constant dense<0.000000e+00> : vector<4x32xf32>
    %82 = tpu.matmul %31, %81, %cst_69 {dimension_numbers = #tpu.dot_dimension_numbers<[1], [0], [0], [1], [0, 0, 1, 1], [], []>} : vector<4x128xbf16>, vector<128x32xbf16>, vector<4x32xf32> -> vector<4x32xf32>
    %c48 = arith.constant 48 : index
    %c0_70 = arith.constant 0 : index
    %83 = vector.load %arg17[%c48, %c0_70] : memref<64x32xf32, #tpu.memory_space<vmem>>, vector<4x32xf32>
    tpu.vector_store %arg17[%c48, %c0_70], %82 {strides = array<i32>} : memref<64x32xf32, #tpu.memory_space<vmem>>, vector<4x32xf32>,
    %c13 = arith.constant 13 : index
    %c0_71 = arith.constant 0 : index
    %c0_72 = arith.constant 0 : index
    %84 = vector.load %arg5[%c13, %c0_71, %c0_72] : memref<16x128x32xbf16, #tpu.memory_space<vmem>>, vector<1x128x32xbf16>
    %85 = vector.shape_cast %84 : vector<1x128x32xbf16> to vector<128x32xbf16>
    %cst_73 = arith.constant dense<0.000000e+00> : vector<4x32xf32>
    %86 = tpu.matmul %31, %85, %cst_73 {dimension_numbers = #tpu.dot_dimension_numbers<[1], [0], [0], [1], [0, 0, 1, 1], [], []>} : vector<4x128xbf16>, vector<128x32xbf16>, vector<4x32xf32> -> vector<4x32xf32>
    %c52 = arith.constant 52 : index
    %c0_74 = arith.constant 0 : index
    %87 = vector.load %arg17[%c52, %c0_74] : memref<64x32xf32, #tpu.memory_space<vmem>>, vector<4x32xf32>
    tpu.vector_store %arg17[%c52, %c0_74], %86 {strides = array<i32>} : memref<64x32xf32, #tpu.memory_space<vmem>>, vector<4x32xf32>,
    %c14 = arith.constant 14 : index
    %c0_75 = arith.constant 0 : index
    %c0_76 = arith.constant 0 : index
    %88 = vector.load %arg5[%c14, %c0_75, %c0_76] : memref<16x128x32xbf16, #tpu.memory_space<vmem>>, vector<1x128x32xbf16>
    %89 = vector.shape_cast %88 : vector<1x128x32xbf16> to vector<128x32xbf16>
    %cst_77 = arith.constant dense<0.000000e+00> : vector<4x32xf32>
    %90 = tpu.matmul %31, %89, %cst_77 {dimension_numbers = #tpu.dot_dimension_numbers<[1], [0], [0], [1], [0, 0, 1, 1], [], []>} : vector<4x128xbf16>, vector<128x32xbf16>, vector<4x32xf32> -> vector<4x32xf32>
    %c56 = arith.constant 56 : index
    %c0_78 = arith.constant 0 : index
    %91 = vector.load %arg17[%c56, %c0_78] : memref<64x32xf32, #tpu.memory_space<vmem>>, vector<4x32xf32>
    tpu.vector_store %arg17[%c56, %c0_78], %90 {strides = array<i32>} : memref<64x32xf32, #tpu.memory_space<vmem>>, vector<4x32xf32>,
    %c15 = arith.constant 15 : index
    %c0_79 = arith.constant 0 : index
    %c0_80 = arith.constant 0 : index
    %92 = vector.load %arg5[%c15, %c0_79, %c0_80] : memref<16x128x32xbf16, #tpu.memory_space<vmem>>, vector<1x128x32xbf16>
    %93 = vector.shape_cast %92 : vector<1x128x32xbf16> to vector<128x32xbf16>
    %cst_81 = arith.constant dense<0.000000e+00> : vector<4x32xf32>
    %94 = tpu.matmul %31, %93, %cst_81 {dimension_numbers = #tpu.dot_dimension_numbers<[1], [0], [0], [1], [0, 0, 1, 1], [], []>} : vector<4x128xbf16>, vector<128x32xbf16>, vector<4x32xf32> -> vector<4x32xf32>
    %c60 = arith.constant 60 : index
    %c0_82 = arith.constant 0 : index
    %95 = vector.load %arg17[%c60, %c0_82] : memref<64x32xf32, #tpu.memory_space<vmem>>, vector<4x32xf32>
    tpu.vector_store %arg17[%c60, %c0_82], %94 {strides = array<i32>} : memref<64x32xf32, #tpu.memory_space<vmem>>, vector<4x32xf32>,
    %c0_83 = arith.constant 0 : index
    %c0_84 = arith.constant 0 : index
    %96 = vector.load %arg6[%c0_83, %c0_84] : memref<8x64xbf16, #tpu.memory_space<vmem>>, vector<8x64xbf16>
    %c0_85 = arith.constant 0 : index
    %c0_86 = arith.constant 0 : index
    %97 = vector.load %arg17[%c0_85, %c0_86] : memref<64x32xf32, #tpu.memory_space<vmem>>, vector<64x32xf32>
    %98 = arith.truncf %97 : vector<64x32xf32> to vector<64x32xbf16>
    %cst_87 = arith.constant dense<0.000000e+00> : vector<8x32xf32>
    %99 = tpu.matmul %96, %98, %cst_87 {dimension_numbers = #tpu.dot_dimension_numbers<[1], [0], [0], [1], [0, 0, 1, 1], [], []>} : vector<8x64xbf16>, vector<64x32xbf16>, vector<8x32xf32> -> vector<8x32xf32>
    %c0_88 = arith.constant 0 : index
    %c0_89 = arith.constant 0 : index
    %100 = vector.load %arg7[%c0_88, %c0_89] : memref<8x1xf32, #tpu.memory_space<vmem>>, vector<8x1xf32>
    %c0_90 = arith.constant 0 : index
    %c0_91 = arith.constant 0 : index
    %101 = vector.load %arg8[%c0_90, %c0_91] : memref<8x1xf32, #tpu.memory_space<vmem>>, vector<8x1xf32>
    %cst_92 = arith.constant dense<0.000000e+00> : vector<8xf32>
    %102 = vector.multi_reduction <add>, %99, %cst_92 [1] : vector<8x32xf32> to vector<8xf32>
    %103 = vector.shape_cast %102 : vector<8xf32> to vector<8x1xf32>
    %104 = arith.mulf %99, %99 : vector<8x32xf32>
    %cst_93 = arith.constant dense<0.000000e+00> : vector<8xf32>
    %105 = vector.multi_reduction <add>, %104, %cst_93 [1] : vector<8x32xf32> to vector<8xf32>
    %106 = vector.shape_cast %105 : vector<8xf32> to vector<8x1xf32>
    %cst_94 = arith.constant 3.125000e-02 : f32
    %107 = vector.broadcast %cst_94 : f32 to vector<8x1xf32>
    %108 = arith.mulf %103, %107 : vector<8x1xf32>
    %cst_95 = arith.constant 3.125000e-02 : f32
    %109 = vector.broadcast %cst_95 : f32 to vector<8x1xf32>
    %110 = arith.mulf %106, %109 : vector<8x1xf32>
    %111 = arith.mulf %108, %108 : vector<8x1xf32>
    %112 = arith.subf %110, %111 : vector<8x1xf32>
    %cst_96 = arith.constant 0.000000e+00 : f32
    %113 = vector.broadcast %cst_96 : f32 to vector<8x1xf32>
    %114 = arith.maximumf %112, %113 : vector<8x1xf32>
    %cst_97 = arith.constant 9.99999974E-6 : f32
    %115 = vector.broadcast %cst_97 : f32 to vector<8x1xf32>
    %116 = arith.addf %114, %115 : vector<8x1xf32>
    %117 = math.rsqrt %116 : vector<8x1xf32>
    %118 = arith.mulf %100, %117 : vector<8x1xf32>
    %119 = arith.mulf %108, %118 : vector<8x1xf32>
    %120 = arith.subf %101, %119 : vector<8x1xf32>
    %121 = vector.broadcast %118 : vector<8x1xf32> to vector<8x32xf32>
    %122 = arith.mulf %99, %121 : vector<8x32xf32>
    %123 = vector.broadcast %120 : vector<8x1xf32> to vector<8x32xf32>
    %124 = arith.addf %122, %123 : vector<8x32xf32>
    %cst_98 = arith.constant 2.000000e-01 : f32
    %125 = vector.broadcast %cst_98 : f32 to vector<8x32xf32>
    %126 = arith.mulf %125, %124 : vector<8x32xf32>
    %127 = arith.maximumf %124, %126 : vector<8x32xf32>
    %128 = arith.truncf %127 : vector<8x32xf32> to vector<8x32xbf16>
    %c0_99 = arith.constant 0 : index
    %c0_100 = arith.constant 0 : index
    %c0_101 = arith.constant 0 : index
    %129 = vector.load %arg9[%c0_99, %c0_100, %c0_101] : memref<16x32x8xbf16, #tpu.memory_space<vmem>>, vector<1x32x8xbf16>
    %130 = vector.shape_cast %129 : vector<1x32x8xbf16> to vector<32x8xbf16>
    %cst_102 = arith.constant dense<0.000000e+00> : vector<8x8xf32>
    %131 = tpu.matmul %128, %130, %cst_102 {dimension_numbers = #tpu.dot_dimension_numbers<[1], [0], [0], [1], [0, 0, 1, 1], [], []>} : vector<8x32xbf16>, vector<32x8xbf16>, vector<8x8xf32> -> vector<8x8xf32>
    %c0_103 = arith.constant 0 : index
    %c0_104 = arith.constant 0 : index
    %132 = vector.load %arg18[%c0_103, %c0_104] : memref<128x8xf32, #tpu.memory_space<vmem>>, vector<8x8xf32>
    tpu.vector_store %arg18[%c0_103, %c0_104], %131 {strides = array<i32>} : memref<128x8xf32, #tpu.memory_space<vmem>>, vector<8x8xf32>,
    %c1_105 = arith.constant 1 : index
    %c0_106 = arith.constant 0 : index
    %c0_107 = arith.constant 0 : index
    %133 = vector.load %arg9[%c1_105, %c0_106, %c0_107] : memref<16x32x8xbf16, #tpu.memory_space<vmem>>, vector<1x32x8xbf16>
    %134 = vector.shape_cast %133 : vector<1x32x8xbf16> to vector<32x8xbf16>
    %cst_108 = arith.constant dense<0.000000e+00> : vector<8x8xf32>
    %135 = tpu.matmul %128, %134, %cst_108 {dimension_numbers = #tpu.dot_dimension_numbers<[1], [0], [0], [1], [0, 0, 1, 1], [], []>} : vector<8x32xbf16>, vector<32x8xbf16>, vector<8x8xf32> -> vector<8x8xf32>
    %c8_109 = arith.constant 8 : index
    %c0_110 = arith.constant 0 : index
    %136 = vector.load %arg18[%c8_109, %c0_110] : memref<128x8xf32, #tpu.memory_space<vmem>>, vector<8x8xf32>
    tpu.vector_store %arg18[%c8_109, %c0_110], %135 {strides = array<i32>} : memref<128x8xf32, #tpu.memory_space<vmem>>, vector<8x8xf32>,
    %c2_111 = arith.constant 2 : index
    %c0_112 = arith.constant 0 : index
    %c0_113 = arith.constant 0 : index
    %137 = vector.load %arg9[%c2_111, %c0_112, %c0_113] : memref<16x32x8xbf16, #tpu.memory_space<vmem>>, vector<1x32x8xbf16>
    %138 = vector.shape_cast %137 : vector<1x32x8xbf16> to vector<32x8xbf16>
    %cst_114 = arith.constant dense<0.000000e+00> : vector<8x8xf32>
    %139 = tpu.matmul %128, %138, %cst_114 {dimension_numbers = #tpu.dot_dimension_numbers<[1], [0], [0], [1], [0, 0, 1, 1], [], []>} : vector<8x32xbf16>, vector<32x8xbf16>, vector<8x8xf32> -> vector<8x8xf32>
    %c16_115 = arith.constant 16 : index
    %c0_116 = arith.constant 0 : index
    %140 = vector.load %arg18[%c16_115, %c0_116] : memref<128x8xf32, #tpu.memory_space<vmem>>, vector<8x8xf32>
    tpu.vector_store %arg18[%c16_115, %c0_116], %139 {strides = array<i32>} : memref<128x8xf32, #tpu.memory_space<vmem>>, vector<8x8xf32>,
    %c3_117 = arith.constant 3 : index
    %c0_118 = arith.constant 0 : index
    %c0_119 = arith.constant 0 : index
    %141 = vector.load %arg9[%c3_117, %c0_118, %c0_119] : memref<16x32x8xbf16, #tpu.memory_space<vmem>>, vector<1x32x8xbf16>
    %142 = vector.shape_cast %141 : vector<1x32x8xbf16> to vector<32x8xbf16>
    %cst_120 = arith.constant dense<0.000000e+00> : vector<8x8xf32>
    %143 = tpu.matmul %128, %142, %cst_120 {dimension_numbers = #tpu.dot_dimension_numbers<[1], [0], [0], [1], [0, 0, 1, 1], [], []>} : vector<8x32xbf16>, vector<32x8xbf16>, vector<8x8xf32> -> vector<8x8xf32>
    %c24_121 = arith.constant 24 : index
    %c0_122 = arith.constant 0 : index
    %144 = vector.load %arg18[%c24_121, %c0_122] : memref<128x8xf32, #tpu.memory_space<vmem>>, vector<8x8xf32>
    tpu.vector_store %arg18[%c24_121, %c0_122], %143 {strides = array<i32>} : memref<128x8xf32, #tpu.memory_space<vmem>>, vector<8x8xf32>,
    %c4_123 = arith.constant 4 : index
    %c0_124 = arith.constant 0 : index
    %c0_125 = arith.constant 0 : index
    %145 = vector.load %arg9[%c4_123, %c0_124, %c0_125] : memref<16x32x8xbf16, #tpu.memory_space<vmem>>, vector<1x32x8xbf16>
    %146 = vector.shape_cast %145 : vector<1x32x8xbf16> to vector<32x8xbf16>
    %cst_126 = arith.constant dense<0.000000e+00> : vector<8x8xf32>
    %147 = tpu.matmul %128, %146, %cst_126 {dimension_numbers = #tpu.dot_dimension_numbers<[1], [0], [0], [1], [0, 0, 1, 1], [], []>} : vector<8x32xbf16>, vector<32x8xbf16>, vector<8x8xf32> -> vector<8x8xf32>
    %c32_127 = arith.constant 32 : index
    %c0_128 = arith.constant 0 : index
    %148 = vector.load %arg18[%c32_127, %c0_128] : memref<128x8xf32, #tpu.memory_space<vmem>>, vector<8x8xf32>
    tpu.vector_store %arg18[%c32_127, %c0_128], %147 {strides = array<i32>} : memref<128x8xf32, #tpu.memory_space<vmem>>, vector<8x8xf32>,
    %c5_129 = arith.constant 5 : index
    %c0_130 = arith.constant 0 : index
    %c0_131 = arith.constant 0 : index
    %149 = vector.load %arg9[%c5_129, %c0_130, %c0_131] : memref<16x32x8xbf16, #tpu.memory_space<vmem>>, vector<1x32x8xbf16>
    %150 = vector.shape_cast %149 : vector<1x32x8xbf16> to vector<32x8xbf16>
    %cst_132 = arith.constant dense<0.000000e+00> : vector<8x8xf32>
    %151 = tpu.matmul %128, %150, %cst_132 {dimension_numbers = #tpu.dot_dimension_numbers<[1], [0], [0], [1], [0, 0, 1, 1], [], []>} : vector<8x32xbf16>, vector<32x8xbf16>, vector<8x8xf32> -> vector<8x8xf32>
    %c40_133 = arith.constant 40 : index
    %c0_134 = arith.constant 0 : index
    %152 = vector.load %arg18[%c40_133, %c0_134] : memref<128x8xf32, #tpu.memory_space<vmem>>, vector<8x8xf32>
    tpu.vector_store %arg18[%c40_133, %c0_134], %151 {strides = array<i32>} : memref<128x8xf32, #tpu.memory_space<vmem>>, vector<8x8xf32>,
    %c6_135 = arith.constant 6 : index
    %c0_136 = arith.constant 0 : index
    %c0_137 = arith.constant 0 : index
    %153 = vector.load %arg9[%c6_135, %c0_136, %c0_137] : memref<16x32x8xbf16, #tpu.memory_space<vmem>>, vector<1x32x8xbf16>
    %154 = vector.shape_cast %153 : vector<1x32x8xbf16> to vector<32x8xbf16>
    %cst_138 = arith.constant dense<0.000000e+00> : vector<8x8xf32>
    %155 = tpu.matmul %128, %154, %cst_138 {dimension_numbers = #tpu.dot_dimension_numbers<[1], [0], [0], [1], [0, 0, 1, 1], [], []>} : vector<8x32xbf16>, vector<32x8xbf16>, vector<8x8xf32> -> vector<8x8xf32>
    %c48_139 = arith.constant 48 : index
    %c0_140 = arith.constant 0 : index
    %156 = vector.load %arg18[%c48_139, %c0_140] : memref<128x8xf32, #tpu.memory_space<vmem>>, vector<8x8xf32>
    tpu.vector_store %arg18[%c48_139, %c0_140], %155 {strides = array<i32>} : memref<128x8xf32, #tpu.memory_space<vmem>>, vector<8x8xf32>,
    %c7_141 = arith.constant 7 : index
    %c0_142 = arith.constant 0 : index
    %c0_143 = arith.constant 0 : index
    %157 = vector.load %arg9[%c7_141, %c0_142, %c0_143] : memref<16x32x8xbf16, #tpu.memory_space<vmem>>, vector<1x32x8xbf16>
    %158 = vector.shape_cast %157 : vector<1x32x8xbf16> to vector<32x8xbf16>
    %cst_144 = arith.constant dense<0.000000e+00> : vector<8x8xf32>
    %159 = tpu.matmul %128, %158, %cst_144 {dimension_numbers = #tpu.dot_dimension_numbers<[1], [0], [0], [1], [0, 0, 1, 1], [], []>} : vector<8x32xbf16>, vector<32x8xbf16>, vector<8x8xf32> -> vector<8x8xf32>
    %c56_145 = arith.constant 56 : index
    %c0_146 = arith.constant 0 : index
    %160 = vector.load %arg18[%c56_145, %c0_146] : memref<128x8xf32, #tpu.memory_space<vmem>>, vector<8x8xf32>
    tpu.vector_store %arg18[%c56_145, %c0_146], %159 {strides = array<i32>} : memref<128x8xf32, #tpu.memory_space<vmem>>, vector<8x8xf32>,
    %c8_147 = arith.constant 8 : index
    %c0_148 = arith.constant 0 : index
    %c0_149 = arith.constant 0 : index
    %161 = vector.load %arg9[%c8_147, %c0_148, %c0_149] : memref<16x32x8xbf16, #tpu.memory_space<vmem>>, vector<1x32x8xbf16>
    %162 = vector.shape_cast %161 : vector<1x32x8xbf16> to vector<32x8xbf16>
    %cst_150 = arith.constant dense<0.000000e+00> : vector<8x8xf32>
    %163 = tpu.matmul %128, %162, %cst_150 {dimension_numbers = #tpu.dot_dimension_numbers<[1], [0], [0], [1], [0, 0, 1, 1], [], []>} : vector<8x32xbf16>, vector<32x8xbf16>, vector<8x8xf32> -> vector<8x8xf32>
    %c64 = arith.constant 64 : index
    %c0_151 = arith.constant 0 : index
    %164 = vector.load %arg18[%c64, %c0_151] : memref<128x8xf32, #tpu.memory_space<vmem>>, vector<8x8xf32>
    tpu.vector_store %arg18[%c64, %c0_151], %163 {strides = array<i32>} : memref<128x8xf32, #tpu.memory_space<vmem>>, vector<8x8xf32>,
    %c9_152 = arith.constant 9 : index
    %c0_153 = arith.constant 0 : index
    %c0_154 = arith.constant 0 : index
    %165 = vector.load %arg9[%c9_152, %c0_153, %c0_154] : memref<16x32x8xbf16, #tpu.memory_space<vmem>>, vector<1x32x8xbf16>
    %166 = vector.shape_cast %165 : vector<1x32x8xbf16> to vector<32x8xbf16>
    %cst_155 = arith.constant dense<0.000000e+00> : vector<8x8xf32>
    %167 = tpu.matmul %128, %166, %cst_155 {dimension_numbers = #tpu.dot_dimension_numbers<[1], [0], [0], [1], [0, 0, 1, 1], [], []>} : vector<8x32xbf16>, vector<32x8xbf16>, vector<8x8xf32> -> vector<8x8xf32>
    %c72 = arith.constant 72 : index
    %c0_156 = arith.constant 0 : index
    %168 = vector.load %arg18[%c72, %c0_156] : memref<128x8xf32, #tpu.memory_space<vmem>>, vector<8x8xf32>
    tpu.vector_store %arg18[%c72, %c0_156], %167 {strides = array<i32>} : memref<128x8xf32, #tpu.memory_space<vmem>>, vector<8x8xf32>,
    %c10_157 = arith.constant 10 : index
    %c0_158 = arith.constant 0 : index
    %c0_159 = arith.constant 0 : index
    %169 = vector.load %arg9[%c10_157, %c0_158, %c0_159] : memref<16x32x8xbf16, #tpu.memory_space<vmem>>, vector<1x32x8xbf16>
    %170 = vector.shape_cast %169 : vector<1x32x8xbf16> to vector<32x8xbf16>
    %cst_160 = arith.constant dense<0.000000e+00> : vector<8x8xf32>
    %171 = tpu.matmul %128, %170, %cst_160 {dimension_numbers = #tpu.dot_dimension_numbers<[1], [0], [0], [1], [0, 0, 1, 1], [], []>} : vector<8x32xbf16>, vector<32x8xbf16>, vector<8x8xf32> -> vector<8x8xf32>
    %c80 = arith.constant 80 : index
    %c0_161 = arith.constant 0 : index
    %172 = vector.load %arg18[%c80, %c0_161] : memref<128x8xf32, #tpu.memory_space<vmem>>, vector<8x8xf32>
    tpu.vector_store %arg18[%c80, %c0_161], %171 {strides = array<i32>} : memref<128x8xf32, #tpu.memory_space<vmem>>, vector<8x8xf32>,
    %c11_162 = arith.constant 11 : index
    %c0_163 = arith.constant 0 : index
    %c0_164 = arith.constant 0 : index
    %173 = vector.load %arg9[%c11_162, %c0_163, %c0_164] : memref<16x32x8xbf16, #tpu.memory_space<vmem>>, vector<1x32x8xbf16>
    %174 = vector.shape_cast %173 : vector<1x32x8xbf16> to vector<32x8xbf16>
    %cst_165 = arith.constant dense<0.000000e+00> : vector<8x8xf32>
    %175 = tpu.matmul %128, %174, %cst_165 {dimension_numbers = #tpu.dot_dimension_numbers<[1], [0], [0], [1], [0, 0, 1, 1], [], []>} : vector<8x32xbf16>, vector<32x8xbf16>, vector<8x8xf32> -> vector<8x8xf32>
    %c88 = arith.constant 88 : index
    %c0_166 = arith.constant 0 : index
    %176 = vector.load %arg18[%c88, %c0_166] : memref<128x8xf32, #tpu.memory_space<vmem>>, vector<8x8xf32>
    tpu.vector_store %arg18[%c88, %c0_166], %175 {strides = array<i32>} : memref<128x8xf32, #tpu.memory_space<vmem>>, vector<8x8xf32>,
    %c12_167 = arith.constant 12 : index
    %c0_168 = arith.constant 0 : index
    %c0_169 = arith.constant 0 : index
    %177 = vector.load %arg9[%c12_167, %c0_168, %c0_169] : memref<16x32x8xbf16, #tpu.memory_space<vmem>>, vector<1x32x8xbf16>
    %178 = vector.shape_cast %177 : vector<1x32x8xbf16> to vector<32x8xbf16>
    %cst_170 = arith.constant dense<0.000000e+00> : vector<8x8xf32>
    %179 = tpu.matmul %128, %178, %cst_170 {dimension_numbers = #tpu.dot_dimension_numbers<[1], [0], [0], [1], [0, 0, 1, 1], [], []>} : vector<8x32xbf16>, vector<32x8xbf16>, vector<8x8xf32> -> vector<8x8xf32>
    %c96 = arith.constant 96 : index
    %c0_171 = arith.constant 0 : index
    %180 = vector.load %arg18[%c96, %c0_171] : memref<128x8xf32, #tpu.memory_space<vmem>>, vector<8x8xf32>
    tpu.vector_store %arg18[%c96, %c0_171], %179 {strides = array<i32>} : memref<128x8xf32, #tpu.memory_space<vmem>>, vector<8x8xf32>,
    %c13_172 = arith.constant 13 : index
    %c0_173 = arith.constant 0 : index
    %c0_174 = arith.constant 0 : index
    %181 = vector.load %arg9[%c13_172, %c0_173, %c0_174] : memref<16x32x8xbf16, #tpu.memory_space<vmem>>, vector<1x32x8xbf16>
    %182 = vector.shape_cast %181 : vector<1x32x8xbf16> to vector<32x8xbf16>
    %cst_175 = arith.constant dense<0.000000e+00> : vector<8x8xf32>
    %183 = tpu.matmul %128, %182, %cst_175 {dimension_numbers = #tpu.dot_dimension_numbers<[1], [0], [0], [1], [0, 0, 1, 1], [], []>} : vector<8x32xbf16>, vector<32x8xbf16>, vector<8x8xf32> -> vector<8x8xf32>
    %c104 = arith.constant 104 : index
    %c0_176 = arith.constant 0 : index
    %184 = vector.load %arg18[%c104, %c0_176] : memref<128x8xf32, #tpu.memory_space<vmem>>, vector<8x8xf32>
    tpu.vector_store %arg18[%c104, %c0_176], %183 {strides = array<i32>} : memref<128x8xf32, #tpu.memory_space<vmem>>, vector<8x8xf32>,
    %c14_177 = arith.constant 14 : index
    %c0_178 = arith.constant 0 : index
    %c0_179 = arith.constant 0 : index
    %185 = vector.load %arg9[%c14_177, %c0_178, %c0_179] : memref<16x32x8xbf16, #tpu.memory_space<vmem>>, vector<1x32x8xbf16>
    %186 = vector.shape_cast %185 : vector<1x32x8xbf16> to vector<32x8xbf16>
    %cst_180 = arith.constant dense<0.000000e+00> : vector<8x8xf32>
    %187 = tpu.matmul %128, %186, %cst_180 {dimension_numbers = #tpu.dot_dimension_numbers<[1], [0], [0], [1], [0, 0, 1, 1], [], []>} : vector<8x32xbf16>, vector<32x8xbf16>, vector<8x8xf32> -> vector<8x8xf32>
    %c112 = arith.constant 112 : index
    %c0_181 = arith.constant 0 : index
    %188 = vector.load %arg18[%c112, %c0_181] : memref<128x8xf32, #tpu.memory_space<vmem>>, vector<8x8xf32>
    tpu.vector_store %arg18[%c112, %c0_181], %187 {strides = array<i32>} : memref<128x8xf32, #tpu.memory_space<vmem>>, vector<8x8xf32>,
    %c15_182 = arith.constant 15 : index
    %c0_183 = arith.constant 0 : index
    %c0_184 = arith.constant 0 : index
    %189 = vector.load %arg9[%c15_182, %c0_183, %c0_184] : memref<16x32x8xbf16, #tpu.memory_space<vmem>>, vector<1x32x8xbf16>
    %190 = vector.shape_cast %189 : vector<1x32x8xbf16> to vector<32x8xbf16>
    %cst_185 = arith.constant dense<0.000000e+00> : vector<8x8xf32>
    %191 = tpu.matmul %128, %190, %cst_185 {dimension_numbers = #tpu.dot_dimension_numbers<[1], [0], [0], [1], [0, 0, 1, 1], [], []>} : vector<8x32xbf16>, vector<32x8xbf16>, vector<8x8xf32> -> vector<8x8xf32>
    %c120 = arith.constant 120 : index
    %c0_186 = arith.constant 0 : index
    %192 = vector.load %arg18[%c120, %c0_186] : memref<128x8xf32, #tpu.memory_space<vmem>>, vector<8x8xf32>
    tpu.vector_store %arg18[%c120, %c0_186], %191 {strides = array<i32>} : memref<128x8xf32, #tpu.memory_space<vmem>>, vector<8x8xf32>,
    %c0_187 = arith.constant 0 : index
    %c0_188 = arith.constant 0 : index
    %193 = vector.load %arg10[%c0_187, %c0_188] : memref<16x128xbf16, #tpu.memory_space<vmem>>, vector<16x128xbf16>
    %c0_189 = arith.constant 0 : index
    %c0_190 = arith.constant 0 : index
    %194 = vector.load %arg18[%c0_189, %c0_190] : memref<128x8xf32, #tpu.memory_space<vmem>>, vector<128x8xf32>
    %195 = arith.truncf %194 : vector<128x8xf32> to vector<128x8xbf16>
    %cst_191 = arith.constant dense<0.000000e+00> : vector<16x8xf32>
    %196 = tpu.matmul %193, %195, %cst_191 {dimension_numbers = #tpu.dot_dimension_numbers<[1], [0], [0], [1], [0, 0, 1, 1], [], []>} : vector<16x128xbf16>, vector<128x8xbf16>, vector<16x8xf32> -> vector<16x8xf32>
    %c0_192 = arith.constant 0 : index
    %c0_193 = arith.constant 0 : index
    %197 = vector.load %arg11[%c0_192, %c0_193] : memref<16x1xf32, #tpu.memory_space<vmem>>, vector<16x1xf32>
    %c0_194 = arith.constant 0 : index
    %c0_195 = arith.constant 0 : index
    %198 = vector.load %arg12[%c0_194, %c0_195] : memref<16x1xf32, #tpu.memory_space<vmem>>, vector<16x1xf32>
    %cst_196 = arith.constant dense<0.000000e+00> : vector<16xf32>
    %199 = vector.multi_reduction <add>, %196, %cst_196 [1] : vector<16x8xf32> to vector<16xf32>
    %200 = vector.shape_cast %199 : vector<16xf32> to vector<16x1xf32>
    %201 = arith.mulf %196, %196 : vector<16x8xf32>
    %cst_197 = arith.constant dense<0.000000e+00> : vector<16xf32>
    %202 = vector.multi_reduction <add>, %201, %cst_197 [1] : vector<16x8xf32> to vector<16xf32>
    %203 = vector.shape_cast %202 : vector<16xf32> to vector<16x1xf32>
    %cst_198 = arith.constant 1.250000e-01 : f32
    %204 = vector.broadcast %cst_198 : f32 to vector<16x1xf32>
    %205 = arith.mulf %200, %204 : vector<16x1xf32>
    %cst_199 = arith.constant 1.250000e-01 : f32
    %206 = vector.broadcast %cst_199 : f32 to vector<16x1xf32>
    %207 = arith.mulf %203, %206 : vector<16x1xf32>
    %208 = arith.mulf %205, %205 : vector<16x1xf32>
    %209 = arith.subf %207, %208 : vector<16x1xf32>
    %cst_200 = arith.constant 0.000000e+00 : f32
    %210 = vector.broadcast %cst_200 : f32 to vector<16x1xf32>
    %211 = arith.maximumf %209, %210 : vector<16x1xf32>
    %cst_201 = arith.constant 9.99999974E-6 : f32
    %212 = vector.broadcast %cst_201 : f32 to vector<16x1xf32>
    %213 = arith.addf %211, %212 : vector<16x1xf32>
    %214 = math.rsqrt %213 : vector<16x1xf32>
    %215 = arith.mulf %197, %214 : vector<16x1xf32>
    %216 = arith.mulf %205, %215 : vector<16x1xf32>
    %217 = arith.subf %198, %216 : vector<16x1xf32>
    %218 = vector.broadcast %215 : vector<16x1xf32> to vector<16x8xf32>
    %219 = arith.mulf %196, %218 : vector<16x8xf32>
    %220 = vector.broadcast %217 : vector<16x1xf32> to vector<16x8xf32>
    %221 = arith.addf %219, %220 : vector<16x8xf32>
    %cst_202 = arith.constant 2.000000e-01 : f32
    %222 = vector.broadcast %cst_202 : f32 to vector<16x8xf32>
    %223 = arith.mulf %222, %221 : vector<16x8xf32>
    %224 = arith.maximumf %221, %223 : vector<16x8xf32>
    %225 = arith.truncf %224 : vector<16x8xf32> to vector<16x8xbf16>
    %c0_203 = arith.constant 0 : index
    %c0_204 = arith.constant 0 : index
    %c0_205 = arith.constant 0 : index
    %226 = vector.load %arg13[%c0_203, %c0_204, %c0_205] : memref<4x8x128xbf16, #tpu.memory_space<vmem>>, vector<1x8x128xbf16>
    %227 = vector.shape_cast %226 : vector<1x8x128xbf16> to vector<8x128xbf16>
    %cst_206 = arith.constant dense<0.000000e+00> : vector<16x128xf32>
    %228 = tpu.matmul %225, %227, %cst_206 {dimension_numbers = #tpu.dot_dimension_numbers<[1], [0], [0], [1], [0, 0, 1, 1], [], []>} : vector<16x8xbf16>, vector<8x128xbf16>, vector<16x128xf32> -> vector<16x128xf32>
    %c0_207 = arith.constant 0 : index
    %c0_208 = arith.constant 0 : index
    %229 = vector.load %arg19[%c0_207, %c0_208] : memref<64x128xf32, #tpu.memory_space<vmem>>, vector<16x128xf32>
    tpu.vector_store %arg19[%c0_207, %c0_208], %228 {strides = array<i32>} : memref<64x128xf32, #tpu.memory_space<vmem>>, vector<16x128xf32>,
    %c1_209 = arith.constant 1 : index
    %c0_210 = arith.constant 0 : index
    %c0_211 = arith.constant 0 : index
    %230 = vector.load %arg13[%c1_209, %c0_210, %c0_211] : memref<4x8x128xbf16, #tpu.memory_space<vmem>>, vector<1x8x128xbf16>
    %231 = vector.shape_cast %230 : vector<1x8x128xbf16> to vector<8x128xbf16>
    %cst_212 = arith.constant dense<0.000000e+00> : vector<16x128xf32>
    %232 = tpu.matmul %225, %231, %cst_212 {dimension_numbers = #tpu.dot_dimension_numbers<[1], [0], [0], [1], [0, 0, 1, 1], [], []>} : vector<16x8xbf16>, vector<8x128xbf16>, vector<16x128xf32> -> vector<16x128xf32>
    %c16_213 = arith.constant 16 : index
    %c0_214 = arith.constant 0 : index
    %233 = vector.load %arg19[%c16_213, %c0_214] : memref<64x128xf32, #tpu.memory_space<vmem>>, vector<16x128xf32>
    tpu.vector_store %arg19[%c16_213, %c0_214], %232 {strides = array<i32>} : memref<64x128xf32, #tpu.memory_space<vmem>>, vector<16x128xf32>,
    %c2_215 = arith.constant 2 : index
    %c0_216 = arith.constant 0 : index
    %c0_217 = arith.constant 0 : index
    %234 = vector.load %arg13[%c2_215, %c0_216, %c0_217] : memref<4x8x128xbf16, #tpu.memory_space<vmem>>, vector<1x8x128xbf16>
    %235 = vector.shape_cast %234 : vector<1x8x128xbf16> to vector<8x128xbf16>
    %cst_218 = arith.constant dense<0.000000e+00> : vector<16x128xf32>
    %236 = tpu.matmul %225, %235, %cst_218 {dimension_numbers = #tpu.dot_dimension_numbers<[1], [0], [0], [1], [0, 0, 1, 1], [], []>} : vector<16x8xbf16>, vector<8x128xbf16>, vector<16x128xf32> -> vector<16x128xf32>
    %c32_219 = arith.constant 32 : index
    %c0_220 = arith.constant 0 : index
    %237 = vector.load %arg19[%c32_219, %c0_220] : memref<64x128xf32, #tpu.memory_space<vmem>>, vector<16x128xf32>
    tpu.vector_store %arg19[%c32_219, %c0_220], %236 {strides = array<i32>} : memref<64x128xf32, #tpu.memory_space<vmem>>, vector<16x128xf32>,
    %c3_221 = arith.constant 3 : index
    %c0_222 = arith.constant 0 : index
    %c0_223 = arith.constant 0 : index
    %238 = vector.load %arg13[%c3_221, %c0_222, %c0_223] : memref<4x8x128xbf16, #tpu.memory_space<vmem>>, vector<1x8x128xbf16>
    %239 = vector.shape_cast %238 : vector<1x8x128xbf16> to vector<8x128xbf16>
    %cst_224 = arith.constant dense<0.000000e+00> : vector<16x128xf32>
    %240 = tpu.matmul %225, %239, %cst_224 {dimension_numbers = #tpu.dot_dimension_numbers<[1], [0], [0], [1], [0, 0, 1, 1], [], []>} : vector<16x8xbf16>, vector<8x128xbf16>, vector<16x128xf32> -> vector<16x128xf32>
    %c48_225 = arith.constant 48 : index
    %c0_226 = arith.constant 0 : index
    %241 = vector.load %arg19[%c48_225, %c0_226] : memref<64x128xf32, #tpu.memory_space<vmem>>, vector<16x128xf32>
    tpu.vector_store %arg19[%c48_225, %c0_226], %240 {strides = array<i32>} : memref<64x128xf32, #tpu.memory_space<vmem>>, vector<16x128xf32>,
    %c0_227 = arith.constant 0 : index
    %c0_228 = arith.constant 0 : index
    %242 = vector.load %arg14[%c0_227, %c0_228] : memref<8x64xbf16, #tpu.memory_space<vmem>>, vector<8x64xbf16>
    %c0_229 = arith.constant 0 : index
    %c0_230 = arith.constant 0 : index
    %243 = vector.load %arg19[%c0_229, %c0_230] : memref<64x128xf32, #tpu.memory_space<vmem>>, vector<64x128xf32>
    %244 = arith.truncf %243 : vector<64x128xf32> to vector<64x128xbf16>
    %cst_231 = arith.constant dense<0.000000e+00> : vector<8x128xf32>
    %245 = tpu.matmul %242, %244, %cst_231 {dimension_numbers = #tpu.dot_dimension_numbers<[1], [0], [0], [1], [0, 0, 1, 1], [], []>} : vector<8x64xbf16>, vector<64x128xbf16>, vector<8x128xf32> -> vector<8x128xf32>
    %c0_232 = arith.constant 0 : index
    %c0_233 = arith.constant 0 : index
    %246 = vector.load %arg15[%c0_232, %c0_233] : memref<8x1xf32, #tpu.memory_space<vmem>>, vector<8x1xf32>
    %247 = vector.broadcast %246 : vector<8x1xf32> to vector<8x128xf32>
    %248 = arith.addf %245, %247 : vector<8x128xf32>
    %c0_234 = arith.constant 0 : index
    %c0_235 = arith.constant 0 : index
    %249 = vector.load %arg16[%c0_234, %c0_235] : memref<8x128xf32, #tpu.memory_space<vmem>>, vector<8x128xf32>
    tpu.vector_store %arg16[%c0_234, %c0_235], %248 {strides = array<i32>} : memref<8x128xf32, #tpu.memory_space<vmem>>, vector<8x128xf32>,
    return
  }
  func.func @transform_0(%arg0: i32) -> (i32, i32) {
    %c0_i32 = arith.constant 0 : i32
    %c0_i32_0 = arith.constant 0 : i32
    %c0_i32_1 = arith.constant 0 : i32
    return %c0_i32, %c0_i32_0 : i32, i32
  }
  func.func @transform_1(%arg0: i32) -> (i32, i32) {
    %c0_i32 = arith.constant 0 : i32
    %c0_i32_0 = arith.constant 0 : i32
    %c0_i32_1 = arith.constant 0 : i32
    return %c0_i32, %c0_i32_0 : i32, i32
  }
  func.func @transform_2(%arg0: i32) -> (i32, i32) {
    %c0_i32 = arith.constant 0 : i32
    %c0_i32_0 = arith.constant 0 : i32
    %c0_i32_1 = arith.constant 0 : i32
    return %c0_i32, %c0_i32_0 : i32, i32
  }
  func.func @transform_3(%arg0: i32) -> (i32, i32) {
    %c0_i32 = arith.constant 0 : i32
    %c0_i32_0 = arith.constant 0 : i32
    %c0_i32_1 = arith.constant 0 : i32
    return %c0_i32, %c0_i32_0 : i32, i32
  }
  func.func @transform_4(%arg0: i32) -> (i32, i32, i32) {
    %c0_i32 = arith.constant 0 : i32
    %c0_i32_0 = arith.constant 0 : i32
    %c0_i32_1 = arith.constant 0 : i32
    %c0_i32_2 = arith.constant 0 : i32
    return %c0_i32, %c0_i32_0, %c0_i32_1 : i32, i32, i32
  }
  func.func @transform_5(%arg0: i32) -> (i32, i32) {
    %c0_i32 = arith.constant 0 : i32
    %c0_i32_0 = arith.constant 0 : i32
    %c0_i32_1 = arith.constant 0 : i32
    return %c0_i32, %c0_i32_0 : i32, i32
  }
  func.func @transform_6(%arg0: i32) -> (i32, i32) {
    %c0_i32 = arith.constant 0 : i32
    %c0_i32_0 = arith.constant 0 : i32
    %c0_i32_1 = arith.constant 0 : i32
    return %c0_i32, %c0_i32_0 : i32, i32
  }
  func.func @transform_7(%arg0: i32) -> (i32, i32) {
    %c0_i32 = arith.constant 0 : i32
    %c0_i32_0 = arith.constant 0 : i32
    %c0_i32_1 = arith.constant 0 : i32
    return %c0_i32, %c0_i32_0 : i32, i32
  }
  func.func @transform_8(%arg0: i32) -> (i32, i32, i32) {
    %c0_i32 = arith.constant 0 : i32
    %c0_i32_0 = arith.constant 0 : i32
    %c0_i32_1 = arith.constant 0 : i32
    %c0_i32_2 = arith.constant 0 : i32
    return %c0_i32, %c0_i32_0, %c0_i32_1 : i32, i32, i32
  }
  func.func @transform_9(%arg0: i32) -> (i32, i32) {
    %c0_i32 = arith.constant 0 : i32
    %c0_i32_0 = arith.constant 0 : i32
    %c0_i32_1 = arith.constant 0 : i32
    return %c0_i32, %c0_i32_0 : i32, i32
  }
  func.func @transform_10(%arg0: i32) -> (i32, i32) {
    %c0_i32 = arith.constant 0 : i32
    %c0_i32_0 = arith.constant 0 : i32
    %c0_i32_1 = arith.constant 0 : i32
    return %c0_i32, %c0_i32_0 : i32, i32
  }
  func.func @transform_11(%arg0: i32) -> (i32, i32) {
    %c0_i32 = arith.constant 0 : i32
    %c0_i32_0 = arith.constant 0 : i32
    %c0_i32_1 = arith.constant 0 : i32
    return %c0_i32, %c0_i32_0 : i32, i32
  }
  func.func @transform_12(%arg0: i32) -> (i32, i32, i32) {
    %c0_i32 = arith.constant 0 : i32
    %c0_i32_0 = arith.constant 0 : i32
    %c0_i32_1 = arith.constant 0 : i32
    %c0_i32_2 = arith.constant 0 : i32
    return %c0_i32, %c0_i32_0, %c0_i32_1 : i32, i32, i32
  }
  func.func @transform_13(%arg0: i32) -> (i32, i32) {
    %c0_i32 = arith.constant 0 : i32
    %c0_i32_0 = arith.constant 0 : i32
    %c0_i32_1 = arith.constant 0 : i32
    return %c0_i32, %c0_i32_0 : i32, i32
  }
  func.func @transform_14(%arg0: i32) -> (i32, i32) {
    %c0_i32 = arith.constant 0 : i32
    %c0_i32_0 = arith.constant 0 : i32
    %c0_i32_1 = arith.constant 0 : i32
    return %c0_i32, %c0_i32_0 : i32, i32
  }
  func.func @transform_15(%arg0: i32) -> (i32, i32) {
    %c0_i32 = arith.constant 0 : i32
    %c0_i32_0 = arith.constant 0 : i32
    %c0_i32_1 = arith.constant 0 : i32
    return %c0_i32, %c0_i32_0 : i32, i32
  }
}

</mosaic_0001>

<llo_original>
// kernel: classifier_forward.1
$region0: #{classifier_forward.1}
  #allocation0 [shape = 'u32[]', space=smem, size = 0x4, offset = 0x4, fixed_abs, tag = 'smem constant byte address 0x4 - core index']
  #allocation1 [shape = 'u32[144,128]{1,0:T(1,128)}', space=vmem, size = 0x12000, scoped, tag = 'internal scratch']
  #allocation2 [shape = 'f32[64,32]{1,0:T(8,128)}', space=vmem, size = 0x8000, scoped, tag = 'scratch operand']
  #allocation3 [shape = 'f32[128,8]{1,0:T(8,128)}', space=vmem, size = 0x10000, scoped, tag = 'scratch operand']
  #allocation4 [shape = 'f32[64,128]{1,0:T(8,128)}', space=vmem, size = 0x8000, scoped, tag = 'scratch operand']
  %s0 = inlined_call_operand.vmem [shape: bf16[16,128], index: 0, kind: input, shape index: {}]
  %s1 = inlined_call_operand.vmem [shape: bf16[4,16], index: 1, kind: input, shape index: {}]
  %s2 = inlined_call_operand.vmem [shape: f32[4,1], index: 2, kind: input, shape index: {}]
  %s3 = inlined_call_operand.vmem [shape: f32[4,1], index: 3, kind: input, shape index: {}]
  %s4 = inlined_call_operand.vmem [shape: bf16[16,128,32], index: 4, kind: input, shape index: {}]
  %s5 = inlined_call_operand.vmem [shape: bf16[8,64], index: 5, kind: input, shape index: {}]
  %s6 = inlined_call_operand.vmem [shape: f32[8,1], index: 6, kind: input, shape index: {}]
  %s7 = inlined_call_operand.vmem [shape: f32[8,1], index: 7, kind: input, shape index: {}]
  %s8 = inlined_call_operand.vmem [shape: bf16[16,32,8], index: 8, kind: input, shape index: {}]
  %s9 = inlined_call_operand.vmem [shape: bf16[16,128], index: 9, kind: input, shape index: {}]
  %s10 = inlined_call_operand.vmem [shape: f32[16,1], index: 10, kind: input, shape index: {}]
  %s11 = inlined_call_operand.vmem [shape: f32[16,1], index: 11, kind: input, shape index: {}]
  %s12 = inlined_call_operand.vmem [shape: bf16[4,8,128], index: 12, kind: input, shape index: {}]
  %s13 = inlined_call_operand.vmem [shape: bf16[8,64], index: 13, kind: input, shape index: {}]
  %s14 = inlined_call_operand.vmem [shape: f32[8,1], index: 14, kind: input, shape index: {}]
  %s15 = inlined_call_operand.vmem [shape: f32[8,128], index: 15, kind: output, shape index: {}]
  %s16 = sld [smem:[#allocation0]]
  $region70: #{classifier_forward.1} parent=0
    _
  %s18 = ssub.s32 1, %s16
  %s19 = scalar_select 0, %s18, %s16
  // Predicated region
  $region2: #{classifier_forward.1} parent=0 // pred_check
    _
  $region3: #{classifier_forward.1} parent=0 // pred_check_branch
    %21 = sbr.rel (0) target = $region5
  $region4: #{classifier_forward.1} parent=0 // pred_region
    _
  $region5: #{classifier_forward.1} parent=0 // pred_fallthru
    _
  // Predicated region
  $region6: #{classifier_forward.1} parent=0 // pred_check
    _
  $region7: #{classifier_forward.1} parent=0 // pred_check_branch
    %23 = sbr.rel (0) target = $region9
  $region8: #{classifier_forward.1} parent=0 // pred_region
    _
  $region9: #{classifier_forward.1} parent=0 // pred_fallthru
    _
  // Predicated region
  $region10: #{classifier_forward.1} parent=0 // pred_check
    _
  $region11: #{classifier_forward.1} parent=0 // pred_check_branch
    %25 = sbr.rel (0) target = $region13
  $region12: #{classifier_forward.1} parent=0 // pred_region
    _
  $region13: #{classifier_forward.1} parent=0 // pred_fallthru
    _
  // Predicated region
  $region14: #{classifier_forward.1} parent=0 // pred_check
    _
  $region15: #{classifier_forward.1} parent=0 // pred_check_branch
    %27 = sbr.rel (0) target = $region17
  $region16: #{classifier_forward.1} parent=0 // pred_region
    _
  $region17: #{classifier_forward.1} parent=0 // pred_fallthru
    _
  // Predicated region
  $region18: #{classifier_forward.1} parent=0 // pred_check
    _
  $region19: #{classifier_forward.1} parent=0 // pred_check_branch
    %29 = sbr.rel (0) target = $region21
  $region20: #{classifier_forward.1} parent=0 // pred_region
    _
  $region21: #{classifier_forward.1} parent=0 // pred_fallthru
    _
  // Predicated region
  $region22: #{classifier_forward.1} parent=0 // pred_check
    _
  $region23: #{classifier_forward.1} parent=0 // pred_check_branch
    %31 = sbr.rel (0) target = $region25
  $region24: #{classifier_forward.1} parent=0 // pred_region
    _
  $region25: #{classifier_forward.1} parent=0 // pred_fallthru
    _
  // Predicated region
  $region26: #{classifier_forward.1} parent=0 // pred_check
    _
  $region27: #{classifier_forward.1} parent=0 // pred_check_branch
    %33 = sbr.rel (0) target = $region29
  $region28: #{classifier_forward.1} parent=0 // pred_region
    _
  $region29: #{classifier_forward.1} parent=0 // pred_fallthru
    _
  // Predicated region
  $region30: #{classifier_forward.1} parent=0 // pred_check
    _
  $region31: #{classifier_forward.1} parent=0 // pred_check_branch
    %35 = sbr.rel (0) target = $region33
  $region32: #{classifier_forward.1} parent=0 // pred_region
    _
  $region33: #{classifier_forward.1} parent=0 // pred_fallthru
    _
  // Predicated region
  $region34: #{classifier_forward.1} parent=0 // pred_check
    _
  $region35: #{classifier_forward.1} parent=0 // pred_check_branch
    %37 = sbr.rel (0) target = $region37
  $region36: #{classifier_forward.1} parent=0 // pred_region
    _
  $region37: #{classifier_forward.1} parent=0 // pred_fallthru
    _
  // Predicated region
  $region38: #{classifier_forward.1} parent=0 // pred_check
    _
  $region39: #{classifier_forward.1} parent=0 // pred_check_branch
    %39 = sbr.rel (0) target = $region41
  $region40: #{classifier_forward.1} parent=0 // pred_region
    _
  $region41: #{classifier_forward.1} parent=0 // pred_fallthru
    _
  // Predicated region
  $region42: #{classifier_forward.1} parent=0 // pred_check
    _
  $region43: #{classifier_forward.1} parent=0 // pred_check_branch
    %41 = sbr.rel (0) target = $region45
  $region44: #{classifier_forward.1} parent=0 // pred_region
    _
  $region45: #{classifier_forward.1} parent=0 // pred_fallthru
    _
  // Predicated region
  $region46: #{classifier_forward.1} parent=0 // pred_check
    _
  $region47: #{classifier_forward.1} parent=0 // pred_check_branch
    %43 = sbr.rel (0) target = $region49
  $region48: #{classifier_forward.1} parent=0 // pred_region
    _
  $region49: #{classifier_forward.1} parent=0 // pred_fallthru
    _
  // Predicated region
  $region50: #{classifier_forward.1} parent=0 // pred_check
    _
  $region51: #{classifier_forward.1} parent=0 // pred_check_branch
    %45 = sbr.rel (0) target = $region53
  $region52: #{classifier_forward.1} parent=0 // pred_region
    _
  $region53: #{classifier_forward.1} parent=0 // pred_fallthru
    _
  // Predicated region
  $region54: #{classifier_forward.1} parent=0 // pred_check
    _
  $region55: #{classifier_forward.1} parent=0 // pred_check_branch
    %47 = sbr.rel (0) target = $region57
  $region56: #{classifier_forward.1} parent=0 // pred_region
    _
  $region57: #{classifier_forward.1} parent=0 // pred_fallthru
    _
  // Predicated region
  $region58: #{classifier_forward.1} parent=0 // pred_check
    _
  $region59: #{classifier_forward.1} parent=0 // pred_check_branch
    %49 = sbr.rel (0) target = $region61
  $region60: #{classifier_forward.1} parent=0 // pred_region
    _
  $region61: #{classifier_forward.1} parent=0 // pred_fallthru
    _
  %v51 = vld [vmem:[%s1] sm:$0x3]
  %v52 = vld [vmem:[%s0] sm:$0xf]
  %v53 = vld [vmem:[%s0 + $0x4] sm:$0xf]
  %v56 = vunpack.c.l.b16 %v52
  %v57 = vunpack.c.l.b16 %v53
  %v58 = vpack.c.b16 %v57, %v56
  %vm60 = vcmask 130048
  %v62 = vsel %vm60, %v51, 0
  %64 = vmatprep.subr.bf16.mxu0 0
  %65 = vmatpush1.bf16.msra.mxu0 0
  %66 = vmatprep.subr.bf16.mxu0 0
  %67 = vmatpush1.bf16.msra.mxu0 0
  %68 = vmatprep.subr.bf16.mxu0 0
  %69 = vmatpush1.bf16.msra.mxu0 0
  %70 = vmatprep.subr.bf16.mxu0 0
  %71 = vmatpush1.bf16.msra.mxu0 0
  %72 = vmatprep.subr.bf16.mxu0 0
  %73 = vmatpush1.bf16.msra.mxu0 0
  %74 = vmatprep.subr.bf16.mxu0 0
  %75 = vmatpush1.bf16.msra.mxu0 0
  %76 = vmatprep.subr.bf16.mxu0 0
  %77 = vmatpush1.bf16.msra.mxu0 0
  %78 = vmatprep.subr.bf16.mxu0 0
  %79 = vmatpush1.bf16.msra.mxu0 %v58
  %80 = vmatprep.subr.bf16.mxu0 0
  %81 = vmatpush2.bf16.msra.mxu0 0
  %82 = vmatprep.subr.bf16.mxu0 0
  %83 = vmatpush2.bf16.msra.mxu0 0
  %84 = vmatprep.subr.bf16.mxu0 0
  %85 = vmatpush2.bf16.msra.mxu0 0
  %86 = vmatprep.subr.bf16.mxu0 0
  %87 = vmatpush2.bf16.msra.mxu0 0
  %88 = vmatprep.subr.bf16.mxu0 0
  %89 = vmatpush2.bf16.msra.mxu0 0
  %90 = vmatprep.subr.bf16.mxu0 0
  %91 = vmatpush2.bf16.msra.mxu0 0
  %92 = vmatprep.subr.bf16.mxu0 0
  %93 = vmatpush2.bf16.msra.mxu0 0
  %94 = vmatprep.subr.bf16.mxu0 0
  %95 = vmatpush2.bf16.msra.mxu0 0
  %96 = vmatprep.mubr.bf16.mxu0 0
  %97 = vmatmul.mubr.bf16.gmra.mxu0 %v62
  %v98 = vpop.f32.mrf.mxu0
  %v99 = vadd.f32 0.0, %v98
  %v100 = vpop.f32.mrf.mxu0
  %v101 = vpop.f32.mrf.mxu0
  %v102 = vpop.f32.mrf.mxu0
  %103 = vdwg.mxu0
  %v104 = vld [vmem:[%s2] sm:$0xf]
  %v105 = vld [vmem:[%s3] sm:$0xf]
  %vm106 = vcmask 1043456
  %v107 = vsel %vm106, %v99, 0.0
  %108 = vadd.xlane.f32.xlu0 %v107
  %v109 = vpop.xlane.xlu0 %108
  %v110 = vmul.f32 %v99, %v99
  %v111 = vsel %vm106, %v110, 0.0
  %112 = vadd.xlane.f32.xlu0 %v111
  %v113 = vpop.xlane.xlu0 %112
  %v114 = vmul.f32 %v109, 0.0078125
  %v115 = vmul.f32 %v113, 0.0078125
  %v116 = vmul.f32 %v114, %v114
  %v117 = vsub.f32 %v115, %v116
  %v118 = vmax.f32 %v117, 0.0
  %v119 = vadd.f32 %v118, 1e-05
  %v120 = vrsqrt.pop %v119
  %v121 = vmul.f32 %v104, %v120
  %v122 = vmul.f32 %v114, %v121
  %v123 = vsub.f32 %v105, %v122
  %125 = vset.pattern.permute.xlu0 0
  %126 = vperm.xlu0 %125, %v121
  %v127 = vpop.permute.xlu0 %126
  %v129 = vmul.f32 %v99, %v127
  %131 = vset.pattern.permute.xlu0 0
  %132 = vperm.xlu0 %131, %v123
  %v133 = vpop.permute.xlu0 %132
  %v135 = vadd.f32 %v129, %v133
  %v136 = vmul.f32 %v135, 0.2
  %v137 = vmax.f32 %v135, %v136
  %v138 = vpack.c.bf16 %v137, %v137
  %v139 = vld [vmem:[%s4] sm:$0xf]
  %v140 = vld [vmem:[%s4 + $0x4] sm:$0xf]
  %v141 = vld [vmem:[%s4 + $0x8] sm:$0xf]
  %v142 = vld [vmem:[%s4 + $0xc] sm:$0xf]
  %v143 = vld [vmem:[%s4 + $0x10] sm:$0xf]
  %v144 = vld [vmem:[%s4 + $0x14] sm:$0xf]
  %v145 = vld [vmem:[%s4 + $0x18] sm:$0xf]
  %v146 = vld [vmem:[%s4 + $0x1c] sm:$0xf]
  %v147 = vld [vmem:[%s4 + $0x20] sm:$0xf]
  %v148 = vld [vmem:[%s4 + $0x24] sm:$0xf]
  %v149 = vld [vmem:[%s4 + $0x28] sm:$0xf]
  %v150 = vld [vmem:[%s4 + $0x2c] sm:$0xf]
  %v151 = vld [vmem:[%s4 + $0x30] sm:$0xf]
  %v152 = vld [vmem:[%s4 + $0x34] sm:$0xf]
  %v153 = vld [vmem:[%s4 + $0x38] sm:$0xf]
  %v154 = vld [vmem:[%s4 + $0x3c] sm:$0xf]
  %v171 = vunpack.c.l.b16 %v139
  %v172 = vunpack.c.l.b16 %v140
  %v173 = vunpack.c.l.b16 %v141
  %v174 = vunpack.c.l.b16 %v142
  %v175 = vunpack.c.l.b16 %v143
  %v176 = vunpack.c.l.b16 %v144
  %v177 = vunpack.c.l.b16 %v145
  %v178 = vunpack.c.l.b16 %v146
  %v179 = vunpack.c.l.b16 %v147
  %v180 = vunpack.c.l.b16 %v148
  %v181 = vunpack.c.l.b16 %v149
  %v182 = vunpack.c.l.b16 %v150
  %v183 = vunpack.c.l.b16 %v151
  %v184 = vunpack.c.l.b16 %v152
  %v185 = vunpack.c.l.b16 %v153
  %v186 = vunpack.c.l.b16 %v154
  %v187 = vpack.c.b16 %v172, %v171
  %v188 = vpack.c.b16 %v174, %v173
  %v189 = vpack.c.b16 %v176, %v175
  %v190 = vpack.c.b16 %v178, %v177
  %v191 = vpack.c.b16 %v180, %v179
  %v192 = vpack.c.b16 %v182, %v181
  %v193 = vpack.c.b16 %v184, %v183
  %v194 = vpack.c.b16 %v186, %v185
  %203 = vmatprep.subr.bf16.mxu0 0
  %204 = vmatpush1.bf16.msra.mxu0 %v194
  %205 = vmatprep.subr.bf16.mxu0 0
  %206 = vmatpush1.bf16.msra.mxu0 %v193
  %207 = vmatprep.subr.bf16.mxu0 0
  %208 = vmatpush1.bf16.msra.mxu0 %v192
  %209 = vmatprep.subr.bf16.mxu0 0
  %210 = vmatpush1.bf16.msra.mxu0 %v191
  %211 = vmatprep.subr.bf16.mxu0 0
  %212 = vmatpush1.bf16.msra.mxu0 %v190
  %213 = vmatprep.subr.bf16.mxu0 0
  %214 = vmatpush1.bf16.msra.mxu0 %v189
  %215 = vmatprep.subr.bf16.mxu0 0
  %216 = vmatpush1.bf16.msra.mxu0 %v188
  %217 = vmatprep.subr.bf16.mxu0 0
  %218 = vmatpush1.bf16.msra.mxu0 %v187
  %219 = vmatprep.subr.bf16.mxu0 0
  %220 = vmatpush2.bf16.msra.mxu0 0
  %221 = vmatprep.subr.bf16.mxu0 0
  %222 = vmatpush2.bf16.msra.mxu0 0
  %223 = vmatprep.subr.bf16.mxu0 0
  %224 = vmatpush2.bf16.msra.mxu0 0
  %225 = vmatprep.subr.bf16.mxu0 0
  %226 = vmatpush2.bf16.msra.mxu0 0
  %227 = vmatprep.subr.bf16.mxu0 0
  %228 = vmatpush2.bf16.msra.mxu0 0
  %229 = vmatprep.subr.bf16.mxu0 0
  %230 = vmatpush2.bf16.msra.mxu0 0
  %231 = vmatprep.subr.bf16.mxu0 0
  %232 = vmatpush2.bf16.msra.mxu0 0
  %233 = vmatprep.subr.bf16.mxu0 0
  %234 = vmatpush2.bf16.msra.mxu0 0
  %235 = vmatprep.mubr.bf16.mxu0 0
  %236 = vmatmul.mubr.bf16.gmra.mxu0 %v138
  %v237 = vpop.f32.mrf.mxu0
  %v238 = vadd.f32 0.0, %v237
  %v239 = vpop.f32.mrf.mxu0
  %v240 = vpop.f32.mrf.mxu0
  %v241 = vpop.f32.mrf.mxu0
  %242 = vdwg.mxu0
  %vm243 = vcmask 257024
  %244 = vst.msk [vmem:[#allocation2] sm:$0xf] %vm243, %v238
  %s245 = scalar_lea.vmem %s4, 64
  %v246 = vld [vmem:[%s245] sm:$0xf]
  %v247 = vld [vmem:[%s245 + $0x4] sm:$0xf]
  %v248 = vld [vmem:[%s245 + $0x8] sm:$0xf]
  %v249 = vld [vmem:[%s245 + $0xc] sm:$0xf]
  %v250 = vld [vmem:[%s245 + $0x10] sm:$0xf]
  %v251 = vld [vmem:[%s245 + $0x14] sm:$0xf]
  %v252 = vld [vmem:[%s245 + $0x18] sm:$0xf]
  %v253 = vld [vmem:[%s245 + $0x1c] sm:$0xf]
  %v254 = vld [vmem:[%s245 + $0x20] sm:$0xf]
  %v255 = vld [vmem:[%s245 + $0x24] sm:$0xf]
  %v256 = vld [vmem:[%s245 + $0x28] sm:$0xf]
  %v257 = vld [vmem:[%s245 + $0x2c] sm:$0xf]
  %v258 = vld [vmem:[%s245 + $0x30] sm:$0xf]
  %v259 = vld [vmem:[%s245 + $0x34] sm:$0xf]
  %v260 = vld [vmem:[%s245 + $0x38] sm:$0xf]
  %v261 = vld [vmem:[%s245 + $0x3c] sm:$0xf]
  %v278 = vunpack.c.l.b16 %v246
  %v279 = vunpack.c.l.b16 %v247
  %v280 = vunpack.c.l.b16 %v248
  %v281 = vunpack.c.l.b16 %v249
  %v282 = vunpack.c.l.b16 %v250
  %v283 = vunpack.c.l.b16 %v251
  %v284 = vunpack.c.l.b16 %v252
  %v285 = vunpack.c.l.b16 %v253
  %v286 = vunpack.c.l.b16 %v254
  %v287 = vunpack.c.l.b16 %v255
  %v288 = vunpack.c.l.b16 %v256
  %v289 = vunpack.c.l.b16 %v257
  %v290 = vunpack.c.l.b16 %v258
  %v291 = vunpack.c.l.b16 %v259
  %v292 = vunpack.c.l.b16 %v260
  %v293 = vunpack.c.l.b16 %v261
  %v294 = vpack.c.b16 %v279, %v278
  %v295 = vpack.c.b16 %v281, %v280
  %v296 = vpack.c.b16 %v283, %v282
  %v297 = vpack.c.b16 %v285, %v284
  %v298 = vpack.c.b16 %v287, %v286
  %v299 = vpack.c.b16 %v289, %v288
  %v300 = vpack.c.b16 %v291, %v290
  %v301 = vpack.c.b16 %v293, %v292
  %310 = vmatprep.subr.bf16.mxu0 0
  %311 = vmatpush1.bf16.msra.mxu0 %v301
  %312 = vmatprep.subr.bf16.mxu0 0
  %313 = vmatpush1.bf16.msra.mxu0 %v300
  %314 = vmatprep.subr.bf16.mxu0 0
  %315 = vmatpush1.bf16.msra.mxu0 %v299
  %316 = vmatprep.subr.bf16.mxu0 0
  %317 = vmatpush1.bf16.msra.mxu0 %v298
  %318 = vmatprep.subr.bf16.mxu0 0
  %319 = vmatpush1.bf16.msra.mxu0 %v297
  %320 = vmatprep.subr.bf16.mxu0 0
  %321 = vmatpush1.bf16.msra.mxu0 %v296
  %322 = vmatprep.subr.bf16.mxu0 0
  %323 = vmatpush1.bf16.msra.mxu0 %v295
  %324 = vmatprep.subr.bf16.mxu0 0
  %325 = vmatpush1.bf16.msra.mxu0 %v294
  %326 = vmatprep.subr.bf16.mxu0 0
  %327 = vmatpush2.bf16.msra.mxu0 0
  %328 = vmatprep.subr.bf16.mxu0 0
  %329 = vmatpush2.bf16.msra.mxu0 0
  %330 = vmatprep.subr.bf16.mxu0 0
  %331 = vmatpush2.bf16.msra.mxu0 0
  %332 = vmatprep.subr.bf16.mxu0 0
  %333 = vmatpush2.bf16.msra.mxu0 0
  %334 = vmatprep.subr.bf16.mxu0 0
  %335 = vmatpush2.bf16.msra.mxu0 0
  %336 = vmatprep.subr.bf16.mxu0 0
  %337 = vmatpush2.bf16.msra.mxu0 0
  %338 = vmatprep.subr.bf16.mxu0 0
  %339 = vmatpush2.bf16.msra.mxu0 0
  %340 = vmatprep.subr.bf16.mxu0 0
  %341 = vmatpush2.bf16.msra.mxu0 0
  %342 = vmatprep.mubr.bf16.mxu0 0
  %343 = vmatmul.mubr.bf16.gmra.mxu0 %v138
  %v344 = vpop.f32.mrf.mxu0
  %v345 = vadd.f32 0.0, %v344
  %v346 = vpop.f32.mrf.mxu0
  %v347 = vpop.f32.mrf.mxu0
  %v348 = vpop.f32.mrf.mxu0
  %349 = vdwg.mxu0
  %350 = vst.msk [vmem:[#allocation2 + $0x4] sm:$0xf] %vm243, %v345
  %s351 = scalar_lea.vmem %s4, 128
  %v352 = vld [vmem:[%s351] sm:$0xf]
  %v353 = vld [vmem:[%s351 + $0x4] sm:$0xf]
  %v354 = vld [vmem:[%s351 + $0x8] sm:$0xf]
  %v355 = vld [vmem:[%s351 + $0xc] sm:$0xf]
  %v356 = vld [vmem:[%s351 + $0x10] sm:$0xf]
  %v357 = vld [vmem:[%s351 + $0x14] sm:$0xf]
  %v358 = vld [vmem:[%s351 + $0x18] sm:$0xf]
  %v359 = vld [vmem:[%s351 + $0x1c] sm:$0xf]
  %v360 = vld [vmem:[%s351 + $0x20] sm:$0xf]
  %v361 = vld [vmem:[%s351 + $0x24] sm:$0xf]
  %v362 = vld [vmem:[%s351 + $0x28] sm:$0xf]
  %v363 = vld [vmem:[%s351 + $0x2c] sm:$0xf]
  %v364 = vld [vmem:[%s351 + $0x30] sm:$0xf]
  %v365 = vld [vmem:[%s351 + $0x34] sm:$0xf]
  %v366 = vld [vmem:[%s351 + $0x38] sm:$0xf]
  %v367 = vld [vmem:[%s351 + $0x3c] sm:$0xf]
  %v384 = vunpack.c.l.b16 %v352
  %v385 = vunpack.c.l.b16 %v353
  %v386 = vunpack.c.l.b16 %v354
  %v387 = vunpack.c.l.b16 %v355
  %v388 = vunpack.c.l.b16 %v356
  %v389 = vunpack.c.l.b16 %v357
  %v390 = vunpack.c.l.b16 %v358
  %v391 = vunpack.c.l.b16 %v359
  %v392 = vunpack.c.l.b16 %v360
  %v393 = vunpack.c.l.b16 %v361
  %v394 = vunpack.c.l.b16 %v362
  %v395 = vunpack.c.l.b16 %v363
  %v396 = vunpack.c.l.b16 %v364
  %v397 = vunpack.c.l.b16 %v365
  %v398 = vunpack.c.l.b16 %v366
  %v399 = vunpack.c.l.b16 %v367
  %v400 = vpack.c.b16 %v385, %v384
  %v401 = vpack.c.b16 %v387, %v386
  %v402 = vpack.c.b16 %v389, %v388
  %v403 = vpack.c.b16 %v391, %v390
  %v404 = vpack.c.b16 %v393, %v392
  %v405 = vpack.c.b16 %v395, %v394
  %v406 = vpack.c.b16 %v397, %v396
  %v407 = vpack.c.b16 %v399, %v398
  %416 = vmatprep.subr.bf16.mxu0 0
  %417 = vmatpush1.bf16.msra.mxu0 %v407
  %418 = vmatprep.subr.bf16.mxu0 0
  %419 = vmatpush1.bf16.msra.mxu0 %v406
  %420 = vmatprep.subr.bf16.mxu0 0
  %421 = vmatpush1.bf16.msra.mxu0 %v405
  %422 = vmatprep.subr.bf16.mxu0 0
  %423 = vmatpush1.bf16.msra.mxu0 %v404
  %424 = vmatprep.subr.bf16.mxu0 0
  %425 = vmatpush1.bf16.msra.mxu0 %v403
  %426 = vmatprep.subr.bf16.mxu0 0
  %427 = vmatpush1.bf16.msra.mxu0 %v402
  %428 = vmatprep.subr.bf16.mxu0 0
  %429 = vmatpush1.bf16.msra.mxu0 %v401
  %430 = vmatprep.subr.bf16.mxu0 0
  %431 = vmatpush1.bf16.msra.mxu0 %v400
  %432 = vmatprep.subr.bf16.mxu0 0
  %433 = vmatpush2.bf16.msra.mxu0 0
  %434 = vmatprep.subr.bf16.mxu0 0
  %435 = vmatpush2.bf16.msra.mxu0 0
  %436 = vmatprep.subr.bf16.mxu0 0
  %437 = vmatpush2.bf16.msra.mxu0 0
  %438 = vmatprep.subr.bf16.mxu0 0
  %439 = vmatpush2.bf16.msra.mxu0 0
  %440 = vmatprep.subr.bf16.mxu0 0
  %441 = vmatpush2.bf16.msra.mxu0 0
  %442 = vmatprep.subr.bf16.mxu0 0
  %443 = vmatpush2.bf16.msra.mxu0 0
  %444 = vmatprep.subr.bf16.mxu0 0
  %445 = vmatpush2.bf16.msra.mxu0 0
  %446 = vmatprep.subr.bf16.mxu0 0
  %447 = vmatpush2.bf16.msra.mxu0 0
  %448 = vmatprep.mubr.bf16.mxu0 0
  %449 = vmatmul.mubr.bf16.gmra.mxu0 %v138
  %v450 = vpop.f32.mrf.mxu0
  %v451 = vadd.f32 0.0, %v450
  %v452 = vpop.f32.mrf.mxu0
  %v453 = vpop.f32.mrf.mxu0
  %v454 = vpop.f32.mrf.mxu0
  %455 = vdwg.mxu0
  %456 = vst.msk [vmem:[#allocation2 + $0x8] sm:$0xf] %vm243, %v451
  %s457 = scalar_lea.vmem %s4, 192
  %v458 = vld [vmem:[%s457] sm:$0xf]
  %v459 = vld [vmem:[%s457 + $0x4] sm:$0xf]
  %v460 = vld [vmem:[%s457 + $0x8] sm:$0xf]
  %v461 = vld [vmem:[%s457 + $0xc] sm:$0xf]
  %v462 = vld [vmem:[%s457 + $0x10] sm:$0xf]
  %v463 = vld [vmem:[%s457 + $0x14] sm:$0xf]
  %v464 = vld [vmem:[%s457 + $0x18] sm:$0xf]
  %v465 = vld [vmem:[%s457 + $0x1c] sm:$0xf]
  %v466 = vld [vmem:[%s457 + $0x20] sm:$0xf]
  %v467 = vld [vmem:[%s457 + $0x24] sm:$0xf]
  %v468 = vld [vmem:[%s457 + $0x28] sm:$0xf]
  %v469 = vld [vmem:[%s457 + $0x2c] sm:$0xf]
  %v470 = vld [vmem:[%s457 + $0x30] sm:$0xf]
  %v471 = vld [vmem:[%s457 + $0x34] sm:$0xf]
  %v472 = vld [vmem:[%s457 + $0x38] sm:$0xf]
  %v473 = vld [vmem:[%s457 + $0x3c] sm:$0xf]
  %v490 = vunpack.c.l.b16 %v458
  %v491 = vunpack.c.l.b16 %v459
  %v492 = vunpack.c.l.b16 %v460
  %v493 = vunpack.c.l.b16 %v461
  %v494 = vunpack.c.l.b16 %v462
  %v495 = vunpack.c.l.b16 %v463
  %v496 = vunpack.c.l.b16 %v464
  %v497 = vunpack.c.l.b16 %v465
  %v498 = vunpack.c.l.b16 %v466
  %v499 = vunpack.c.l.b16 %v467
  %v500 = vunpack.c.l.b16 %v468
  %v501 = vunpack.c.l.b16 %v469
  %v502 = vunpack.c.l.b16 %v470
  %v503 = vunpack.c.l.b16 %v471
  %v504 = vunpack.c.l.b16 %v472
  %v505 = vunpack.c.l.b16 %v473
  %v506 = vpack.c.b16 %v491, %v490
  %v507 = vpack.c.b16 %v493, %v492
  %v508 = vpack.c.b16 %v495, %v494
  %v509 = vpack.c.b16 %v497, %v496
  %v510 = vpack.c.b16 %v499, %v498
  %v511 = vpack.c.b16 %v501, %v500
  %v512 = vpack.c.b16 %v503, %v502
  %v513 = vpack.c.b16 %v505, %v504
  %522 = vmatprep.subr.bf16.mxu0 0
  %523 = vmatpush1.bf16.msra.mxu0 %v513
  %524 = vmatprep.subr.bf16.mxu0 0
  %525 = vmatpush1.bf16.msra.mxu0 %v512
  %526 = vmatprep.subr.bf16.mxu0 0
  %527 = vmatpush1.bf16.msra.mxu0 %v511
  %528 = vmatprep.subr.bf16.mxu0 0
  %529 = vmatpush1.bf16.msra.mxu0 %v510
  %530 = vmatprep.subr.bf16.mxu0 0
  %531 = vmatpush1.bf16.msra.mxu0 %v509
  %532 = vmatprep.subr.bf16.mxu0 0
  %533 = vmatpush1.bf16.msra.mxu0 %v508
  %534 = vmatprep.subr.bf16.mxu0 0
  %535 = vmatpush1.bf16.msra.mxu0 %v507
  %536 = vmatprep.subr.bf16.mxu0 0
  %537 = vmatpush1.bf16.msra.mxu0 %v506
  %538 = vmatprep.subr.bf16.mxu0 0
  %539 = vmatpush2.bf16.msra.mxu0 0
  %540 = vmatprep.subr.bf16.mxu0 0
  %541 = vmatpush2.bf16.msra.mxu0 0
  %542 = vmatprep.subr.bf16.mxu0 0
  %543 = vmatpush2.bf16.msra.mxu0 0
  %544 = vmatprep.subr.bf16.mxu0 0
  %545 = vmatpush2.bf16.msra.mxu0 0
  %546 = vmatprep.subr.bf16.mxu0 0
  %547 = vmatpush2.bf16.msra.mxu0 0
  %548 = vmatprep.subr.bf16.mxu0 0
  %549 = vmatpush2.bf16.msra.mxu0 0
  %550 = vmatprep.subr.bf16.mxu0 0
  %551 = vmatpush2.bf16.msra.mxu0 0
  %552 = vmatprep.subr.bf16.mxu0 0
  %553 = vmatpush2.bf16.msra.mxu0 0
  %554 = vmatprep.mubr.bf16.mxu0 0
  %555 = vmatmul.mubr.bf16.gmra.mxu0 %v138
  %v556 = vpop.f32.mrf.mxu0
  %v557 = vadd.f32 0.0, %v556
  %v558 = vpop.f32.mrf.mxu0
  %v559 = vpop.f32.mrf.mxu0
  %v560 = vpop.f32.mrf.mxu0
  %561 = vdwg.mxu0
  %562 = vst.msk [vmem:[#allocation2 + $0xc] sm:$0xf] %vm243, %v557
  %s563 = scalar_lea.vmem %s4, 256
  %v564 = vld [vmem:[%s563] sm:$0xf]
  %v565 = vld [vmem:[%s563 + $0x4] sm:$0xf]
  %v566 = vld [vmem:[%s563 + $0x8] sm:$0xf]
  %v567 = vld [vmem:[%s563 + $0xc] sm:$0xf]
  %v568 = vld [vmem:[%s563 + $0x10] sm:$0xf]
  %v569 = vld [vmem:[%s563 + $0x14] sm:$0xf]
  %v570 = vld [vmem:[%s563 + $0x18] sm:$0xf]
  %v571 = vld [vmem:[%s563 + $0x1c] sm:$0xf]
  %v572 = vld [vmem:[%s563 + $0x20] sm:$0xf]
  %v573 = vld [vmem:[%s563 + $0x24] sm:$0xf]
  %v574 = vld [vmem:[%s563 + $0x28] sm:$0xf]
  %v575 = vld [vmem:[%s563 + $0x2c] sm:$0xf]
  %v576 = vld [vmem:[%s563 + $0x30] sm:$0xf]
  %v577 = vld [vmem:[%s563 + $0x34] sm:$0xf]
  %v578 = vld [vmem:[%s563 + $0x38] sm:$0xf]
  %v579 = vld [vmem:[%s563 + $0x3c] sm:$0xf]
  %v596 = vunpack.c.l.b16 %v564
  %v597 = vunpack.c.l.b16 %v565
  %v598 = vunpack.c.l.b16 %v566
  %v599 = vunpack.c.l.b16 %v567
  %v600 = vunpack.c.l.b16 %v568
  %v601 = vunpack.c.l.b16 %v569
  %v602 = vunpack.c.l.b16 %v570
  %v603 = vunpack.c.l.b16 %v571
  %v604 = vunpack.c.l.b16 %v572
  %v605 = vunpack.c.l.b16 %v573
  %v606 = vunpack.c.l.b16 %v574
  %v607 = vunpack.c.l.b16 %v575
  %v608 = vunpack.c.l.b16 %v576
  %v609 = vunpack.c.l.b16 %v577
  %v610 = vunpack.c.l.b16 %v578
  %v611 = vunpack.c.l.b16 %v579
  %v612 = vpack.c.b16 %v597, %v596
  %v613 = vpack.c.b16 %v599, %v598
  %v614 = vpack.c.b16 %v601, %v600
  %v615 = vpack.c.b16 %v603, %v602
  %v616 = vpack.c.b16 %v605, %v604
  %v617 = vpack.c.b16 %v607, %v606
  %v618 = vpack.c.b16 %v609, %v608
  %v619 = vpack.c.b16 %v611, %v610
  %628 = vmatprep.subr.bf16.mxu0 0
  %629 = vmatpush1.bf16.msra.mxu0 %v619
  %630 = vmatprep.subr.bf16.mxu0 0
  %631 = vmatpush1.bf16.msra.mxu0 %v618
  %632 = vmatprep.subr.bf16.mxu0 0
  %633 = vmatpush1.bf16.msra.mxu0 %v617
  %634 = vmatprep.subr.bf16.mxu0 0
  %635 = vmatpush1.bf16.msra.mxu0 %v616
  %636 = vmatprep.subr.bf16.mxu0 0
  %637 = vmatpush1.bf16.msra.mxu0 %v615
  %638 = vmatprep.subr.bf16.mxu0 0
  %639 = vmatpush1.bf16.msra.mxu0 %v614
  %640 = vmatprep.subr.bf16.mxu0 0
  %641 = vmatpush1.bf16.msra.mxu0 %v613
  %642 = vmatprep.subr.bf16.mxu0 0
  %643 = vmatpush1.bf16.msra.mxu0 %v612
  %644 = vmatprep.subr.bf16.mxu0 0
  %645 = vmatpush2.bf16.msra.mxu0 0
  %646 = vmatprep.subr.bf16.mxu0 0
  %647 = vmatpush2.bf16.msra.mxu0 0
  %648 = vmatprep.subr.bf16.mxu0 0
  %649 = vmatpush2.bf16.msra.mxu0 0
  %650 = vmatprep.subr.bf16.mxu0 0
  %651 = vmatpush2.bf16.msra.mxu0 0
  %652 = vmatprep.subr.bf16.mxu0 0
  %653 = vmatpush2.bf16.msra.mxu0 0
  %654 = vmatprep.subr.bf16.mxu0 0
  %655 = vmatpush2.bf16.msra.mxu0 0
  %656 = vmatprep.subr.bf16.mxu0 0
  %657 = vmatpush2.bf16.msra.mxu0 0
  %658 = vmatprep.subr.bf16.mxu0 0
  %659 = vmatpush2.bf16.msra.mxu0 0
  %660 = vmatprep.mubr.bf16.mxu0 0
  %661 = vmatmul.mubr.bf16.gmra.mxu0 %v138
  %v662 = vpop.f32.mrf.mxu0
  %v663 = vadd.f32 0.0, %v662
  %v664 = vpop.f32.mrf.mxu0
  %v665 = vpop.f32.mrf.mxu0
  %v666 = vpop.f32.mrf.mxu0
  %667 = vdwg.mxu0
  %668 = vst.msk [vmem:[#allocation2 + $0x10] sm:$0xf] %vm243, %v663
  %s669 = scalar_lea.vmem %s4, 320
  %v670 = vld [vmem:[%s669] sm:$0xf]
  %v671 = vld [vmem:[%s669 + $0x4] sm:$0xf]
  %v672 = vld [vmem:[%s669 + $0x8] sm:$0xf]
  %v673 = vld [vmem:[%s669 + $0xc] sm:$0xf]
  %v674 = vld [vmem:[%s669 + $0x10] sm:$0xf]
  %v675 = vld [vmem:[%s669 + $0x14] sm:$0xf]
  %v676 = vld [vmem:[%s669 + $0x18] sm:$0xf]
  %v677 = vld [vmem:[%s669 + $0x1c] sm:$0xf]
  %v678 = vld [vmem:[%s669 + $0x20] sm:$0xf]
  %v679 = vld [vmem:[%s669 + $0x24] sm:$0xf]
  %v680 = vld [vmem:[%s669 + $0x28] sm:$0xf]
  %v681 = vld [vmem:[%s669 + $0x2c] sm:$0xf]
  %v682 = vld [vmem:[%s669 + $0x30] sm:$0xf]
  %v683 = vld [vmem:[%s669 + $0x34] sm:$0xf]
  %v684 = vld [vmem:[%s669 + $0x38] sm:$0xf]
  %v685 = vld [vmem:[%s669 + $0x3c] sm:$0xf]
  %v702 = vunpack.c.l.b16 %v670
  %v703 = vunpack.c.l.b16 %v671
  %v704 = vunpack.c.l.b16 %v672
  %v705 = vunpack.c.l.b16 %v673
  %v706 = vunpack.c.l.b16 %v674
  %v707 = vunpack.c.l.b16 %v675
  %v708 = vunpack.c.l.b16 %v676
  %v709 = vunpack.c.l.b16 %v677
  %v710 = vunpack.c.l.b16 %v678
  %v711 = vunpack.c.l.b16 %v679
  %v712 = vunpack.c.l.b16 %v680
  %v713 = vunpack.c.l.b16 %v681
  %v714 = vunpack.c.l.b16 %v682
  %v715 = vunpack.c.l.b16 %v683
  %v716 = vunpack.c.l.b16 %v684
  %v717 = vunpack.c.l.b16 %v685
  %v718 = vpack.c.b16 %v703, %v702
  %v719 = vpack.c.b16 %v705, %v704
  %v720 = vpack.c.b16 %v707, %v706
  %v721 = vpack.c.b16 %v709, %v708
  %v722 = vpack.c.b16 %v711, %v710
  %v723 = vpack.c.b16 %v713, %v712
  %v724 = vpack.c.b16 %v715, %v714
  %v725 = vpack.c.b16 %v717, %v716
  %734 = vmatprep.subr.bf16.mxu0 0
  %735 = vmatpush1.bf16.msra.mxu0 %v725
  %736 = vmatprep.subr.bf16.mxu0 0
  %737 = vmatpush1.bf16.msra.mxu0 %v724
  %738 = vmatprep.subr.bf16.mxu0 0
  %739 = vmatpush1.bf16.msra.mxu0 %v723
  %740 = vmatprep.subr.bf16.mxu0 0
  %741 = vmatpush1.bf16.msra.mxu0 %v722
  %742 = vmatprep.subr.bf16.mxu0 0
  %743 = vmatpush1.bf16.msra.mxu0 %v721
  %744 = vmatprep.subr.bf16.mxu0 0
  %745 = vmatpush1.bf16.msra.mxu0 %v720
  %746 = vmatprep.subr.bf16.mxu0 0
  %747 = vmatpush1.bf16.msra.mxu0 %v719
  %748 = vmatprep.subr.bf16.mxu0 0
  %749 = vmatpush1.bf16.msra.mxu0 %v718
  %750 = vmatprep.subr.bf16.mxu0 0
  %751 = vmatpush2.bf16.msra.mxu0 0
  %752 = vmatprep.subr.bf16.mxu0 0
  %753 = vmatpush2.bf16.msra.mxu0 0
  %754 = vmatprep.subr.bf16.mxu0 0
  %755 = vmatpush2.bf16.msra.mxu0 0
  %756 = vmatprep.subr.bf16.mxu0 0
  %757 = vmatpush2.bf16.msra.mxu0 0
  %758 = vmatprep.subr.bf16.mxu0 0
  %759 = vmatpush2.bf16.msra.mxu0 0
  %760 = vmatprep.subr.bf16.mxu0 0
  %761 = vmatpush2.bf16.msra.mxu0 0
  %762 = vmatprep.subr.bf16.mxu0 0
  %763 = vmatpush2.bf16.msra.mxu0 0
  %764 = vmatprep.subr.bf16.mxu0 0
  %765 = vmatpush2.bf16.msra.mxu0 0
  %766 = vmatprep.mubr.bf16.mxu0 0
  %767 = vmatmul.mubr.bf16.gmra.mxu0 %v138
  %v768 = vpop.f32.mrf.mxu0
  %v769 = vadd.f32 0.0, %v768
  %v770 = vpop.f32.mrf.mxu0
  %v771 = vpop.f32.mrf.mxu0
  %v772 = vpop.f32.mrf.mxu0
  %773 = vdwg.mxu0
  %774 = vst.msk [vmem:[#allocation2 + $0x14] sm:$0xf] %vm243, %v769
  %s775 = scalar_lea.vmem %s4, 384
  %v776 = vld [vmem:[%s775] sm:$0xf]
  %v777 = vld [vmem:[%s775 + $0x4] sm:$0xf]
  %v778 = vld [vmem:[%s775 + $0x8] sm:$0xf]
  %v779 = vld [vmem:[%s775 + $0xc] sm:$0xf]
  %v780 = vld [vmem:[%s775 + $0x10] sm:$0xf]
  %v781 = vld [vmem:[%s775 + $0x14] sm:$0xf]
  %v782 = vld [vmem:[%s775 + $0x18] sm:$0xf]
  %v783 = vld [vmem:[%s775 + $0x1c] sm:$0xf]
  %v784 = vld [vmem:[%s775 + $0x20] sm:$0xf]
  %v785 = vld [vmem:[%s775 + $0x24] sm:$0xf]
  %v786 = vld [vmem:[%s775 + $0x28] sm:$0xf]
  %v787 = vld [vmem:[%s775 + $0x2c] sm:$0xf]
  %v788 = vld [vmem:[%s775 + $0x30] sm:$0xf]
  %v789 = vld [vmem:[%s775 + $0x34] sm:$0xf]
  %v790 = vld [vmem:[%s775 + $0x38] sm:$0xf]
  %v791 = vld [vmem:[%s775 + $0x3c] sm:$0xf]
  %v808 = vunpack.c.l.b16 %v776
  %v809 = vunpack.c.l.b16 %v777
  %v810 = vunpack.c.l.b16 %v778
  %v811 = vunpack.c.l.b16 %v779
  %v812 = vunpack.c.l.b16 %v780
  %v813 = vunpack.c.l.b16 %v781
  %v814 = vunpack.c.l.b16 %v782
  %v815 = vunpack.c.l.b16 %v783
  %v816 = vunpack.c.l.b16 %v784
  %v817 = vunpack.c.l.b16 %v785
  %v818 = vunpack.c.l.b16 %v786
  %v819 = vunpack.c.l.b16 %v787
  %v820 = vunpack.c.l.b16 %v788
  %v821 = vunpack.c.l.b16 %v789
  %v822 = vunpack.c.l.b16 %v790
  %v823 = vunpack.c.l.b16 %v791
  %v824 = vpack.c.b16 %v809, %v808
  %v825 = vpack.c.b16 %v811, %v810
  %v826 = vpack.c.b16 %v813, %v812
  %v827 = vpack.c.b16 %v815, %v814
  %v828 = vpack.c.b16 %v817, %v816
  %v829 = vpack.c.b16 %v819, %v818
  %v830 = vpack.c.b16 %v821, %v820
  %v831 = vpack.c.b16 %v823, %v822
  %840 = vmatprep.subr.bf16.mxu0 0
  %841 = vmatpush1.bf16.msra.mxu0 %v831
  %842 = vmatprep.subr.bf16.mxu0 0
  %843 = vmatpush1.bf16.msra.mxu0 %v830
  %844 = vmatprep.subr.bf16.mxu0 0
  %845 = vmatpush1.bf16.msra.mxu0 %v829
  %846 = vmatprep.subr.bf16.mxu0 0
  %847 = vmatpush1.bf16.msra.mxu0 %v828
  %848 = vmatprep.subr.bf16.mxu0 0
  %849 = vmatpush1.bf16.msra.mxu0 %v827
  %850 = vmatprep.subr.bf16.mxu0 0
  %851 = vmatpush1.bf16.msra.mxu0 %v826
  %852 = vmatprep.subr.bf16.mxu0 0
  %853 = vmatpush1.bf16.msra.mxu0 %v825
  %854 = vmatprep.subr.bf16.mxu0 0
  %855 = vmatpush1.bf16.msra.mxu0 %v824
  %856 = vmatprep.subr.bf16.mxu0 0
  %857 = vmatpush2.bf16.msra.mxu0 0
  %858 = vmatprep.subr.bf16.mxu0 0
  %859 = vmatpush2.bf16.msra.mxu0 0
  %860 = vmatprep.subr.bf16.mxu0 0
  %861 = vmatpush2.bf16.msra.mxu0 0
  %862 = vmatprep.subr.bf16.mxu0 0
  %863 = vmatpush2.bf16.msra.mxu0 0
  %864 = vmatprep.subr.bf16.mxu0 0
  %865 = vmatpush2.bf16.msra.mxu0 0
  %866 = vmatprep.subr.bf16.mxu0 0
  %867 = vmatpush2.bf16.msra.mxu0 0
  %868 = vmatprep.subr.bf16.mxu0 0
  %869 = vmatpush2.bf16.msra.mxu0 0
  %870 = vmatprep.subr.bf16.mxu0 0
  %871 = vmatpush2.bf16.msra.mxu0 0
  %872 = vmatprep.mubr.bf16.mxu0 0
  %873 = vmatmul.mubr.bf16.gmra.mxu0 %v138
  %v874 = vpop.f32.mrf.mxu0
  %v875 = vadd.f32 0.0, %v874
  %v876 = vpop.f32.mrf.mxu0
  %v877 = vpop.f32.mrf.mxu0
  %v878 = vpop.f32.mrf.mxu0
  %879 = vdwg.mxu0
  %880 = vst.msk [vmem:[#allocation2 + $0x18] sm:$0xf] %vm243, %v875
  %s881 = scalar_lea.vmem %s4, 448
  %v882 = vld [vmem:[%s881] sm:$0xf]
  %v883 = vld [vmem:[%s881 + $0x4] sm:$0xf]
  %v884 = vld [vmem:[%s881 + $0x8] sm:$0xf]
  %v885 = vld [vmem:[%s881 + $0xc] sm:$0xf]
  %v886 = vld [vmem:[%s881 + $0x10] sm:$0xf]
  %v887 = vld [vmem:[%s881 + $0x14] sm:$0xf]
  %v888 = vld [vmem:[%s881 + $0x18] sm:$0xf]
  %v889 = vld [vmem:[%s881 + $0x1c] sm:$0xf]
  %v890 = vld [vmem:[%s881 + $0x20] sm:$0xf]
  %v891 = vld [vmem:[%s881 + $0x24] sm:$0xf]
  %v892 = vld [vmem:[%s881 + $0x28] sm:$0xf]
  %v893 = vld [vmem:[%s881 + $0x2c] sm:$0xf]
  %v894 = vld [vmem:[%s881 + $0x30] sm:$0xf]
  %v895 = vld [vmem:[%s881 + $0x34] sm:$0xf]
  %v896 = vld [vmem:[%s881 + $0x38] sm:$0xf]
  %v897 = vld [vmem:[%s881 + $0x3c] sm:$0xf]
  %v914 = vunpack.c.l.b16 %v882
  %v915 = vunpack.c.l.b16 %v883
  %v916 = vunpack.c.l.b16 %v884
  %v917 = vunpack.c.l.b16 %v885
  %v918 = vunpack.c.l.b16 %v886
  %v919 = vunpack.c.l.b16 %v887
  %v920 = vunpack.c.l.b16 %v888
  %v921 = vunpack.c.l.b16 %v889
  %v922 = vunpack.c.l.b16 %v890
  %v923 = vunpack.c.l.b16 %v891
  %v924 = vunpack.c.l.b16 %v892
  %v925 = vunpack.c.l.b16 %v893
  %v926 = vunpack.c.l.b16 %v894
  %v927 = vunpack.c.l.b16 %v895
  %v928 = vunpack.c.l.b16 %v896
  %v929 = vunpack.c.l.b16 %v897
  %v930 = vpack.c.b16 %v915, %v914
  %v931 = vpack.c.b16 %v917, %v916
  %v932 = vpack.c.b16 %v919, %v918
  %v933 = vpack.c.b16 %v921, %v920
  %v934 = vpack.c.b16 %v923, %v922
  %v935 = vpack.c.b16 %v925, %v924
  %v936 = vpack.c.b16 %v927, %v926
  %v937 = vpack.c.b16 %v929, %v928
  %946 = vmatprep.subr.bf16.mxu0 0
  %947 = vmatpush1.bf16.msra.mxu0 %v937
  %948 = vmatprep.subr.bf16.mxu0 0
  %949 = vmatpush1.bf16.msra.mxu0 %v936
  %950 = vmatprep.subr.bf16.mxu0 0
  %951 = vmatpush1.bf16.msra.mxu0 %v935
  %952 = vmatprep.subr.bf16.mxu0 0
  %953 = vmatpush1.bf16.msra.mxu0 %v934
  %954 = vmatprep.subr.bf16.mxu0 0
  %955 = vmatpush1.bf16.msra.mxu0 %v933
  %956 = vmatprep.subr.bf16.mxu0 0
  %957 = vmatpush1.bf16.msra.mxu0 %v932
  %958 = vmatprep.subr.bf16.mxu0 0
  %959 = vmatpush1.bf16.msra.mxu0 %v931
  %960 = vmatprep.subr.bf16.mxu0 0
  %961 = vmatpush1.bf16.msra.mxu0 %v930
  %962 = vmatprep.subr.bf16.mxu0 0
  %963 = vmatpush2.bf16.msra.mxu0 0
  %964 = vmatprep.subr.bf16.mxu0 0
  %965 = vmatpush2.bf16.msra.mxu0 0
  %966 = vmatprep.subr.bf16.mxu0 0
  %967 = vmatpush2.bf16.msra.mxu0 0
  %968 = vmatprep.subr.bf16.mxu0 0
  %969 = vmatpush2.bf16.msra.mxu0 0
  %970 = vmatprep.subr.bf16.mxu0 0
  %971 = vmatpush2.bf16.msra.mxu0 0
  %972 = vmatprep.subr.bf16.mxu0 0
  %973 = vmatpush2.bf16.msra.mxu0 0
  %974 = vmatprep.subr.bf16.mxu0 0
  %975 = vmatpush2.bf16.msra.mxu0 0
  %976 = vmatprep.subr.bf16.mxu0 0
  %977 = vmatpush2.bf16.msra.mxu0 0
  %978 = vmatprep.mubr.bf16.mxu0 0
  %979 = vmatmul.mubr.bf16.gmra.mxu0 %v138
  %v980 = vpop.f32.mrf.mxu0
  %v981 = vadd.f32 0.0, %v980
  %v982 = vpop.f32.mrf.mxu0
  %v983 = vpop.f32.mrf.mxu0
  %v984 = vpop.f32.mrf.mxu0
  %985 = vdwg.mxu0
  %986 = vst.msk [vmem:[#allocation2 + $0x1c] sm:$0xf] %vm243, %v981
  %s987 = scalar_lea.vmem %s4, 512
  %v988 = vld [vmem:[%s987] sm:$0xf]
  %v989 = vld [vmem:[%s987 + $0x4] sm:$0xf]
  %v990 = vld [vmem:[%s987 + $0x8] sm:$0xf]
  %v991 = vld [vmem:[%s987 + $0xc] sm:$0xf]
  %v992 = vld [vmem:[%s987 + $0x10] sm:$0xf]
  %v993 = vld [vmem:[%s987 + $0x14] sm:$0xf]
  %v994 = vld [vmem:[%s987 + $0x18] sm:$0xf]
  %v995 = vld [vmem:[%s987 + $0x1c] sm:$0xf]
  %v996 = vld [vmem:[%s987 + $0x20] sm:$0xf]
  %v997 = vld [vmem:[%s987 + $0x24] sm:$0xf]
  %v998 = vld [vmem:[%s987 + $0x28] sm:$0xf]
  %v999 = vld [vmem:[%s987 + $0x2c] sm:$0xf]
  %v1000 = vld [vmem:[%s987 + $0x30] sm:$0xf]
  %v1001 = vld [vmem:[%s987 + $0x34] sm:$0xf]
  %v1002 = vld [vmem:[%s987 + $0x38] sm:$0xf]
  %v1003 = vld [vmem:[%s987 + $0x3c] sm:$0xf]
  %v1020 = vunpack.c.l.b16 %v988
  %v1021 = vunpack.c.l.b16 %v989
  %v1022 = vunpack.c.l.b16 %v990
  %v1023 = vunpack.c.l.b16 %v991
  %v1024 = vunpack.c.l.b16 %v992
  %v1025 = vunpack.c.l.b16 %v993
  %v1026 = vunpack.c.l.b16 %v994
  %v1027 = vunpack.c.l.b16 %v995
  %v1028 = vunpack.c.l.b16 %v996
  %v1029 = vunpack.c.l.b16 %v997
  %v1030 = vunpack.c.l.b16 %v998
  %v1031 = vunpack.c.l.b16 %v999
  %v1032 = vunpack.c.l.b16 %v1000
  %v1033 = vunpack.c.l.b16 %v1001
  %v1034 = vunpack.c.l.b16 %v1002
  %v1035 = vunpack.c.l.b16 %v1003
  %v1036 = vpack.c.b16 %v1021, %v1020
  %v1037 = vpack.c.b16 %v1023, %v1022
  %v1038 = vpack.c.b16 %v1025, %v1024
  %v1039 = vpack.c.b16 %v1027, %v1026
  %v1040 = vpack.c.b16 %v1029, %v1028
  %v1041 = vpack.c.b16 %v1031, %v1030
  %v1042 = vpack.c.b16 %v1033, %v1032
  %v1043 = vpack.c.b16 %v1035, %v1034
  %1052 = vmatprep.subr.bf16.mxu0 0
  %1053 = vmatpush1.bf16.msra.mxu0 %v1043
  %1054 = vmatprep.subr.bf16.mxu0 0
  %1055 = vmatpush1.bf16.msra.mxu0 %v1042
  %1056 = vmatprep.subr.bf16.mxu0 0
  %1057 = vmatpush1.bf16.msra.mxu0 %v1041
  %1058 = vmatprep.subr.bf16.mxu0 0
  %1059 = vmatpush1.bf16.msra.mxu0 %v1040
  %1060 = vmatprep.subr.bf16.mxu0 0
  %1061 = vmatpush1.bf16.msra.mxu0 %v1039
  %1062 = vmatprep.subr.bf16.mxu0 0
  %1063 = vmatpush1.bf16.msra.mxu0 %v1038
  %1064 = vmatprep.subr.bf16.mxu0 0
  %1065 = vmatpush1.bf16.msra.mxu0 %v1037
  %1066 = vmatprep.subr.bf16.mxu0 0
  %1067 = vmatpush1.bf16.msra.mxu0 %v1036
  %1068 = vmatprep.subr.bf16.mxu0 0
  %1069 = vmatpush2.bf16.msra.mxu0 0
  %1070 = vmatprep.subr.bf16.mxu0 0
  %1071 = vmatpush2.bf16.msra.mxu0 0
  %1072 = vmatprep.subr.bf16.mxu0 0
  %1073 = vmatpush2.bf16.msra.mxu0 0
  %1074 = vmatprep.subr.bf16.mxu0 0
  %1075 = vmatpush2.bf16.msra.mxu0 0
  %1076 = vmatprep.subr.bf16.mxu0 0
  %1077 = vmatpush2.bf16.msra.mxu0 0
  %1078 = vmatprep.subr.bf16.mxu0 0
  %1079 = vmatpush2.bf16.msra.mxu0 0
  %1080 = vmatprep.subr.bf16.mxu0 0
  %1081 = vmatpush2.bf16.msra.mxu0 0
  %1082 = vmatprep.subr.bf16.mxu0 0
  %1083 = vmatpush2.bf16.msra.mxu0 0
  %1084 = vmatprep.mubr.bf16.mxu0 0
  %1085 = vmatmul.mubr.bf16.gmra.mxu0 %v138
  %v1086 = vpop.f32.mrf.mxu0
  %v1087 = vadd.f32 0.0, %v1086
  %v1088 = vpop.f32.mrf.mxu0
  %v1089 = vpop.f32.mrf.mxu0
  %v1090 = vpop.f32.mrf.mxu0
  %1091 = vdwg.mxu0
  %1092 = vst.msk [vmem:[#allocation2 + $0x20] sm:$0xf] %vm243, %v1087
  %s1093 = scalar_lea.vmem %s4, 576
  %v1094 = vld [vmem:[%s1093] sm:$0xf]
  %v1095 = vld [vmem:[%s1093 + $0x4] sm:$0xf]
  %v1096 = vld [vmem:[%s1093 + $0x8] sm:$0xf]
  %v1097 = vld [vmem:[%s1093 + $0xc] sm:$0xf]
  %v1098 = vld [vmem:[%s1093 + $0x10] sm:$0xf]
  %v1099 = vld [vmem:[%s1093 + $0x14] sm:$0xf]
  %v1100 = vld [vmem:[%s1093 + $0x18] sm:$0xf]
  %v1101 = vld [vmem:[%s1093 + $0x1c] sm:$0xf]
  %v1102 = vld [vmem:[%s1093 + $0x20] sm:$0xf]
  %v1103 = vld [vmem:[%s1093 + $0x24] sm:$0xf]
  %v1104 = vld [vmem:[%s1093 + $0x28] sm:$0xf]
  %v1105 = vld [vmem:[%s1093 + $0x2c] sm:$0xf]
  %v1106 = vld [vmem:[%s1093 + $0x30] sm:$0xf]
  %v1107 = vld [vmem:[%s1093 + $0x34] sm:$0xf]
  %v1108 = vld [vmem:[%s1093 + $0x38] sm:$0xf]
  %v1109 = vld [vmem:[%s1093 + $0x3c] sm:$0xf]
  %v1126 = vunpack.c.l.b16 %v1094
  %v1127 = vunpack.c.l.b16 %v1095
  %v1128 = vunpack.c.l.b16 %v1096
  %v1129 = vunpack.c.l.b16 %v1097
  %v1130 = vunpack.c.l.b16 %v1098
  %v1131 = vunpack.c.l.b16 %v1099
  %v1132 = vunpack.c.l.b16 %v1100
  %v1133 = vunpack.c.l.b16 %v1101
  %v1134 = vunpack.c.l.b16 %v1102
  %v1135 = vunpack.c.l.b16 %v1103
  %v1136 = vunpack.c.l.b16 %v1104
  %v1137 = vunpack.c.l.b16 %v1105
  %v1138 = vunpack.c.l.b16 %v1106
  %v1139 = vunpack.c.l.b16 %v1107
  %v1140 = vunpack.c.l.b16 %v1108
  %v1141 = vunpack.c.l.b16 %v1109
  %v1142 = vpack.c.b16 %v1127, %v1126
  %v1143 = vpack.c.b16 %v1129, %v1128
  %v1144 = vpack.c.b16 %v1131, %v1130
  %v1145 = vpack.c.b16 %v1133, %v1132
  %v1146 = vpack.c.b16 %v1135, %v1134
  %v1147 = vpack.c.b16 %v1137, %v1136
  %v1148 = vpack.c.b16 %v1139, %v1138
  %v1149 = vpack.c.b16 %v1141, %v1140
  %1158 = vmatprep.subr.bf16.mxu0 0
  %1159 = vmatpush1.bf16.msra.mxu0 %v1149
  %1160 = vmatprep.subr.bf16.mxu0 0
  %1161 = vmatpush1.bf16.msra.mxu0 %v1148
  %1162 = vmatprep.subr.bf16.mxu0 0
  %1163 = vmatpush1.bf16.msra.mxu0 %v1147
  %1164 = vmatprep.subr.bf16.mxu0 0
  %1165 = vmatpush1.bf16.msra.mxu0 %v1146
  %1166 = vmatprep.subr.bf16.mxu0 0
  %1167 = vmatpush1.bf16.msra.mxu0 %v1145
  %1168 = vmatprep.subr.bf16.mxu0 0
  %1169 = vmatpush1.bf16.msra.mxu0 %v1144
  %1170 = vmatprep.subr.bf16.mxu0 0
  %1171 = vmatpush1.bf16.msra.mxu0 %v1143
  %1172 = vmatprep.subr.bf16.mxu0 0
  %1173 = vmatpush1.bf16.msra.mxu0 %v1142
  %1174 = vmatprep.subr.bf16.mxu0 0
  %1175 = vmatpush2.bf16.msra.mxu0 0
  %1176 = vmatprep.subr.bf16.mxu0 0
  %1177 = vmatpush2.bf16.msra.mxu0 0
  %1178 = vmatprep.subr.bf16.mxu0 0
  %1179 = vmatpush2.bf16.msra.mxu0 0
  %1180 = vmatprep.subr.bf16.mxu0 0
  %1181 = vmatpush2.bf16.msra.mxu0 0
  %1182 = vmatprep.subr.bf16.mxu0 0
  %1183 = vmatpush2.bf16.msra.mxu0 0
  %1184 = vmatprep.subr.bf16.mxu0 0
  %1185 = vmatpush2.bf16.msra.mxu0 0
  %1186 = vmatprep.subr.bf16.mxu0 0
  %1187 = vmatpush2.bf16.msra.mxu0 0
  %1188 = vmatprep.subr.bf16.mxu0 0
  %1189 = vmatpush2.bf16.msra.mxu0 0
  %1190 = vmatprep.mubr.bf16.mxu0 0
  %1191 = vmatmul.mubr.bf16.gmra.mxu0 %v138
  %v1192 = vpop.f32.mrf.mxu0
  %v1193 = vadd.f32 0.0, %v1192
  %v1194 = vpop.f32.mrf.mxu0
  %v1195 = vpop.f32.mrf.mxu0
  %v1196 = vpop.f32.mrf.mxu0
  %1197 = vdwg.mxu0
  %1198 = vst.msk [vmem:[#allocation2 + $0x24] sm:$0xf] %vm243, %v1193
  %s1199 = scalar_lea.vmem %s4, 640
  %v1200 = vld [vmem:[%s1199] sm:$0xf]
  %v1201 = vld [vmem:[%s1199 + $0x4] sm:$0xf]
  %v1202 = vld [vmem:[%s1199 + $0x8] sm:$0xf]
  %v1203 = vld [vmem:[%s1199 + $0xc] sm:$0xf]
  %v1204 = vld [vmem:[%s1199 + $0x10] sm:$0xf]
  %v1205 = vld [vmem:[%s1199 + $0x14] sm:$0xf]
  %v1206 = vld [vmem:[%s1199 + $0x18] sm:$0xf]
  %v1207 = vld [vmem:[%s1199 + $0x1c] sm:$0xf]
  %v1208 = vld [vmem:[%s1199 + $0x20] sm:$0xf]
  %v1209 = vld [vmem:[%s1199 + $0x24] sm:$0xf]
  %v1210 = vld [vmem:[%s1199 + $0x28] sm:$0xf]
  %v1211 = vld [vmem:[%s1199 + $0x2c] sm:$0xf]
  %v1212 = vld [vmem:[%s1199 + $0x30] sm:$0xf]
  %v1213 = vld [vmem:[%s1199 + $0x34] sm:$0xf]
  %v1214 = vld [vmem:[%s1199 + $0x38] sm:$0xf]
  %v1215 = vld [vmem:[%s1199 + $0x3c] sm:$0xf]
  %v1232 = vunpack.c.l.b16 %v1200
  %v1233 = vunpack.c.l.b16 %v1201
  %v1234 = vunpack.c.l.b16 %v1202
  %v1235 = vunpack.c.l.b16 %v1203
  %v1236 = vunpack.c.l.b16 %v1204
  %v1237 = vunpack.c.l.b16 %v1205
  %v1238 = vunpack.c.l.b16 %v1206
  %v1239 = vunpack.c.l.b16 %v1207
  %v1240 = vunpack.c.l.b16 %v1208
  %v1241 = vunpack.c.l.b16 %v1209
  %v1242 = vunpack.c.l.b16 %v1210
  %v1243 = vunpack.c.l.b16 %v1211
  %v1244 = vunpack.c.l.b16 %v1212
  %v1245 = vunpack.c.l.b16 %v1213
  %v1246 = vunpack.c.l.b16 %v1214
  %v1247 = vunpack.c.l.b16 %v1215
  %v1248 = vpack.c.b16 %v1233, %v1232
  %v1249 = vpack.c.b16 %v1235, %v1234
  %v1250 = vpack.c.b16 %v1237, %v1236
  %v1251 = vpack.c.b16 %v1239, %v1238
  %v1252 = vpack.c.b16 %v1241, %v1240
  %v1253 = vpack.c.b16 %v1243, %v1242
  %v1254 = vpack.c.b16 %v1245, %v1244
  %v1255 = vpack.c.b16 %v1247, %v1246
  %1264 = vmatprep.subr.bf16.mxu0 0
  %1265 = vmatpush1.bf16.msra.mxu0 %v1255
  %1266 = vmatprep.subr.bf16.mxu0 0
  %1267 = vmatpush1.bf16.msra.mxu0 %v1254
  %1268 = vmatprep.subr.bf16.mxu0 0
  %1269 = vmatpush1.bf16.msra.mxu0 %v1253
  %1270 = vmatprep.subr.bf16.mxu0 0
  %1271 = vmatpush1.bf16.msra.mxu0 %v1252
  %1272 = vmatprep.subr.bf16.mxu0 0
  %1273 = vmatpush1.bf16.msra.mxu0 %v1251
  %1274 = vmatprep.subr.bf16.mxu0 0
  %1275 = vmatpush1.bf16.msra.mxu0 %v1250
  %1276 = vmatprep.subr.bf16.mxu0 0
  %1277 = vmatpush1.bf16.msra.mxu0 %v1249
  %1278 = vmatprep.subr.bf16.mxu0 0
  %1279 = vmatpush1.bf16.msra.mxu0 %v1248
  %1280 = vmatprep.subr.bf16.mxu0 0
  %1281 = vmatpush2.bf16.msra.mxu0 0
  %1282 = vmatprep.subr.bf16.mxu0 0
  %1283 = vmatpush2.bf16.msra.mxu0 0
  %1284 = vmatprep.subr.bf16.mxu0 0
  %1285 = vmatpush2.bf16.msra.mxu0 0
  %1286 = vmatprep.subr.bf16.mxu0 0
  %1287 = vmatpush2.bf16.msra.mxu0 0
  %1288 = vmatprep.subr.bf16.mxu0 0
  %1289 = vmatpush2.bf16.msra.mxu0 0
  %1290 = vmatprep.subr.bf16.mxu0 0
  %1291 = vmatpush2.bf16.msra.mxu0 0
  %1292 = vmatprep.subr.bf16.mxu0 0
  %1293 = vmatpush2.bf16.msra.mxu0 0
  %1294 = vmatprep.subr.bf16.mxu0 0
  %1295 = vmatpush2.bf16.msra.mxu0 0
  %1296 = vmatprep.mubr.bf16.mxu0 0
  %1297 = vmatmul.mubr.bf16.gmra.mxu0 %v138
  %v1298 = vpop.f32.mrf.mxu0
  %v1299 = vadd.f32 0.0, %v1298
  %v1300 = vpop.f32.mrf.mxu0
  %v1301 = vpop.f32.mrf.mxu0
  %v1302 = vpop.f32.mrf.mxu0
  %1303 = vdwg.mxu0
  %1304 = vst.msk [vmem:[#allocation2 + $0x28] sm:$0xf] %vm243, %v1299
  %s1305 = scalar_lea.vmem %s4, 704
  %v1306 = vld [vmem:[%s1305] sm:$0xf]
  %v1307 = vld [vmem:[%s1305 + $0x4] sm:$0xf]
  %v1308 = vld [vmem:[%s1305 + $0x8] sm:$0xf]
  %v1309 = vld [vmem:[%s1305 + $0xc] sm:$0xf]
  %v1310 = vld [vmem:[%s1305 + $0x10] sm:$0xf]
  %v1311 = vld [vmem:[%s1305 + $0x14] sm:$0xf]
  %v1312 = vld [vmem:[%s1305 + $0x18] sm:$0xf]
  %v1313 = vld [vmem:[%s1305 + $0x1c] sm:$0xf]
  %v1314 = vld [vmem:[%s1305 + $0x20] sm:$0xf]
  %v1315 = vld [vmem:[%s1305 + $0x24] sm:$0xf]
  %v1316 = vld [vmem:[%s1305 + $0x28] sm:$0xf]
  %v1317 = vld [vmem:[%s1305 + $0x2c] sm:$0xf]
  %v1318 = vld [vmem:[%s1305 + $0x30] sm:$0xf]
  %v1319 = vld [vmem:[%s1305 + $0x34] sm:$0xf]
  %v1320 = vld [vmem:[%s1305 + $0x38] sm:$0xf]
  %v1321 = vld [vmem:[%s1305 + $0x3c] sm:$0xf]
  %v1338 = vunpack.c.l.b16 %v1306
  %v1339 = vunpack.c.l.b16 %v1307
  %v1340 = vunpack.c.l.b16 %v1308
  %v1341 = vunpack.c.l.b16 %v1309
  %v1342 = vunpack.c.l.b16 %v1310
  %v1343 = vunpack.c.l.b16 %v1311
  %v1344 = vunpack.c.l.b16 %v1312
  %v1345 = vunpack.c.l.b16 %v1313
  %v1346 = vunpack.c.l.b16 %v1314
  %v1347 = vunpack.c.l.b16 %v1315
  %v1348 = vunpack.c.l.b16 %v1316
  %v1349 = vunpack.c.l.b16 %v1317
  %v1350 = vunpack.c.l.b16 %v1318
  %v1351 = vunpack.c.l.b16 %v1319
  %v1352 = vunpack.c.l.b16 %v1320
  %v1353 = vunpack.c.l.b16 %v1321
  %v1354 = vpack.c.b16 %v1339, %v1338
  %v1355 = vpack.c.b16 %v1341, %v1340
  %v1356 = vpack.c.b16 %v1343, %v1342
  %v1357 = vpack.c.b16 %v1345, %v1344
  %v1358 = vpack.c.b16 %v1347, %v1346
  %v1359 = vpack.c.b16 %v1349, %v1348
  %v1360 = vpack.c.b16 %v1351, %v1350
  %v1361 = vpack.c.b16 %v1353, %v1352
  %1370 = vmatprep.subr.bf16.mxu0 0
  %1371 = vmatpush1.bf16.msra.mxu0 %v1361
  %1372 = vmatprep.subr.bf16.mxu0 0
  %1373 = vmatpush1.bf16.msra.mxu0 %v1360
  %1374 = vmatprep.subr.bf16.mxu0 0
  %1375 = vmatpush1.bf16.msra.mxu0 %v1359
  %1376 = vmatprep.subr.bf16.mxu0 0
  %1377 = vmatpush1.bf16.msra.mxu0 %v1358
  %1378 = vmatprep.subr.bf16.mxu0 0
  %1379 = vmatpush1.bf16.msra.mxu0 %v1357
  %1380 = vmatprep.subr.bf16.mxu0 0
  %1381 = vmatpush1.bf16.msra.mxu0 %v1356
  %1382 = vmatprep.subr.bf16.mxu0 0
  %1383 = vmatpush1.bf16.msra.mxu0 %v1355
  %1384 = vmatprep.subr.bf16.mxu0 0
  %1385 = vmatpush1.bf16.msra.mxu0 %v1354
  %1386 = vmatprep.subr.bf16.mxu0 0
  %1387 = vmatpush2.bf16.msra.mxu0 0
  %1388 = vmatprep.subr.bf16.mxu0 0
  %1389 = vmatpush2.bf16.msra.mxu0 0
  %1390 = vmatprep.subr.bf16.mxu0 0
  %1391 = vmatpush2.bf16.msra.mxu0 0
  %1392 = vmatprep.subr.bf16.mxu0 0
  %1393 = vmatpush2.bf16.msra.mxu0 0
  %1394 = vmatprep.subr.bf16.mxu0 0
  %1395 = vmatpush2.bf16.msra.mxu0 0
  %1396 = vmatprep.subr.bf16.mxu0 0
  %1397 = vmatpush2.bf16.msra.mxu0 0
  %1398 = vmatprep.subr.bf16.mxu0 0
  %1399 = vmatpush2.bf16.msra.mxu0 0
  %1400 = vmatprep.subr.bf16.mxu0 0
  %1401 = vmatpush2.bf16.msra.mxu0 0
  %1402 = vmatprep.mubr.bf16.mxu0 0
  %1403 = vmatmul.mubr.bf16.gmra.mxu0 %v138
  %v1404 = vpop.f32.mrf.mxu0
  %v1405 = vadd.f32 0.0, %v1404
  %v1406 = vpop.f32.mrf.mxu0
  %v1407 = vpop.f32.mrf.mxu0
  %v1408 = vpop.f32.mrf.mxu0
  %1409 = vdwg.mxu0
  %1410 = vst.msk [vmem:[#allocation2 + $0x2c] sm:$0xf] %vm243, %v1405
  %s1411 = scalar_lea.vmem %s4, 768
  %v1412 = vld [vmem:[%s1411] sm:$0xf]
  %v1413 = vld [vmem:[%s1411 + $0x4] sm:$0xf]
  %v1414 = vld [vmem:[%s1411 + $0x8] sm:$0xf]
  %v1415 = vld [vmem:[%s1411 + $0xc] sm:$0xf]
  %v1416 = vld [vmem:[%s1411 + $0x10] sm:$0xf]
  %v1417 = vld [vmem:[%s1411 + $0x14] sm:$0xf]
  %v1418 = vld [vmem:[%s1411 + $0x18] sm:$0xf]
  %v1419 = vld [vmem:[%s1411 + $0x1c] sm:$0xf]
  %v1420 = vld [vmem:[%s1411 + $0x20] sm:$0xf]
  %v1421 = vld [vmem:[%s1411 + $0x24] sm:$0xf]
  %v1422 = vld [vmem:[%s1411 + $0x28] sm:$0xf]
  %v1423 = vld [vmem:[%s1411 + $0x2c] sm:$0xf]
  %v1424 = vld [vmem:[%s1411 + $0x30] sm:$0xf]
  %v1425 = vld [vmem:[%s1411 + $0x34] sm:$0xf]
  %v1426 = vld [vmem:[%s1411 + $0x38] sm:$0xf]
  %v1427 = vld [vmem:[%s1411 + $0x3c] sm:$0xf]
  %v1444 = vunpack.c.l.b16 %v1412
  %v1445 = vunpack.c.l.b16 %v1413
  %v1446 = vunpack.c.l.b16 %v1414
  %v1447 = vunpack.c.l.b16 %v1415
  %v1448 = vunpack.c.l.b16 %v1416
  %v1449 = vunpack.c.l.b16 %v1417
  %v1450 = vunpack.c.l.b16 %v1418
  %v1451 = vunpack.c.l.b16 %v1419
  %v1452 = vunpack.c.l.b16 %v1420
  %v1453 = vunpack.c.l.b16 %v1421
  %v1454 = vunpack.c.l.b16 %v1422
  %v1455 = vunpack.c.l.b16 %v1423
  %v1456 = vunpack.c.l.b16 %v1424
  %v1457 = vunpack.c.l.b16 %v1425
  %v1458 = vunpack.c.l.b16 %v1426
  %v1459 = vunpack.c.l.b16 %v1427
  %v1460 = vpack.c.b16 %v1445, %v1444
  %v1461 = vpack.c.b16 %v1447, %v1446
  %v1462 = vpack.c.b16 %v1449, %v1448
  %v1463 = vpack.c.b16 %v1451, %v1450
  %v1464 = vpack.c.b16 %v1453, %v1452
  %v1465 = vpack.c.b16 %v1455, %v1454
  %v1466 = vpack.c.b16 %v1457, %v1456
  %v1467 = vpack.c.b16 %v1459, %v1458
  %1476 = vmatprep.subr.bf16.mxu0 0
  %1477 = vmatpush1.bf16.msra.mxu0 %v1467
  %1478 = vmatprep.subr.bf16.mxu0 0
  %1479 = vmatpush1.bf16.msra.mxu0 %v1466
  %1480 = vmatprep.subr.bf16.mxu0 0
  %1481 = vmatpush1.bf16.msra.mxu0 %v1465
  %1482 = vmatprep.subr.bf16.mxu0 0
  %1483 = vmatpush1.bf16.msra.mxu0 %v1464
  %1484 = vmatprep.subr.bf16.mxu0 0
  %1485 = vmatpush1.bf16.msra.mxu0 %v1463
  %1486 = vmatprep.subr.bf16.mxu0 0
  %1487 = vmatpush1.bf16.msra.mxu0 %v1462
  %1488 = vmatprep.subr.bf16.mxu0 0
  %1489 = vmatpush1.bf16.msra.mxu0 %v1461
  %1490 = vmatprep.subr.bf16.mxu0 0
  %1491 = vmatpush1.bf16.msra.mxu0 %v1460
  %1492 = vmatprep.subr.bf16.mxu0 0
  %1493 = vmatpush2.bf16.msra.mxu0 0
  %1494 = vmatprep.subr.bf16.mxu0 0
  %1495 = vmatpush2.bf16.msra.mxu0 0
  %1496 = vmatprep.subr.bf16.mxu0 0
  %1497 = vmatpush2.bf16.msra.mxu0 0
  %1498 = vmatprep.subr.bf16.mxu0 0
  %1499 = vmatpush2.bf16.msra.mxu0 0
  %1500 = vmatprep.subr.bf16.mxu0 0
  %1501 = vmatpush2.bf16.msra.mxu0 0
  %1502 = vmatprep.subr.bf16.mxu0 0
  %1503 = vmatpush2.bf16.msra.mxu0 0
  %1504 = vmatprep.subr.bf16.mxu0 0
  %1505 = vmatpush2.bf16.msra.mxu0 0
  %1506 = vmatprep.subr.bf16.mxu0 0
  %1507 = vmatpush2.bf16.msra.mxu0 0
  %1508 = vmatprep.mubr.bf16.mxu0 0
  %1509 = vmatmul.mubr.bf16.gmra.mxu0 %v138
  %v1510 = vpop.f32.mrf.mxu0
  %v1511 = vadd.f32 0.0, %v1510
  %v1512 = vpop.f32.mrf.mxu0
  %v1513 = vpop.f32.mrf.mxu0
  %v1514 = vpop.f32.mrf.mxu0
  %1515 = vdwg.mxu0
  %1516 = vst.msk [vmem:[#allocation2 + $0x30] sm:$0xf] %vm243, %v1511
  %s1517 = scalar_lea.vmem %s4, 832
  %v1518 = vld [vmem:[%s1517] sm:$0xf]
  %v1519 = vld [vmem:[%s1517 + $0x4] sm:$0xf]
  %v1520 = vld [vmem:[%s1517 + $0x8] sm:$0xf]
  %v1521 = vld [vmem:[%s1517 + $0xc] sm:$0xf]
  %v1522 = vld [vmem:[%s1517 + $0x10] sm:$0xf]
  %v1523 = vld [vmem:[%s1517 + $0x14] sm:$0xf]
  %v1524 = vld [vmem:[%s1517 + $0x18] sm:$0xf]
  %v1525 = vld [vmem:[%s1517 + $0x1c] sm:$0xf]
  %v1526 = vld [vmem:[%s1517 + $0x20] sm:$0xf]
  %v1527 = vld [vmem:[%s1517 + $0x24] sm:$0xf]
  %v1528 = vld [vmem:[%s1517 + $0x28] sm:$0xf]
  %v1529 = vld [vmem:[%s1517 + $0x2c] sm:$0xf]
  %v1530 = vld [vmem:[%s1517 + $0x30] sm:$0xf]
  %v1531 = vld [vmem:[%s1517 + $0x34] sm:$0xf]
  %v1532 = vld [vmem:[%s1517 + $0x38] sm:$0xf]
  %v1533 = vld [vmem:[%s1517 + $0x3c] sm:$0xf]
  %v1550 = vunpack.c.l.b16 %v1518
  %v1551 = vunpack.c.l.b16 %v1519
  %v1552 = vunpack.c.l.b16 %v1520
  %v1553 = vunpack.c.l.b16 %v1521
  %v1554 = vunpack.c.l.b16 %v1522
  %v1555 = vunpack.c.l.b16 %v1523
  %v1556 = vunpack.c.l.b16 %v1524
  %v1557 = vunpack.c.l.b16 %v1525
  %v1558 = vunpack.c.l.b16 %v1526
  %v1559 = vunpack.c.l.b16 %v1527
  %v1560 = vunpack.c.l.b16 %v1528
  %v1561 = vunpack.c.l.b16 %v1529
  %v1562 = vunpack.c.l.b16 %v1530
  %v1563 = vunpack.c.l.b16 %v1531
  %v1564 = vunpack.c.l.b16 %v1532
  %v1565 = vunpack.c.l.b16 %v1533
  %v1566 = vpack.c.b16 %v1551, %v1550
  %v1567 = vpack.c.b16 %v1553, %v1552
  %v1568 = vpack.c.b16 %v1555, %v1554
  %v1569 = vpack.c.b16 %v1557, %v1556
  %v1570 = vpack.c.b16 %v1559, %v1558
  %v1571 = vpack.c.b16 %v1561, %v1560
  %v1572 = vpack.c.b16 %v1563, %v1562
  %v1573 = vpack.c.b16 %v1565, %v1564
  %1582 = vmatprep.subr.bf16.mxu0 0
  %1583 = vmatpush1.bf16.msra.mxu0 %v1573
  %1584 = vmatprep.subr.bf16.mxu0 0
  %1585 = vmatpush1.bf16.msra.mxu0 %v1572
  %1586 = vmatprep.subr.bf16.mxu0 0
  %1587 = vmatpush1.bf16.msra.mxu0 %v1571
  %1588 = vmatprep.subr.bf16.mxu0 0
  %1589 = vmatpush1.bf16.msra.mxu0 %v1570
  %1590 = vmatprep.subr.bf16.mxu0 0
  %1591 = vmatpush1.bf16.msra.mxu0 %v1569
  %1592 = vmatprep.subr.bf16.mxu0 0
  %1593 = vmatpush1.bf16.msra.mxu0 %v1568
  %1594 = vmatprep.subr.bf16.mxu0 0
  %1595 = vmatpush1.bf16.msra.mxu0 %v1567
  %1596 = vmatprep.subr.bf16.mxu0 0
  %1597 = vmatpush1.bf16.msra.mxu0 %v1566
  %1598 = vmatprep.subr.bf16.mxu0 0
  %1599 = vmatpush2.bf16.msra.mxu0 0
  %1600 = vmatprep.subr.bf16.mxu0 0
  %1601 = vmatpush2.bf16.msra.mxu0 0
  %1602 = vmatprep.subr.bf16.mxu0 0
  %1603 = vmatpush2.bf16.msra.mxu0 0
  %1604 = vmatprep.subr.bf16.mxu0 0
  %1605 = vmatpush2.bf16.msra.mxu0 0
  %1606 = vmatprep.subr.bf16.mxu0 0
  %1607 = vmatpush2.bf16.msra.mxu0 0
  %1608 = vmatprep.subr.bf16.mxu0 0
  %1609 = vmatpush2.bf16.msra.mxu0 0
  %1610 = vmatprep.subr.bf16.mxu0 0
  %1611 = vmatpush2.bf16.msra.mxu0 0
  %1612 = vmatprep.subr.bf16.mxu0 0
  %1613 = vmatpush2.bf16.msra.mxu0 0
  %1614 = vmatprep.mubr.bf16.mxu0 0
  %1615 = vmatmul.mubr.bf16.gmra.mxu0 %v138
  %v1616 = vpop.f32.mrf.mxu0
  %v1617 = vadd.f32 0.0, %v1616
  %v1618 = vpop.f32.mrf.mxu0
  %v1619 = vpop.f32.mrf.mxu0
  %v1620 = vpop.f32.mrf.mxu0
  %1621 = vdwg.mxu0
  %1622 = vst.msk [vmem:[#allocation2 + $0x34] sm:$0xf] %vm243, %v1617
  %s1623 = scalar_lea.vmem %s4, 896
  %v1624 = vld [vmem:[%s1623] sm:$0xf]
  %v1625 = vld [vmem:[%s1623 + $0x4] sm:$0xf]
  %v1626 = vld [vmem:[%s1623 + $0x8] sm:$0xf]
  %v1627 = vld [vmem:[%s1623 + $0xc] sm:$0xf]
  %v1628 = vld [vmem:[%s1623 + $0x10] sm:$0xf]
  %v1629 = vld [vmem:[%s1623 + $0x14] sm:$0xf]
  %v1630 = vld [vmem:[%s1623 + $0x18] sm:$0xf]
  %v1631 = vld [vmem:[%s1623 + $0x1c] sm:$0xf]
  %v1632 = vld [vmem:[%s1623 + $0x20] sm:$0xf]
  %v1633 = vld [vmem:[%s1623 + $0x24] sm:$0xf]
  %v1634 = vld [vmem:[%s1623 + $0x28] sm:$0xf]
  %v1635 = vld [vmem:[%s1623 + $0x2c] sm:$0xf]
  %v1636 = vld [vmem:[%s1623 + $0x30] sm:$0xf]
  %v1637 = vld [vmem:[%s1623 + $0x34] sm:$0xf]
  %v1638 = vld [vmem:[%s1623 + $0x38] sm:$0xf]
  %v1639 = vld [vmem:[%s1623 + $0x3c] sm:$0xf]
  %v1656 = vunpack.c.l.b16 %v1624
  %v1657 = vunpack.c.l.b16 %v1625
  %v1658 = vunpack.c.l.b16 %v1626
  %v1659 = vunpack.c.l.b16 %v1627
  %v1660 = vunpack.c.l.b16 %v1628
  %v1661 = vunpack.c.l.b16 %v1629
  %v1662 = vunpack.c.l.b16 %v1630
  %v1663 = vunpack.c.l.b16 %v1631
  %v1664 = vunpack.c.l.b16 %v1632
  %v1665 = vunpack.c.l.b16 %v1633
  %v1666 = vunpack.c.l.b16 %v1634
  %v1667 = vunpack.c.l.b16 %v1635
  %v1668 = vunpack.c.l.b16 %v1636
  %v1669 = vunpack.c.l.b16 %v1637
  %v1670 = vunpack.c.l.b16 %v1638
  %v1671 = vunpack.c.l.b16 %v1639
  %v1672 = vpack.c.b16 %v1657, %v1656
  %v1673 = vpack.c.b16 %v1659, %v1658
  %v1674 = vpack.c.b16 %v1661, %v1660
  %v1675 = vpack.c.b16 %v1663, %v1662
  %v1676 = vpack.c.b16 %v1665, %v1664
  %v1677 = vpack.c.b16 %v1667, %v1666
  %v1678 = vpack.c.b16 %v1669, %v1668
  %v1679 = vpack.c.b16 %v1671, %v1670
  %1688 = vmatprep.subr.bf16.mxu0 0
  %1689 = vmatpush1.bf16.msra.mxu0 %v1679
  %1690 = vmatprep.subr.bf16.mxu0 0
  %1691 = vmatpush1.bf16.msra.mxu0 %v1678
  %1692 = vmatprep.subr.bf16.mxu0 0
  %1693 = vmatpush1.bf16.msra.mxu0 %v1677
  %1694 = vmatprep.subr.bf16.mxu0 0
  %1695 = vmatpush1.bf16.msra.mxu0 %v1676
  %1696 = vmatprep.subr.bf16.mxu0 0
  %1697 = vmatpush1.bf16.msra.mxu0 %v1675
  %1698 = vmatprep.subr.bf16.mxu0 0
  %1699 = vmatpush1.bf16.msra.mxu0 %v1674
  %1700 = vmatprep.subr.bf16.mxu0 0
  %1701 = vmatpush1.bf16.msra.mxu0 %v1673
  %1702 = vmatprep.subr.bf16.mxu0 0
  %1703 = vmatpush1.bf16.msra.mxu0 %v1672
  %1704 = vmatprep.subr.bf16.mxu0 0
  %1705 = vmatpush2.bf16.msra.mxu0 0
  %1706 = vmatprep.subr.bf16.mxu0 0
  %1707 = vmatpush2.bf16.msra.mxu0 0
  %1708 = vmatprep.subr.bf16.mxu0 0
  %1709 = vmatpush2.bf16.msra.mxu0 0
  %1710 = vmatprep.subr.bf16.mxu0 0
  %1711 = vmatpush2.bf16.msra.mxu0 0
  %1712 = vmatprep.subr.bf16.mxu0 0
  %1713 = vmatpush2.bf16.msra.mxu0 0
  %1714 = vmatprep.subr.bf16.mxu0 0
  %1715 = vmatpush2.bf16.msra.mxu0 0
  %1716 = vmatprep.subr.bf16.mxu0 0
  %1717 = vmatpush2.bf16.msra.mxu0 0
  %1718 = vmatprep.subr.bf16.mxu0 0
  %1719 = vmatpush2.bf16.msra.mxu0 0
  %1720 = vmatprep.mubr.bf16.mxu0 0
  %1721 = vmatmul.mubr.bf16.gmra.mxu0 %v138
  %v1722 = vpop.f32.mrf.mxu0
  %v1723 = vadd.f32 0.0, %v1722
  %v1724 = vpop.f32.mrf.mxu0
  %v1725 = vpop.f32.mrf.mxu0
  %v1726 = vpop.f32.mrf.mxu0
  %1727 = vdwg.mxu0
  %1728 = vst.msk [vmem:[#allocation2 + $0x38] sm:$0xf] %vm243, %v1723
  %s1729 = scalar_lea.vmem %s4, 960
  %v1730 = vld [vmem:[%s1729] sm:$0xf]
  %v1731 = vld [vmem:[%s1729 + $0x4] sm:$0xf]
  %v1732 = vld [vmem:[%s1729 + $0x8] sm:$0xf]
  %v1733 = vld [vmem:[%s1729 + $0xc] sm:$0xf]
  %v1734 = vld [vmem:[%s1729 + $0x10] sm:$0xf]
  %v1735 = vld [vmem:[%s1729 + $0x14] sm:$0xf]
  %v1736 = vld [vmem:[%s1729 + $0x18] sm:$0xf]
  %v1737 = vld [vmem:[%s1729 + $0x1c] sm:$0xf]
  %v1738 = vld [vmem:[%s1729 + $0x20] sm:$0xf]
  %v1739 = vld [vmem:[%s1729 + $0x24] sm:$0xf]
  %v1740 = vld [vmem:[%s1729 + $0x28] sm:$0xf]
  %v1741 = vld [vmem:[%s1729 + $0x2c] sm:$0xf]
  %v1742 = vld [vmem:[%s1729 + $0x30] sm:$0xf]
  %v1743 = vld [vmem:[%s1729 + $0x34] sm:$0xf]
  %v1744 = vld [vmem:[%s1729 + $0x38] sm:$0xf]
  %v1745 = vld [vmem:[%s1729 + $0x3c] sm:$0xf]
  %v1762 = vunpack.c.l.b16 %v1730
  %v1763 = vunpack.c.l.b16 %v1731
  %v1764 = vunpack.c.l.b16 %v1732
  %v1765 = vunpack.c.l.b16 %v1733
  %v1766 = vunpack.c.l.b16 %v1734
  %v1767 = vunpack.c.l.b16 %v1735
  %v1768 = vunpack.c.l.b16 %v1736
  %v1769 = vunpack.c.l.b16 %v1737
  %v1770 = vunpack.c.l.b16 %v1738
  %v1771 = vunpack.c.l.b16 %v1739
  %v1772 = vunpack.c.l.b16 %v1740
  %v1773 = vunpack.c.l.b16 %v1741
  %v1774 = vunpack.c.l.b16 %v1742
  %v1775 = vunpack.c.l.b16 %v1743
  %v1776 = vunpack.c.l.b16 %v1744
  %v1777 = vunpack.c.l.b16 %v1745
  %v1778 = vpack.c.b16 %v1763, %v1762
  %v1779 = vpack.c.b16 %v1765, %v1764
  %v1780 = vpack.c.b16 %v1767, %v1766
  %v1781 = vpack.c.b16 %v1769, %v1768
  %v1782 = vpack.c.b16 %v1771, %v1770
  %v1783 = vpack.c.b16 %v1773, %v1772
  %v1784 = vpack.c.b16 %v1775, %v1774
  %v1785 = vpack.c.b16 %v1777, %v1776
  %1794 = vmatprep.subr.bf16.mxu0 0
  %1795 = vmatpush1.bf16.msra.mxu0 %v1785
  %1796 = vmatprep.subr.bf16.mxu0 0
  %1797 = vmatpush1.bf16.msra.mxu0 %v1784
  %1798 = vmatprep.subr.bf16.mxu0 0
  %1799 = vmatpush1.bf16.msra.mxu0 %v1783
  %1800 = vmatprep.subr.bf16.mxu0 0
  %1801 = vmatpush1.bf16.msra.mxu0 %v1782
  %1802 = vmatprep.subr.bf16.mxu0 0
  %1803 = vmatpush1.bf16.msra.mxu0 %v1781
  %1804 = vmatprep.subr.bf16.mxu0 0
  %1805 = vmatpush1.bf16.msra.mxu0 %v1780
  %1806 = vmatprep.subr.bf16.mxu0 0
  %1807 = vmatpush1.bf16.msra.mxu0 %v1779
  %1808 = vmatprep.subr.bf16.mxu0 0
  %1809 = vmatpush1.bf16.msra.mxu0 %v1778
  %1810 = vmatprep.subr.bf16.mxu0 0
  %1811 = vmatpush2.bf16.msra.mxu0 0
  %1812 = vmatprep.subr.bf16.mxu0 0
  %1813 = vmatpush2.bf16.msra.mxu0 0
  %1814 = vmatprep.subr.bf16.mxu0 0
  %1815 = vmatpush2.bf16.msra.mxu0 0
  %1816 = vmatprep.subr.bf16.mxu0 0
  %1817 = vmatpush2.bf16.msra.mxu0 0
  %1818 = vmatprep.subr.bf16.mxu0 0
  %1819 = vmatpush2.bf16.msra.mxu0 0
  %1820 = vmatprep.subr.bf16.mxu0 0
  %1821 = vmatpush2.bf16.msra.mxu0 0
  %1822 = vmatprep.subr.bf16.mxu0 0
  %1823 = vmatpush2.bf16.msra.mxu0 0
  %1824 = vmatprep.subr.bf16.mxu0 0
  %1825 = vmatpush2.bf16.msra.mxu0 0
  %1826 = vmatprep.mubr.bf16.mxu0 0
  %1827 = vmatmul.mubr.bf16.gmra.mxu0 %v138
  %v1828 = vpop.f32.mrf.mxu0
  %v1829 = vadd.f32 0.0, %v1828
  %v1830 = vpop.f32.mrf.mxu0
  %v1831 = vpop.f32.mrf.mxu0
  %v1832 = vpop.f32.mrf.mxu0
  %1833 = vdwg.mxu0
  %1834 = vst.msk [vmem:[#allocation2 + $0x3c] sm:$0xf] %vm243, %v1829
  %v1835 = vld [vmem:[%s5] sm:$0xf]
  %v1836 = vld [vmem:[#allocation2] sm:$0xff]
  %v1837 = vld [vmem:[#allocation2 + $0x8] sm:$0xff]
  %v1838 = vld [vmem:[#allocation2 + $0x10] sm:$0xff]
  %v1839 = vld [vmem:[#allocation2 + $0x18] sm:$0xff]
  %v1840 = vld [vmem:[#allocation2 + $0x20] sm:$0xff]
  %v1841 = vld [vmem:[#allocation2 + $0x28] sm:$0xff]
  %v1842 = vld [vmem:[#allocation2 + $0x30] sm:$0xff]
  %v1843 = vld [vmem:[#allocation2 + $0x38] sm:$0xff]
  %v1844 = vpack.c.bf16 %v1837, %v1836
  %v1845 = vpack.c.bf16 %v1839, %v1838
  %v1846 = vpack.c.bf16 %v1841, %v1840
  %v1847 = vpack.c.bf16 %v1843, %v1842
  %vm1848 = vcmask 523264
  %v1850 = vsel %vm1848, %v1835, 0
  %1852 = vmatprep.subr.bf16.mxu0 0
  %1853 = vmatpush1.bf16.msra.mxu0 0
  %1854 = vmatprep.subr.bf16.mxu0 0
  %1855 = vmatpush1.bf16.msra.mxu0 0
  %1856 = vmatprep.subr.bf16.mxu0 0
  %1857 = vmatpush1.bf16.msra.mxu0 0
  %1858 = vmatprep.subr.bf16.mxu0 0
  %1859 = vmatpush1.bf16.msra.mxu0 0
  %1860 = vmatprep.subr.bf16.mxu0 0
  %1861 = vmatpush1.bf16.msra.mxu0 %v1847
  %1862 = vmatprep.subr.bf16.mxu0 0
  %1863 = vmatpush1.bf16.msra.mxu0 %v1846
  %1864 = vmatprep.subr.bf16.mxu0 0
  %1865 = vmatpush1.bf16.msra.mxu0 %v1845
  %1866 = vmatprep.subr.bf16.mxu0 0
  %1867 = vmatpush1.bf16.msra.mxu0 %v1844
  %1868 = vmatprep.subr.bf16.mxu0 0
  %1869 = vmatpush2.bf16.msra.mxu0 0
  %1870 = vmatprep.subr.bf16.mxu0 0
  %1871 = vmatpush2.bf16.msra.mxu0 0
  %1872 = vmatprep.subr.bf16.mxu0 0
  %1873 = vmatpush2.bf16.msra.mxu0 0
  %1874 = vmatprep.subr.bf16.mxu0 0
  %1875 = vmatpush2.bf16.msra.mxu0 0
  %1876 = vmatprep.subr.bf16.mxu0 0
  %1877 = vmatpush2.bf16.msra.mxu0 0
  %1878 = vmatprep.subr.bf16.mxu0 0
  %1879 = vmatpush2.bf16.msra.mxu0 0
  %1880 = vmatprep.subr.bf16.mxu0 0
  %1881 = vmatpush2.bf16.msra.mxu0 0
  %1882 = vmatprep.subr.bf16.mxu0 0
  %1883 = vmatpush2.bf16.msra.mxu0 0
  %1884 = vmatprep.mubr.bf16.mxu0 0
  %1885 = vmatmul.mubr.bf16.gmra.mxu0 %v1850
  %v1886 = vpop.f32.mrf.mxu0
  %v1887 = vadd.f32 0.0, %v1886
  %v1888 = vpop.f32.mrf.mxu0
  %v1889 = vpop.f32.mrf.mxu0
  %v1890 = vpop.f32.mrf.mxu0
  %1891 = vdwg.mxu0
  %v1892 = vld [vmem:[%s6] sm:$0xff]
  %v1893 = vld [vmem:[%s7] sm:$0xff]
  %vm1894 = vcmask 261120
  %v1895 = vsel %vm1894, %v1887, 0.0
  %1896 = vadd.xlane.f32.xlu0 %v1895
  %v1897 = vpop.xlane.xlu0 %1896
  %v1898 = vmul.f32 %v1887, %v1887
  %v1899 = vsel %vm1894, %v1898, 0.0
  %1900 = vadd.xlane.f32.xlu0 %v1899
  %v1901 = vpop.xlane.xlu0 %1900
  %v1902 = vmul.f32 %v1897, 0.03125
  %v1903 = vmul.f32 %v1901, 0.03125
  %v1904 = vmul.f32 %v1902, %v1902
  %v1905 = vsub.f32 %v1903, %v1904
  %v1906 = vmax.f32 %v1905, 0.0
  %v1907 = vadd.f32 %v1906, 1e-05
  %v1908 = vrsqrt.pop %v1907
  %v1909 = vmul.f32 %v1892, %v1908
  %v1910 = vmul.f32 %v1902, %v1909
  %v1911 = vsub.f32 %v1893, %v1910
  %1913 = vset.pattern.permute.xlu0 0
  %1914 = vperm.xlu0 %1913, %v1909
  %v1915 = vpop.permute.xlu0 %1914
  %v1917 = vmul.f32 %v1887, %v1915
  %1919 = vset.pattern.permute.xlu0 0
  %1920 = vperm.xlu0 %1919, %v1911
  %v1921 = vpop.permute.xlu0 %1920
  %v1923 = vadd.f32 %v1917, %v1921
  %v1924 = vmul.f32 %v1923, 0.2
  %v1925 = vmax.f32 %v1923, %v1924
  %v1926 = vpack.c.bf16 %v1925, %v1925
  %v1927 = vld [vmem:[%s8] sm:$0xf]
  %v1928 = vld [vmem:[%s8 + $0x4] sm:$0xf]
  %v1929 = vld [vmem:[%s8 + $0x8] sm:$0xf]
  %v1930 = vld [vmem:[%s8 + $0xc] sm:$0xf]
  %v1935 = vunpack.c.l.b16 %v1927
  %v1936 = vunpack.c.l.b16 %v1928
  %v1937 = vunpack.c.l.b16 %v1929
  %v1938 = vunpack.c.l.b16 %v1930
  %v1939 = vpack.c.b16 %v1936, %v1935
  %v1940 = vpack.c.b16 %v1938, %v1937
  %v1944 = vsel %vm1894, %v1926, 0
  %1946 = vmatprep.subr.bf16.mxu0 0
  %1947 = vmatpush1.bf16.msra.mxu0 0
  %1948 = vmatprep.subr.bf16.mxu0 0
  %1949 = vmatpush1.bf16.msra.mxu0 0
  %1950 = vmatprep.subr.bf16.mxu0 0
  %1951 = vmatpush1.bf16.msra.mxu0 0
  %1952 = vmatprep.subr.bf16.mxu0 0
  %1953 = vmatpush1.bf16.msra.mxu0 0
  %1954 = vmatprep.subr.bf16.mxu0 0
  %1955 = vmatpush1.bf16.msra.mxu0 0
  %1956 = vmatprep.subr.bf16.mxu0 0
  %1957 = vmatpush1.bf16.msra.mxu0 0
  %1958 = vmatprep.subr.bf16.mxu0 0
  %1959 = vmatpush1.bf16.msra.mxu0 %v1940
  %1960 = vmatprep.subr.bf16.mxu0 0
  %1961 = vmatpush1.bf16.msra.mxu0 %v1939
  %1962 = vmatprep.subr.bf16.mxu0 0
  %1963 = vmatpush2.bf16.msra.mxu0 0
  %1964 = vmatprep.subr.bf16.mxu0 0
  %1965 = vmatpush2.bf16.msra.mxu0 0
  %1966 = vmatprep.subr.bf16.mxu0 0
  %1967 = vmatpush2.bf16.msra.mxu0 0
  %1968 = vmatprep.subr.bf16.mxu0 0
  %1969 = vmatpush2.bf16.msra.mxu0 0
  %1970 = vmatprep.subr.bf16.mxu0 0
  %1971 = vmatpush2.bf16.msra.mxu0 0
  %1972 = vmatprep.subr.bf16.mxu0 0
  %1973 = vmatpush2.bf16.msra.mxu0 0
  %1974 = vmatprep.subr.bf16.mxu0 0
  %1975 = vmatpush2.bf16.msra.mxu0 0
  %1976 = vmatprep.subr.bf16.mxu0 0
  %1977 = vmatpush2.bf16.msra.mxu0 0
  %1978 = vmatprep.mubr.bf16.mxu0 0
  %1979 = vmatmul.mubr.bf16.gmra.mxu0 %v1944
  %v1980 = vpop.f32.mrf.mxu0
  %v1981 = vadd.f32 0.0, %v1980
  %v1982 = vpop.f32.mrf.mxu0
  %v1983 = vpop.f32.mrf.mxu0
  %v1984 = vpop.f32.mrf.mxu0
  %1985 = vdwg.mxu0
  %vm1986 = vcmask 64512
  %1987 = vst.msk [vmem:[#allocation3] sm:$0xff] %vm1986, %v1981
  %s1988 = scalar_lea.vmem %s8, 16
  %v1989 = vld [vmem:[%s1988] sm:$0xf]
  %v1990 = vld [vmem:[%s1988 + $0x4] sm:$0xf]
  %v1991 = vld [vmem:[%s1988 + $0x8] sm:$0xf]
  %v1992 = vld [vmem:[%s1988 + $0xc] sm:$0xf]
  %v1997 = vunpack.c.l.b16 %v1989
  %v1998 = vunpack.c.l.b16 %v1990
  %v1999 = vunpack.c.l.b16 %v1991
  %v2000 = vunpack.c.l.b16 %v1992
  %v2001 = vpack.c.b16 %v1998, %v1997
  %v2002 = vpack.c.b16 %v2000, %v1999
  %2005 = vmatprep.subr.bf16.mxu0 0
  %2006 = vmatpush1.bf16.msra.mxu0 0
  %2007 = vmatprep.subr.bf16.mxu0 0
  %2008 = vmatpush1.bf16.msra.mxu0 0
  %2009 = vmatprep.subr.bf16.mxu0 0
  %2010 = vmatpush1.bf16.msra.mxu0 0
  %2011 = vmatprep.subr.bf16.mxu0 0
  %2012 = vmatpush1.bf16.msra.mxu0 0
  %2013 = vmatprep.subr.bf16.mxu0 0
  %2014 = vmatpush1.bf16.msra.mxu0 0
  %2015 = vmatprep.subr.bf16.mxu0 0
  %2016 = vmatpush1.bf16.msra.mxu0 0
  %2017 = vmatprep.subr.bf16.mxu0 0
  %2018 = vmatpush1.bf16.msra.mxu0 %v2002
  %2019 = vmatprep.subr.bf16.mxu0 0
  %2020 = vmatpush1.bf16.msra.mxu0 %v2001
  %2021 = vmatprep.subr.bf16.mxu0 0
  %2022 = vmatpush2.bf16.msra.mxu0 0
  %2023 = vmatprep.subr.bf16.mxu0 0
  %2024 = vmatpush2.bf16.msra.mxu0 0
  %2025 = vmatprep.subr.bf16.mxu0 0
  %2026 = vmatpush2.bf16.msra.mxu0 0
  %2027 = vmatprep.subr.bf16.mxu0 0
  %2028 = vmatpush2.bf16.msra.mxu0 0
  %2029 = vmatprep.subr.bf16.mxu0 0
  %2030 = vmatpush2.bf16.msra.mxu0 0
  %2031 = vmatprep.subr.bf16.mxu0 0
  %2032 = vmatpush2.bf16.msra.mxu0 0
  %2033 = vmatprep.subr.bf16.mxu0 0
  %2034 = vmatpush2.bf16.msra.mxu0 0
  %2035 = vmatprep.subr.bf16.mxu0 0
  %2036 = vmatpush2.bf16.msra.mxu0 0
  %2037 = vmatprep.mubr.bf16.mxu0 0
  %2038 = vmatmul.mubr.bf16.gmra.mxu0 %v1944
  %v2039 = vpop.f32.mrf.mxu0
  %v2040 = vadd.f32 0.0, %v2039
  %v2041 = vpop.f32.mrf.mxu0
  %v2042 = vpop.f32.mrf.mxu0
  %v2043 = vpop.f32.mrf.mxu0
  %2044 = vdwg.mxu0
  %2045 = vst.msk [vmem:[#allocation3 + $0x8] sm:$0xff] %vm1986, %v2040
  %s2046 = scalar_lea.vmem %s8, 32
  %v2047 = vld [vmem:[%s2046] sm:$0xf]
  %v2048 = vld [vmem:[%s2046 + $0x4] sm:$0xf]
  %v2049 = vld [vmem:[%s2046 + $0x8] sm:$0xf]
  %v2050 = vld [vmem:[%s2046 + $0xc] sm:$0xf]
  %v2055 = vunpack.c.l.b16 %v2047
  %v2056 = vunpack.c.l.b16 %v2048
  %v2057 = vunpack.c.l.b16 %v2049
  %v2058 = vunpack.c.l.b16 %v2050
  %v2059 = vpack.c.b16 %v2056, %v2055
  %v2060 = vpack.c.b16 %v2058, %v2057
  %2063 = vmatprep.subr.bf16.mxu0 0
  %2064 = vmatpush1.bf16.msra.mxu0 0
  %2065 = vmatprep.subr.bf16.mxu0 0
  %2066 = vmatpush1.bf16.msra.mxu0 0
  %2067 = vmatprep.subr.bf16.mxu0 0
  %2068 = vmatpush1.bf16.msra.mxu0 0
  %2069 = vmatprep.subr.bf16.mxu0 0
  %2070 = vmatpush1.bf16.msra.mxu0 0
  %2071 = vmatprep.subr.bf16.mxu0 0
  %2072 = vmatpush1.bf16.msra.mxu0 0
  %2073 = vmatprep.subr.bf16.mxu0 0
  %2074 = vmatpush1.bf16.msra.mxu0 0
  %2075 = vmatprep.subr.bf16.mxu0 0
  %2076 = vmatpush1.bf16.msra.mxu0 %v2060
  %2077 = vmatprep.subr.bf16.mxu0 0
  %2078 = vmatpush1.bf16.msra.mxu0 %v2059
  %2079 = vmatprep.subr.bf16.mxu0 0
  %2080 = vmatpush2.bf16.msra.mxu0 0
  %2081 = vmatprep.subr.bf16.mxu0 0
  %2082 = vmatpush2.bf16.msra.mxu0 0
  %2083 = vmatprep.subr.bf16.mxu0 0
  %2084 = vmatpush2.bf16.msra.mxu0 0
  %2085 = vmatprep.subr.bf16.mxu0 0
  %2086 = vmatpush2.bf16.msra.mxu0 0
  %2087 = vmatprep.subr.bf16.mxu0 0
  %2088 = vmatpush2.bf16.msra.mxu0 0
  %2089 = vmatprep.subr.bf16.mxu0 0
  %2090 = vmatpush2.bf16.msra.mxu0 0
  %2091 = vmatprep.subr.bf16.mxu0 0
  %2092 = vmatpush2.bf16.msra.mxu0 0
  %2093 = vmatprep.subr.bf16.mxu0 0
  %2094 = vmatpush2.bf16.msra.mxu0 0
  %2095 = vmatprep.mubr.bf16.mxu0 0
  %2096 = vmatmul.mubr.bf16.gmra.mxu0 %v1944
  %v2097 = vpop.f32.mrf.mxu0
  %v2098 = vadd.f32 0.0, %v2097
  %v2099 = vpop.f32.mrf.mxu0
  %v2100 = vpop.f32.mrf.mxu0
  %v2101 = vpop.f32.mrf.mxu0
  %2102 = vdwg.mxu0
  %2103 = vst.msk [vmem:[#allocation3 + $0x10] sm:$0xff] %vm1986, %v2098
  %s2104 = scalar_lea.vmem %s8, 48
  %v2105 = vld [vmem:[%s2104] sm:$0xf]
  %v2106 = vld [vmem:[%s2104 + $0x4] sm:$0xf]
  %v2107 = vld [vmem:[%s2104 + $0x8] sm:$0xf]
  %v2108 = vld [vmem:[%s2104 + $0xc] sm:$0xf]
  %v2113 = vunpack.c.l.b16 %v2105
  %v2114 = vunpack.c.l.b16 %v2106
  %v2115 = vunpack.c.l.b16 %v2107
  %v2116 = vunpack.c.l.b16 %v2108
  %v2117 = vpack.c.b16 %v2114, %v2113
  %v2118 = vpack.c.b16 %v2116, %v2115
  %2121 = vmatprep.subr.bf16.mxu0 0
  %2122 = vmatpush1.bf16.msra.mxu0 0
  %2123 = vmatprep.subr.bf16.mxu0 0
  %2124 = vmatpush1.bf16.msra.mxu0 0
  %2125 = vmatprep.subr.bf16.mxu0 0
  %2126 = vmatpush1.bf16.msra.mxu0 0
  %2127 = vmatprep.subr.bf16.mxu0 0
  %2128 = vmatpush1.bf16.msra.mxu0 0
  %2129 = vmatprep.subr.bf16.mxu0 0
  %2130 = vmatpush1.bf16.msra.mxu0 0
  %2131 = vmatprep.subr.bf16.mxu0 0
  %2132 = vmatpush1.bf16.msra.mxu0 0
  %2133 = vmatprep.subr.bf16.mxu0 0
  %2134 = vmatpush1.bf16.msra.mxu0 %v2118
  %2135 = vmatprep.subr.bf16.mxu0 0
  %2136 = vmatpush1.bf16.msra.mxu0 %v2117
  %2137 = vmatprep.subr.bf16.mxu0 0
  %2138 = vmatpush2.bf16.msra.mxu0 0
  %2139 = vmatprep.subr.bf16.mxu0 0
  %2140 = vmatpush2.bf16.msra.mxu0 0
  %2141 = vmatprep.subr.bf16.mxu0 0
  %2142 = vmatpush2.bf16.msra.mxu0 0
  %2143 = vmatprep.subr.bf16.mxu0 0
  %2144 = vmatpush2.bf16.msra.mxu0 0
  %2145 = vmatprep.subr.bf16.mxu0 0
  %2146 = vmatpush2.bf16.msra.mxu0 0
  %2147 = vmatprep.subr.bf16.mxu0 0
  %2148 = vmatpush2.bf16.msra.mxu0 0
  %2149 = vmatprep.subr.bf16.mxu0 0
  %2150 = vmatpush2.bf16.msra.mxu0 0
  %2151 = vmatprep.subr.bf16.mxu0 0
  %2152 = vmatpush2.bf16.msra.mxu0 0
  %2153 = vmatprep.mubr.bf16.mxu0 0
  %2154 = vmatmul.mubr.bf16.gmra.mxu0 %v1944
  %v2155 = vpop.f32.mrf.mxu0
  %v2156 = vadd.f32 0.0, %v2155
  %v2157 = vpop.f32.mrf.mxu0
  %v2158 = vpop.f32.mrf.mxu0
  %v2159 = vpop.f32.mrf.mxu0
  %2160 = vdwg.mxu0
  %2161 = vst.msk [vmem:[#allocation3 + $0x18] sm:$0xff] %vm1986, %v2156
  %s2162 = scalar_lea.vmem %s8, 64
  %v2163 = vld [vmem:[%s2162] sm:$0xf]
  %v2164 = vld [vmem:[%s2162 + $0x4] sm:$0xf]
  %v2165 = vld [vmem:[%s2162 + $0x8] sm:$0xf]
  %v2166 = vld [vmem:[%s2162 + $0xc] sm:$0xf]
  %v2171 = vunpack.c.l.b16 %v2163
  %v2172 = vunpack.c.l.b16 %v2164
  %v2173 = vunpack.c.l.b16 %v2165
  %v2174 = vunpack.c.l.b16 %v2166
  %v2175 = vpack.c.b16 %v2172, %v2171
  %v2176 = vpack.c.b16 %v2174, %v2173
  %2179 = vmatprep.subr.bf16.mxu0 0
  %2180 = vmatpush1.bf16.msra.mxu0 0
  %2181 = vmatprep.subr.bf16.mxu0 0
  %2182 = vmatpush1.bf16.msra.mxu0 0
  %2183 = vmatprep.subr.bf16.mxu0 0
  %2184 = vmatpush1.bf16.msra.mxu0 0
  %2185 = vmatprep.subr.bf16.mxu0 0
  %2186 = vmatpush1.bf16.msra.mxu0 0
  %2187 = vmatprep.subr.bf16.mxu0 0
  %2188 = vmatpush1.bf16.msra.mxu0 0
  %2189 = vmatprep.subr.bf16.mxu0 0
  %2190 = vmatpush1.bf16.msra.mxu0 0
  %2191 = vmatprep.subr.bf16.mxu0 0
  %2192 = vmatpush1.bf16.msra.mxu0 %v2176
  %2193 = vmatprep.subr.bf16.mxu0 0
  %2194 = vmatpush1.bf16.msra.mxu0 %v2175
  %2195 = vmatprep.subr.bf16.mxu0 0
  %2196 = vmatpush2.bf16.msra.mxu0 0
  %2197 = vmatprep.subr.bf16.mxu0 0
  %2198 = vmatpush2.bf16.msra.mxu0 0
  %2199 = vmatprep.subr.bf16.mxu0 0
  %2200 = vmatpush2.bf16.msra.mxu0 0
  %2201 = vmatprep.subr.bf16.mxu0 0
  %2202 = vmatpush2.bf16.msra.mxu0 0
  %2203 = vmatprep.subr.bf16.mxu0 0
  %2204 = vmatpush2.bf16.msra.mxu0 0
  %2205 = vmatprep.subr.bf16.mxu0 0
  %2206 = vmatpush2.bf16.msra.mxu0 0
  %2207 = vmatprep.subr.bf16.mxu0 0
  %2208 = vmatpush2.bf16.msra.mxu0 0
  %2209 = vmatprep.subr.bf16.mxu0 0
  %2210 = vmatpush2.bf16.msra.mxu0 0
  %2211 = vmatprep.mubr.bf16.mxu0 0
  %2212 = vmatmul.mubr.bf16.gmra.mxu0 %v1944
  %v2213 = vpop.f32.mrf.mxu0
  %v2214 = vadd.f32 0.0, %v2213
  %v2215 = vpop.f32.mrf.mxu0
  %v2216 = vpop.f32.mrf.mxu0
  %v2217 = vpop.f32.mrf.mxu0
  %2218 = vdwg.mxu0
  %2219 = vst.msk [vmem:[#allocation3 + $0x20] sm:$0xff] %vm1986, %v2214
  %s2220 = scalar_lea.vmem %s8, 80
  %v2221 = vld [vmem:[%s2220] sm:$0xf]
  %v2222 = vld [vmem:[%s2220 + $0x4] sm:$0xf]
  %v2223 = vld [vmem:[%s2220 + $0x8] sm:$0xf]
  %v2224 = vld [vmem:[%s2220 + $0xc] sm:$0xf]
  %v2229 = vunpack.c.l.b16 %v2221
  %v2230 = vunpack.c.l.b16 %v2222
  %v2231 = vunpack.c.l.b16 %v2223
  %v2232 = vunpack.c.l.b16 %v2224
  %v2233 = vpack.c.b16 %v2230, %v2229
  %v2234 = vpack.c.b16 %v2232, %v2231
  %2237 = vmatprep.subr.bf16.mxu0 0
  %2238 = vmatpush1.bf16.msra.mxu0 0
  %2239 = vmatprep.subr.bf16.mxu0 0
  %2240 = vmatpush1.bf16.msra.mxu0 0
  %2241 = vmatprep.subr.bf16.mxu0 0
  %2242 = vmatpush1.bf16.msra.mxu0 0
  %2243 = vmatprep.subr.bf16.mxu0 0
  %2244 = vmatpush1.bf16.msra.mxu0 0
  %2245 = vmatprep.subr.bf16.mxu0 0
  %2246 = vmatpush1.bf16.msra.mxu0 0
  %2247 = vmatprep.subr.bf16.mxu0 0
  %2248 = vmatpush1.bf16.msra.mxu0 0
  %2249 = vmatprep.subr.bf16.mxu0 0
  %2250 = vmatpush1.bf16.msra.mxu0 %v2234
  %2251 = vmatprep.subr.bf16.mxu0 0
  %2252 = vmatpush1.bf16.msra.mxu0 %v2233
  %2253 = vmatprep.subr.bf16.mxu0 0
  %2254 = vmatpush2.bf16.msra.mxu0 0
  %2255 = vmatprep.subr.bf16.mxu0 0
  %2256 = vmatpush2.bf16.msra.mxu0 0
  %2257 = vmatprep.subr.bf16.mxu0 0
  %2258 = vmatpush2.bf16.msra.mxu0 0
  %2259 = vmatprep.subr.bf16.mxu0 0
  %2260 = vmatpush2.bf16.msra.mxu0 0
  %2261 = vmatprep.subr.bf16.mxu0 0
  %2262 = vmatpush2.bf16.msra.mxu0 0
  %2263 = vmatprep.subr.bf16.mxu0 0
  %2264 = vmatpush2.bf16.msra.mxu0 0
  %2265 = vmatprep.subr.bf16.mxu0 0
  %2266 = vmatpush2.bf16.msra.mxu0 0
  %2267 = vmatprep.subr.bf16.mxu0 0
  %2268 = vmatpush2.bf16.msra.mxu0 0
  %2269 = vmatprep.mubr.bf16.mxu0 0
  %2270 = vmatmul.mubr.bf16.gmra.mxu0 %v1944
  %v2271 = vpop.f32.mrf.mxu0
  %v2272 = vadd.f32 0.0, %v2271
  %v2273 = vpop.f32.mrf.mxu0
  %v2274 = vpop.f32.mrf.mxu0
  %v2275 = vpop.f32.mrf.mxu0
  %2276 = vdwg.mxu0
  %2277 = vst.msk [vmem:[#allocation3 + $0x28] sm:$0xff] %vm1986, %v2272
  %s2278 = scalar_lea.vmem %s8, 96
  %v2279 = vld [vmem:[%s2278] sm:$0xf]
  %v2280 = vld [vmem:[%s2278 + $0x4] sm:$0xf]
  %v2281 = vld [vmem:[%s2278 + $0x8] sm:$0xf]
  %v2282 = vld [vmem:[%s2278 + $0xc] sm:$0xf]
  %v2287 = vunpack.c.l.b16 %v2279
  %v2288 = vunpack.c.l.b16 %v2280
  %v2289 = vunpack.c.l.b16 %v2281
  %v2290 = vunpack.c.l.b16 %v2282
  %v2291 = vpack.c.b16 %v2288, %v2287
  %v2292 = vpack.c.b16 %v2290, %v2289
  %2295 = vmatprep.subr.bf16.mxu0 0
  %2296 = vmatpush1.bf16.msra.mxu0 0
  %2297 = vmatprep.subr.bf16.mxu0 0
  %2298 = vmatpush1.bf16.msra.mxu0 0
  %2299 = vmatprep.subr.bf16.mxu0 0
  %2300 = vmatpush1.bf16.msra.mxu0 0
  %2301 = vmatprep.subr.bf16.mxu0 0
  %2302 = vmatpush1.bf16.msra.mxu0 0
  %2303 = vmatprep.subr.bf16.mxu0 0
  %2304 = vmatpush1.bf16.msra.mxu0 0
  %2305 = vmatprep.subr.bf16.mxu0 0
  %2306 = vmatpush1.bf16.msra.mxu0 0
  %2307 = vmatprep.subr.bf16.mxu0 0
  %2308 = vmatpush1.bf16.msra.mxu0 %v2292
  %2309 = vmatprep.subr.bf16.mxu0 0
  %2310 = vmatpush1.bf16.msra.mxu0 %v2291
  %2311 = vmatprep.subr.bf16.mxu0 0
  %2312 = vmatpush2.bf16.msra.mxu0 0
  %2313 = vmatprep.subr.bf16.mxu0 0
  %2314 = vmatpush2.bf16.msra.mxu0 0
  %2315 = vmatprep.subr.bf16.mxu0 0
  %2316 = vmatpush2.bf16.msra.mxu0 0
  %2317 = vmatprep.subr.bf16.mxu0 0
  %2318 = vmatpush2.bf16.msra.mxu0 0
  %2319 = vmatprep.subr.bf16.mxu0 0
  %2320 = vmatpush2.bf16.msra.mxu0 0
  %2321 = vmatprep.subr.bf16.mxu0 0
  %2322 = vmatpush2.bf16.msra.mxu0 0
  %2323 = vmatprep.subr.bf16.mxu0 0
  %2324 = vmatpush2.bf16.msra.mxu0 0
  %2325 = vmatprep.subr.bf16.mxu0 0
  %2326 = vmatpush2.bf16.msra.mxu0 0
  %2327 = vmatprep.mubr.bf16.mxu0 0
  %2328 = vmatmul.mubr.bf16.gmra.mxu0 %v1944
  %v2329 = vpop.f32.mrf.mxu0
  %v2330 = vadd.f32 0.0, %v2329
  %v2331 = vpop.f32.mrf.mxu0
  %v2332 = vpop.f32.mrf.mxu0
  %v2333 = vpop.f32.mrf.mxu0
  %2334 = vdwg.mxu0
  %2335 = vst.msk [vmem:[#allocation3 + $0x30] sm:$0xff] %vm1986, %v2330
  %s2336 = scalar_lea.vmem %s8, 112
  %v2337 = vld [vmem:[%s2336] sm:$0xf]
  %v2338 = vld [vmem:[%s2336 + $0x4] sm:$0xf]
  %v2339 = vld [vmem:[%s2336 + $0x8] sm:$0xf]
  %v2340 = vld [vmem:[%s2336 + $0xc] sm:$0xf]
  %v2345 = vunpack.c.l.b16 %v2337
  %v2346 = vunpack.c.l.b16 %v2338
  %v2347 = vunpack.c.l.b16 %v2339
  %v2348 = vunpack.c.l.b16 %v2340
  %v2349 = vpack.c.b16 %v2346, %v2345
  %v2350 = vpack.c.b16 %v2348, %v2347
  %2353 = vmatprep.subr.bf16.mxu0 0
  %2354 = vmatpush1.bf16.msra.mxu0 0
  %2355 = vmatprep.subr.bf16.mxu0 0
  %2356 = vmatpush1.bf16.msra.mxu0 0
  %2357 = vmatprep.subr.bf16.mxu0 0
  %2358 = vmatpush1.bf16.msra.mxu0 0
  %2359 = vmatprep.subr.bf16.mxu0 0
  %2360 = vmatpush1.bf16.msra.mxu0 0
  %2361 = vmatprep.subr.bf16.mxu0 0
  %2362 = vmatpush1.bf16.msra.mxu0 0
  %2363 = vmatprep.subr.bf16.mxu0 0
  %2364 = vmatpush1.bf16.msra.mxu0 0
  %2365 = vmatprep.subr.bf16.mxu0 0
  %2366 = vmatpush1.bf16.msra.mxu0 %v2350
  %2367 = vmatprep.subr.bf16.mxu0 0
  %2368 = vmatpush1.bf16.msra.mxu0 %v2349
  %2369 = vmatprep.subr.bf16.mxu0 0
  %2370 = vmatpush2.bf16.msra.mxu0 0
  %2371 = vmatprep.subr.bf16.mxu0 0
  %2372 = vmatpush2.bf16.msra.mxu0 0
  %2373 = vmatprep.subr.bf16.mxu0 0
  %2374 = vmatpush2.bf16.msra.mxu0 0
  %2375 = vmatprep.subr.bf16.mxu0 0
  %2376 = vmatpush2.bf16.msra.mxu0 0
  %2377 = vmatprep.subr.bf16.mxu0 0
  %2378 = vmatpush2.bf16.msra.mxu0 0
  %2379 = vmatprep.subr.bf16.mxu0 0
  %2380 = vmatpush2.bf16.msra.mxu0 0
  %2381 = vmatprep.subr.bf16.mxu0 0
  %2382 = vmatpush2.bf16.msra.mxu0 0
  %2383 = vmatprep.subr.bf16.mxu0 0
  %2384 = vmatpush2.bf16.msra.mxu0 0
  %2385 = vmatprep.mubr.bf16.mxu0 0
  %2386 = vmatmul.mubr.bf16.gmra.mxu0 %v1944
  %v2387 = vpop.f32.mrf.mxu0
  %v2388 = vadd.f32 0.0, %v2387
  %v2389 = vpop.f32.mrf.mxu0
  %v2390 = vpop.f32.mrf.mxu0
  %v2391 = vpop.f32.mrf.mxu0
  %2392 = vdwg.mxu0
  %2393 = vst.msk [vmem:[#allocation3 + $0x38] sm:$0xff] %vm1986, %v2388
  %s2394 = scalar_lea.vmem %s8, 128
  %v2395 = vld [vmem:[%s2394] sm:$0xf]
  %v2396 = vld [vmem:[%s2394 + $0x4] sm:$0xf]
  %v2397 = vld [vmem:[%s2394 + $0x8] sm:$0xf]
  %v2398 = vld [vmem:[%s2394 + $0xc] sm:$0xf]
  %v2403 = vunpack.c.l.b16 %v2395
  %v2404 = vunpack.c.l.b16 %v2396
  %v2405 = vunpack.c.l.b16 %v2397
  %v2406 = vunpack.c.l.b16 %v2398
  %v2407 = vpack.c.b16 %v2404, %v2403
  %v2408 = vpack.c.b16 %v2406, %v2405
  %2411 = vmatprep.subr.bf16.mxu0 0
  %2412 = vmatpush1.bf16.msra.mxu0 0
  %2413 = vmatprep.subr.bf16.mxu0 0
  %2414 = vmatpush1.bf16.msra.mxu0 0
  %2415 = vmatprep.subr.bf16.mxu0 0
  %2416 = vmatpush1.bf16.msra.mxu0 0
  %2417 = vmatprep.subr.bf16.mxu0 0
  %2418 = vmatpush1.bf16.msra.mxu0 0
  %2419 = vmatprep.subr.bf16.mxu0 0
  %2420 = vmatpush1.bf16.msra.mxu0 0
  %2421 = vmatprep.subr.bf16.mxu0 0
  %2422 = vmatpush1.bf16.msra.mxu0 0
  %2423 = vmatprep.subr.bf16.mxu0 0
  %2424 = vmatpush1.bf16.msra.mxu0 %v2408
  %2425 = vmatprep.subr.bf16.mxu0 0
  %2426 = vmatpush1.bf16.msra.mxu0 %v2407
  %2427 = vmatprep.subr.bf16.mxu0 0
  %2428 = vmatpush2.bf16.msra.mxu0 0
  %2429 = vmatprep.subr.bf16.mxu0 0
  %2430 = vmatpush2.bf16.msra.mxu0 0
  %2431 = vmatprep.subr.bf16.mxu0 0
  %2432 = vmatpush2.bf16.msra.mxu0 0
  %2433 = vmatprep.subr.bf16.mxu0 0
  %2434 = vmatpush2.bf16.msra.mxu0 0
  %2435 = vmatprep.subr.bf16.mxu0 0
  %2436 = vmatpush2.bf16.msra.mxu0 0
  %2437 = vmatprep.subr.bf16.mxu0 0
  %2438 = vmatpush2.bf16.msra.mxu0 0
  %2439 = vmatprep.subr.bf16.mxu0 0
  %2440 = vmatpush2.bf16.msra.mxu0 0
  %2441 = vmatprep.subr.bf16.mxu0 0
  %2442 = vmatpush2.bf16.msra.mxu0 0
  %2443 = vmatprep.mubr.bf16.mxu0 0
  %2444 = vmatmul.mubr.bf16.gmra.mxu0 %v1944
  %v2445 = vpop.f32.mrf.mxu0
  %v2446 = vadd.f32 0.0, %v2445
  %v2447 = vpop.f32.mrf.mxu0
  %v2448 = vpop.f32.mrf.mxu0
  %v2449 = vpop.f32.mrf.mxu0
  %2450 = vdwg.mxu0
  %2451 = vst.msk [vmem:[#allocation3 + $0x40] sm:$0xff] %vm1986, %v2446
  %s2452 = scalar_lea.vmem %s8, 144
  %v2453 = vld [vmem:[%s2452] sm:$0xf]
  %v2454 = vld [vmem:[%s2452 + $0x4] sm:$0xf]
  %v2455 = vld [vmem:[%s2452 + $0x8] sm:$0xf]
  %v2456 = vld [vmem:[%s2452 + $0xc] sm:$0xf]
  %v2461 = vunpack.c.l.b16 %v2453
  %v2462 = vunpack.c.l.b16 %v2454
  %v2463 = vunpack.c.l.b16 %v2455
  %v2464 = vunpack.c.l.b16 %v2456
  %v2465 = vpack.c.b16 %v2462, %v2461
  %v2466 = vpack.c.b16 %v2464, %v2463
  %2469 = vmatprep.subr.bf16.mxu0 0
  %2470 = vmatpush1.bf16.msra.mxu0 0
  %2471 = vmatprep.subr.bf16.mxu0 0
  %2472 = vmatpush1.bf16.msra.mxu0 0
  %2473 = vmatprep.subr.bf16.mxu0 0
  %2474 = vmatpush1.bf16.msra.mxu0 0
  %2475 = vmatprep.subr.bf16.mxu0 0
  %2476 = vmatpush1.bf16.msra.mxu0 0
  %2477 = vmatprep.subr.bf16.mxu0 0
  %2478 = vmatpush1.bf16.msra.mxu0 0
  %2479 = vmatprep.subr.bf16.mxu0 0
  %2480 = vmatpush1.bf16.msra.mxu0 0
  %2481 = vmatprep.subr.bf16.mxu0 0
  %2482 = vmatpush1.bf16.msra.mxu0 %v2466
  %2483 = vmatprep.subr.bf16.mxu0 0
  %2484 = vmatpush1.bf16.msra.mxu0 %v2465
  %2485 = vmatprep.subr.bf16.mxu0 0
  %2486 = vmatpush2.bf16.msra.mxu0 0
  %2487 = vmatprep.subr.bf16.mxu0 0
  %2488 = vmatpush2.bf16.msra.mxu0 0
  %2489 = vmatprep.subr.bf16.mxu0 0
  %2490 = vmatpush2.bf16.msra.mxu0 0
  %2491 = vmatprep.subr.bf16.mxu0 0
  %2492 = vmatpush2.bf16.msra.mxu0 0
  %2493 = vmatprep.subr.bf16.mxu0 0
  %2494 = vmatpush2.bf16.msra.mxu0 0
  %2495 = vmatprep.subr.bf16.mxu0 0
  %2496 = vmatpush2.bf16.msra.mxu0 0
  %2497 = vmatprep.subr.bf16.mxu0 0
  %2498 = vmatpush2.bf16.msra.mxu0 0
  %2499 = vmatprep.subr.bf16.mxu0 0
  %2500 = vmatpush2.bf16.msra.mxu0 0
  %2501 = vmatprep.mubr.bf16.mxu0 0
  %2502 = vmatmul.mubr.bf16.gmra.mxu0 %v1944
  %v2503 = vpop.f32.mrf.mxu0
  %v2504 = vadd.f32 0.0, %v2503
  %v2505 = vpop.f32.mrf.mxu0
  %v2506 = vpop.f32.mrf.mxu0
  %v2507 = vpop.f32.mrf.mxu0
  %2508 = vdwg.mxu0
  %2509 = vst.msk [vmem:[#allocation3 + $0x48] sm:$0xff] %vm1986, %v2504
  %s2510 = scalar_lea.vmem %s8, 160
  %v2511 = vld [vmem:[%s2510] sm:$0xf]
  %v2512 = vld [vmem:[%s2510 + $0x4] sm:$0xf]
  %v2513 = vld [vmem:[%s2510 + $0x8] sm:$0xf]
  %v2514 = vld [vmem:[%s2510 + $0xc] sm:$0xf]
  %v2519 = vunpack.c.l.b16 %v2511
  %v2520 = vunpack.c.l.b16 %v2512
  %v2521 = vunpack.c.l.b16 %v2513
  %v2522 = vunpack.c.l.b16 %v2514
  %v2523 = vpack.c.b16 %v2520, %v2519
  %v2524 = vpack.c.b16 %v2522, %v2521
  %2527 = vmatprep.subr.bf16.mxu0 0
  %2528 = vmatpush1.bf16.msra.mxu0 0
  %2529 = vmatprep.subr.bf16.mxu0 0
  %2530 = vmatpush1.bf16.msra.mxu0 0
  %2531 = vmatprep.subr.bf16.mxu0 0
  %2532 = vmatpush1.bf16.msra.mxu0 0
  %2533 = vmatprep.subr.bf16.mxu0 0
  %2534 = vmatpush1.bf16.msra.mxu0 0
  %2535 = vmatprep.subr.bf16.mxu0 0
  %2536 = vmatpush1.bf16.msra.mxu0 0
  %2537 = vmatprep.subr.bf16.mxu0 0
  %2538 = vmatpush1.bf16.msra.mxu0 0
  %2539 = vmatprep.subr.bf16.mxu0 0
  %2540 = vmatpush1.bf16.msra.mxu0 %v2524
  %2541 = vmatprep.subr.bf16.mxu0 0
  %2542 = vmatpush1.bf16.msra.mxu0 %v2523
  %2543 = vmatprep.subr.bf16.mxu0 0
  %2544 = vmatpush2.bf16.msra.mxu0 0
  %2545 = vmatprep.subr.bf16.mxu0 0
  %2546 = vmatpush2.bf16.msra.mxu0 0
  %2547 = vmatprep.subr.bf16.mxu0 0
  %2548 = vmatpush2.bf16.msra.mxu0 0
  %2549 = vmatprep.subr.bf16.mxu0 0
  %2550 = vmatpush2.bf16.msra.mxu0 0
  %2551 = vmatprep.subr.bf16.mxu0 0
  %2552 = vmatpush2.bf16.msra.mxu0 0
  %2553 = vmatprep.subr.bf16.mxu0 0
  %2554 = vmatpush2.bf16.msra.mxu0 0
  %2555 = vmatprep.subr.bf16.mxu0 0
  %2556 = vmatpush2.bf16.msra.mxu0 0
  %2557 = vmatprep.subr.bf16.mxu0 0
  %2558 = vmatpush2.bf16.msra.mxu0 0
  %2559 = vmatprep.mubr.bf16.mxu0 0
  %2560 = vmatmul.mubr.bf16.gmra.mxu0 %v1944
  %v2561 = vpop.f32.mrf.mxu0
  %v2562 = vadd.f32 0.0, %v2561
  %v2563 = vpop.f32.mrf.mxu0
  %v2564 = vpop.f32.mrf.mxu0
  %v2565 = vpop.f32.mrf.mxu0
  %2566 = vdwg.mxu0
  %2567 = vst.msk [vmem:[#allocation3 + $0x50] sm:$0xff] %vm1986, %v2562
  %s2568 = scalar_lea.vmem %s8, 176
  %v2569 = vld [vmem:[%s2568] sm:$0xf]
  %v2570 = vld [vmem:[%s2568 + $0x4] sm:$0xf]
  %v2571 = vld [vmem:[%s2568 + $0x8] sm:$0xf]
  %v2572 = vld [vmem:[%s2568 + $0xc] sm:$0xf]
  %v2577 = vunpack.c.l.b16 %v2569
  %v2578 = vunpack.c.l.b16 %v2570
  %v2579 = vunpack.c.l.b16 %v2571
  %v2580 = vunpack.c.l.b16 %v2572
  %v2581 = vpack.c.b16 %v2578, %v2577
  %v2582 = vpack.c.b16 %v2580, %v2579
  %2585 = vmatprep.subr.bf16.mxu0 0
  %2586 = vmatpush1.bf16.msra.mxu0 0
  %2587 = vmatprep.subr.bf16.mxu0 0
  %2588 = vmatpush1.bf16.msra.mxu0 0
  %2589 = vmatprep.subr.bf16.mxu0 0
  %2590 = vmatpush1.bf16.msra.mxu0 0
  %2591 = vmatprep.subr.bf16.mxu0 0
  %2592 = vmatpush1.bf16.msra.mxu0 0
  %2593 = vmatprep.subr.bf16.mxu0 0
  %2594 = vmatpush1.bf16.msra.mxu0 0
  %2595 = vmatprep.subr.bf16.mxu0 0
  %2596 = vmatpush1.bf16.msra.mxu0 0
  %2597 = vmatprep.subr.bf16.mxu0 0
  %2598 = vmatpush1.bf16.msra.mxu0 %v2582
  %2599 = vmatprep.subr.bf16.mxu0 0
  %2600 = vmatpush1.bf16.msra.mxu0 %v2581
  %2601 = vmatprep.subr.bf16.mxu0 0
  %2602 = vmatpush2.bf16.msra.mxu0 0
  %2603 = vmatprep.subr.bf16.mxu0 0
  %2604 = vmatpush2.bf16.msra.mxu0 0
  %2605 = vmatprep.subr.bf16.mxu0 0
  %2606 = vmatpush2.bf16.msra.mxu0 0
  %2607 = vmatprep.subr.bf16.mxu0 0
  %2608 = vmatpush2.bf16.msra.mxu0 0
  %2609 = vmatprep.subr.bf16.mxu0 0
  %2610 = vmatpush2.bf16.msra.mxu0 0
  %2611 = vmatprep.subr.bf16.mxu0 0
  %2612 = vmatpush2.bf16.msra.mxu0 0
  %2613 = vmatprep.subr.bf16.mxu0 0
  %2614 = vmatpush2.bf16.msra.mxu0 0
  %2615 = vmatprep.subr.bf16.mxu0 0
  %2616 = vmatpush2.bf16.msra.mxu0 0
  %2617 = vmatprep.mubr.bf16.mxu0 0
  %2618 = vmatmul.mubr.bf16.gmra.mxu0 %v1944
  %v2619 = vpop.f32.mrf.mxu0
  %v2620 = vadd.f32 0.0, %v2619
  %v2621 = vpop.f32.mrf.mxu0
  %v2622 = vpop.f32.mrf.mxu0
  %v2623 = vpop.f32.mrf.mxu0
  %2624 = vdwg.mxu0
  %2625 = vst.msk [vmem:[#allocation3 + $0x58] sm:$0xff] %vm1986, %v2620
  %s2626 = scalar_lea.vmem %s8, 192
  %v2627 = vld [vmem:[%s2626] sm:$0xf]
  %v2628 = vld [vmem:[%s2626 + $0x4] sm:$0xf]
  %v2629 = vld [vmem:[%s2626 + $0x8] sm:$0xf]
  %v2630 = vld [vmem:[%s2626 + $0xc] sm:$0xf]
  %v2635 = vunpack.c.l.b16 %v2627
  %v2636 = vunpack.c.l.b16 %v2628
  %v2637 = vunpack.c.l.b16 %v2629
  %v2638 = vunpack.c.l.b16 %v2630
  %v2639 = vpack.c.b16 %v2636, %v2635
  %v2640 = vpack.c.b16 %v2638, %v2637
  %2643 = vmatprep.subr.bf16.mxu0 0
  %2644 = vmatpush1.bf16.msra.mxu0 0
  %2645 = vmatprep.subr.bf16.mxu0 0
  %2646 = vmatpush1.bf16.msra.mxu0 0
  %2647 = vmatprep.subr.bf16.mxu0 0
  %2648 = vmatpush1.bf16.msra.mxu0 0
  %2649 = vmatprep.subr.bf16.mxu0 0
  %2650 = vmatpush1.bf16.msra.mxu0 0
  %2651 = vmatprep.subr.bf16.mxu0 0
  %2652 = vmatpush1.bf16.msra.mxu0 0
  %2653 = vmatprep.subr.bf16.mxu0 0
  %2654 = vmatpush1.bf16.msra.mxu0 0
  %2655 = vmatprep.subr.bf16.mxu0 0
  %2656 = vmatpush1.bf16.msra.mxu0 %v2640
  %2657 = vmatprep.subr.bf16.mxu0 0
  %2658 = vmatpush1.bf16.msra.mxu0 %v2639
  %2659 = vmatprep.subr.bf16.mxu0 0
  %2660 = vmatpush2.bf16.msra.mxu0 0
  %2661 = vmatprep.subr.bf16.mxu0 0
  %2662 = vmatpush2.bf16.msra.mxu0 0
  %2663 = vmatprep.subr.bf16.mxu0 0
  %2664 = vmatpush2.bf16.msra.mxu0 0
  %2665 = vmatprep.subr.bf16.mxu0 0
  %2666 = vmatpush2.bf16.msra.mxu0 0
  %2667 = vmatprep.subr.bf16.mxu0 0
  %2668 = vmatpush2.bf16.msra.mxu0 0
  %2669 = vmatprep.subr.bf16.mxu0 0
  %2670 = vmatpush2.bf16.msra.mxu0 0
  %2671 = vmatprep.subr.bf16.mxu0 0
  %2672 = vmatpush2.bf16.msra.mxu0 0
  %2673 = vmatprep.subr.bf16.mxu0 0
  %2674 = vmatpush2.bf16.msra.mxu0 0
  %2675 = vmatprep.mubr.bf16.mxu0 0
  %2676 = vmatmul.mubr.bf16.gmra.mxu0 %v1944
  %v2677 = vpop.f32.mrf.mxu0
  %v2678 = vadd.f32 0.0, %v2677
  %v2679 = vpop.f32.mrf.mxu0
  %v2680 = vpop.f32.mrf.mxu0
  %v2681 = vpop.f32.mrf.mxu0
  %2682 = vdwg.mxu0
  %2683 = vst.msk [vmem:[#allocation3 + $0x60] sm:$0xff] %vm1986, %v2678
  %s2684 = scalar_lea.vmem %s8, 208
  %v2685 = vld [vmem:[%s2684] sm:$0xf]
  %v2686 = vld [vmem:[%s2684 + $0x4] sm:$0xf]
  %v2687 = vld [vmem:[%s2684 + $0x8] sm:$0xf]
  %v2688 = vld [vmem:[%s2684 + $0xc] sm:$0xf]
  %v2693 = vunpack.c.l.b16 %v2685
  %v2694 = vunpack.c.l.b16 %v2686
  %v2695 = vunpack.c.l.b16 %v2687
  %v2696 = vunpack.c.l.b16 %v2688
  %v2697 = vpack.c.b16 %v2694, %v2693
  %v2698 = vpack.c.b16 %v2696, %v2695
  %2701 = vmatprep.subr.bf16.mxu0 0
  %2702 = vmatpush1.bf16.msra.mxu0 0
  %2703 = vmatprep.subr.bf16.mxu0 0
  %2704 = vmatpush1.bf16.msra.mxu0 0
  %2705 = vmatprep.subr.bf16.mxu0 0
  %2706 = vmatpush1.bf16.msra.mxu0 0
  %2707 = vmatprep.subr.bf16.mxu0 0
  %2708 = vmatpush1.bf16.msra.mxu0 0
  %2709 = vmatprep.subr.bf16.mxu0 0
  %2710 = vmatpush1.bf16.msra.mxu0 0
  %2711 = vmatprep.subr.bf16.mxu0 0
  %2712 = vmatpush1.bf16.msra.mxu0 0
  %2713 = vmatprep.subr.bf16.mxu0 0
  %2714 = vmatpush1.bf16.msra.mxu0 %v2698
  %2715 = vmatprep.subr.bf16.mxu0 0
  %2716 = vmatpush1.bf16.msra.mxu0 %v2697
  %2717 = vmatprep.subr.bf16.mxu0 0
  %2718 = vmatpush2.bf16.msra.mxu0 0
  %2719 = vmatprep.subr.bf16.mxu0 0
  %2720 = vmatpush2.bf16.msra.mxu0 0
  %2721 = vmatprep.subr.bf16.mxu0 0
  %2722 = vmatpush2.bf16.msra.mxu0 0
  %2723 = vmatprep.subr.bf16.mxu0 0
  %2724 = vmatpush2.bf16.msra.mxu0 0
  %2725 = vmatprep.subr.bf16.mxu0 0
  %2726 = vmatpush2.bf16.msra.mxu0 0
  %2727 = vmatprep.subr.bf16.mxu0 0
  %2728 = vmatpush2.bf16.msra.mxu0 0
  %2729 = vmatprep.subr.bf16.mxu0 0
  %2730 = vmatpush2.bf16.msra.mxu0 0
  %2731 = vmatprep.subr.bf16.mxu0 0
  %2732 = vmatpush2.bf16.msra.mxu0 0
  %2733 = vmatprep.mubr.bf16.mxu0 0
  %2734 = vmatmul.mubr.bf16.gmra.mxu0 %v1944
  %v2735 = vpop.f32.mrf.mxu0
  %v2736 = vadd.f32 0.0, %v2735
  %v2737 = vpop.f32.mrf.mxu0
  %v2738 = vpop.f32.mrf.mxu0
  %v2739 = vpop.f32.mrf.mxu0
  %2740 = vdwg.mxu0
  %2741 = vst.msk [vmem:[#allocation3 + $0x68] sm:$0xff] %vm1986, %v2736
  %s2742 = scalar_lea.vmem %s8, 224
  %v2743 = vld [vmem:[%s2742] sm:$0xf]
  %v2744 = vld [vmem:[%s2742 + $0x4] sm:$0xf]
  %v2745 = vld [vmem:[%s2742 + $0x8] sm:$0xf]
  %v2746 = vld [vmem:[%s2742 + $0xc] sm:$0xf]
  %v2751 = vunpack.c.l.b16 %v2743
  %v2752 = vunpack.c.l.b16 %v2744
  %v2753 = vunpack.c.l.b16 %v2745
  %v2754 = vunpack.c.l.b16 %v2746
  %v2755 = vpack.c.b16 %v2752, %v2751
  %v2756 = vpack.c.b16 %v2754, %v2753
  %2759 = vmatprep.subr.bf16.mxu0 0
  %2760 = vmatpush1.bf16.msra.mxu0 0
  %2761 = vmatprep.subr.bf16.mxu0 0
  %2762 = vmatpush1.bf16.msra.mxu0 0
  %2763 = vmatprep.subr.bf16.mxu0 0
  %2764 = vmatpush1.bf16.msra.mxu0 0
  %2765 = vmatprep.subr.bf16.mxu0 0
  %2766 = vmatpush1.bf16.msra.mxu0 0
  %2767 = vmatprep.subr.bf16.mxu0 0
  %2768 = vmatpush1.bf16.msra.mxu0 0
  %2769 = vmatprep.subr.bf16.mxu0 0
  %2770 = vmatpush1.bf16.msra.mxu0 0
  %2771 = vmatprep.subr.bf16.mxu0 0
  %2772 = vmatpush1.bf16.msra.mxu0 %v2756
  %2773 = vmatprep.subr.bf16.mxu0 0
  %2774 = vmatpush1.bf16.msra.mxu0 %v2755
  %2775 = vmatprep.subr.bf16.mxu0 0
  %2776 = vmatpush2.bf16.msra.mxu0 0
  %2777 = vmatprep.subr.bf16.mxu0 0
  %2778 = vmatpush2.bf16.msra.mxu0 0
  %2779 = vmatprep.subr.bf16.mxu0 0
  %2780 = vmatpush2.bf16.msra.mxu0 0
  %2781 = vmatprep.subr.bf16.mxu0 0
  %2782 = vmatpush2.bf16.msra.mxu0 0
  %2783 = vmatprep.subr.bf16.mxu0 0
  %2784 = vmatpush2.bf16.msra.mxu0 0
  %2785 = vmatprep.subr.bf16.mxu0 0
  %2786 = vmatpush2.bf16.msra.mxu0 0
  %2787 = vmatprep.subr.bf16.mxu0 0
  %2788 = vmatpush2.bf16.msra.mxu0 0
  %2789 = vmatprep.subr.bf16.mxu0 0
  %2790 = vmatpush2.bf16.msra.mxu0 0
  %2791 = vmatprep.mubr.bf16.mxu0 0
  %2792 = vmatmul.mubr.bf16.gmra.mxu0 %v1944
  %v2793 = vpop.f32.mrf.mxu0
  %v2794 = vadd.f32 0.0, %v2793
  %v2795 = vpop.f32.mrf.mxu0
  %v2796 = vpop.f32.mrf.mxu0
  %v2797 = vpop.f32.mrf.mxu0
  %2798 = vdwg.mxu0
  %2799 = vst.msk [vmem:[#allocation3 + $0x70] sm:$0xff] %vm1986, %v2794
  %s2800 = scalar_lea.vmem %s8, 240
  %v2801 = vld [vmem:[%s2800] sm:$0xf]
  %v2802 = vld [vmem:[%s2800 + $0x4] sm:$0xf]
  %v2803 = vld [vmem:[%s2800 + $0x8] sm:$0xf]
  %v2804 = vld [vmem:[%s2800 + $0xc] sm:$0xf]
  %v2809 = vunpack.c.l.b16 %v2801
  %v2810 = vunpack.c.l.b16 %v2802
  %v2811 = vunpack.c.l.b16 %v2803
  %v2812 = vunpack.c.l.b16 %v2804
  %v2813 = vpack.c.b16 %v2810, %v2809
  %v2814 = vpack.c.b16 %v2812, %v2811
  %2817 = vmatprep.subr.bf16.mxu0 0
  %2818 = vmatpush1.bf16.msra.mxu0 0
  %2819 = vmatprep.subr.bf16.mxu0 0
  %2820 = vmatpush1.bf16.msra.mxu0 0
  %2821 = vmatprep.subr.bf16.mxu0 0
  %2822 = vmatpush1.bf16.msra.mxu0 0
  %2823 = vmatprep.subr.bf16.mxu0 0
  %2824 = vmatpush1.bf16.msra.mxu0 0
  %2825 = vmatprep.subr.bf16.mxu0 0
  %2826 = vmatpush1.bf16.msra.mxu0 0
  %2827 = vmatprep.subr.bf16.mxu0 0
  %2828 = vmatpush1.bf16.msra.mxu0 0
  %2829 = vmatprep.subr.bf16.mxu0 0
  %2830 = vmatpush1.bf16.msra.mxu0 %v2814
  %2831 = vmatprep.subr.bf16.mxu0 0
  %2832 = vmatpush1.bf16.msra.mxu0 %v2813
  %2833 = vmatprep.subr.bf16.mxu0 0
  %2834 = vmatpush2.bf16.msra.mxu0 0
  %2835 = vmatprep.subr.bf16.mxu0 0
  %2836 = vmatpush2.bf16.msra.mxu0 0
  %2837 = vmatprep.subr.bf16.mxu0 0
  %2838 = vmatpush2.bf16.msra.mxu0 0
  %2839 = vmatprep.subr.bf16.mxu0 0
  %2840 = vmatpush2.bf16.msra.mxu0 0
  %2841 = vmatprep.subr.bf16.mxu0 0
  %2842 = vmatpush2.bf16.msra.mxu0 0
  %2843 = vmatprep.subr.bf16.mxu0 0
  %2844 = vmatpush2.bf16.msra.mxu0 0
  %2845 = vmatprep.subr.bf16.mxu0 0
  %2846 = vmatpush2.bf16.msra.mxu0 0
  %2847 = vmatprep.subr.bf16.mxu0 0
  %2848 = vmatpush2.bf16.msra.mxu0 0
  %2849 = vmatprep.mubr.bf16.mxu0 0
  %2850 = vmatmul.mubr.bf16.gmra.mxu0 %v1944
  %v2851 = vpop.f32.mrf.mxu0
  %v2852 = vadd.f32 0.0, %v2851
  %v2853 = vpop.f32.mrf.mxu0
  %v2854 = vpop.f32.mrf.mxu0
  %v2855 = vpop.f32.mrf.mxu0
  %2856 = vdwg.mxu0
  %2857 = vst.msk [vmem:[#allocation3 + $0x78] sm:$0xff] %vm1986, %v2852
  %v2858 = vld [vmem:[%s9] sm:$0xf]
  %v2859 = vld [vmem:[%s9 + $0x4] sm:$0xf]
  %v2860 = vld [vmem:[#allocation3] sm:$0xff]
  %v2861 = vld [vmem:[#allocation3 + $0x8] sm:$0xff]
  %v2862 = vld [vmem:[#allocation3 + $0x10] sm:$0xff]
  %v2863 = vld [vmem:[#allocation3 + $0x18] sm:$0xff]
  %v2864 = vld [vmem:[#allocation3 + $0x20] sm:$0xff]
  %v2865 = vld [vmem:[#allocation3 + $0x28] sm:$0xff]
  %v2866 = vld [vmem:[#allocation3 + $0x30] sm:$0xff]
  %v2867 = vld [vmem:[#allocation3 + $0x38] sm:$0xff]
  %v2868 = vld [vmem:[#allocation3 + $0x40] sm:$0xff]
  %v2869 = vld [vmem:[#allocation3 + $0x48] sm:$0xff]
  %v2870 = vld [vmem:[#allocation3 + $0x50] sm:$0xff]
  %v2871 = vld [vmem:[#allocation3 + $0x58] sm:$0xff]
  %v2872 = vld [vmem:[#allocation3 + $0x60] sm:$0xff]
  %v2873 = vld [vmem:[#allocation3 + $0x68] sm:$0xff]
  %v2874 = vld [vmem:[#allocation3 + $0x70] sm:$0xff]
  %v2875 = vld [vmem:[#allocation3 + $0x78] sm:$0xff]
  %v2876 = vpack.c.bf16 %v2861, %v2860
  %v2877 = vpack.c.bf16 %v2863, %v2862
  %v2878 = vpack.c.bf16 %v2865, %v2864
  %v2879 = vpack.c.bf16 %v2867, %v2866
  %v2880 = vpack.c.bf16 %v2869, %v2868
  %v2881 = vpack.c.bf16 %v2871, %v2870
  %v2882 = vpack.c.bf16 %v2873, %v2872
  %v2883 = vpack.c.bf16 %v2875, %v2874
  %v2886 = vunpack.c.l.b16 %v2858
  %v2887 = vunpack.c.l.b16 %v2859
  %v2888 = vpack.c.b16 %v2887, %v2886
  %2890 = vmatprep.subr.bf16.mxu0 0
  %2891 = vmatpush1.bf16.msra.mxu0 %v2883
  %2892 = vmatprep.subr.bf16.mxu0 0
  %2893 = vmatpush1.bf16.msra.mxu0 %v2882
  %2894 = vmatprep.subr.bf16.mxu0 0
  %2895 = vmatpush1.bf16.msra.mxu0 %v2881
  %2896 = vmatprep.subr.bf16.mxu0 0
  %2897 = vmatpush1.bf16.msra.mxu0 %v2880
  %2898 = vmatprep.subr.bf16.mxu0 0
  %2899 = vmatpush1.bf16.msra.mxu0 %v2879
  %2900 = vmatprep.subr.bf16.mxu0 0
  %2901 = vmatpush1.bf16.msra.mxu0 %v2878
  %2902 = vmatprep.subr.bf16.mxu0 0
  %2903 = vmatpush1.bf16.msra.mxu0 %v2877
  %2904 = vmatprep.subr.bf16.mxu0 0
  %2905 = vmatpush1.bf16.msra.mxu0 %v2876
  %2906 = vmatprep.subr.bf16.mxu0 0
  %2907 = vmatpush2.bf16.msra.mxu0 0
  %2908 = vmatprep.subr.bf16.mxu0 0
  %2909 = vmatpush2.bf16.msra.mxu0 0
  %2910 = vmatprep.subr.bf16.mxu0 0
  %2911 = vmatpush2.bf16.msra.mxu0 0
  %2912 = vmatprep.subr.bf16.mxu0 0
  %2913 = vmatpush2.bf16.msra.mxu0 0
  %2914 = vmatprep.subr.bf16.mxu0 0
  %2915 = vmatpush2.bf16.msra.mxu0 0
  %2916 = vmatprep.subr.bf16.mxu0 0
  %2917 = vmatpush2.bf16.msra.mxu0 0
  %2918 = vmatprep.subr.bf16.mxu0 0
  %2919 = vmatpush2.bf16.msra.mxu0 0
  %2920 = vmatprep.subr.bf16.mxu0 0
  %2921 = vmatpush2.bf16.msra.mxu0 0
  %2922 = vmatprep.mubr.bf16.mxu0 0
  %2923 = vmatmul.mubr.bf16.gmra.mxu0 %v2888
  %v2924 = vpop.f32.mrf.mxu0
  %v2925 = vadd.f32 0.0, %v2924
  %v2926 = vpop.f32.mrf.mxu0
  %v2927 = vpop.f32.mrf.mxu0
  %v2928 = vadd.f32 0.0, %v2927
  %v2929 = vpop.f32.mrf.mxu0
  %2930 = vdwg.mxu0
  %v2931 = vld [vmem:[%s10] sm:$0xff]
  %v2932 = vld [vmem:[%s10 + $0x8] sm:$0xff]
  %v2933 = vld [vmem:[%s11] sm:$0xff]
  %v2934 = vld [vmem:[%s11 + $0x8] sm:$0xff]
  %v2935 = vsel %vm1986, %v2925, 0.0
  %2936 = vadd.xlane.f32.xlu0 %v2935
  %v2937 = vpop.xlane.xlu0 %2936
  %v2938 = vsel %vm1986, %v2928, 0.0
  %2939 = vadd.xlane.f32.xlu0 %v2938
  %v2940 = vpop.xlane.xlu0 %2939
  %v2941 = vmul.f32 %v2925, %v2925
  %v2942 = vmul.f32 %v2928, %v2928
  %v2943 = vsel %vm1986, %v2941, 0.0
  %2944 = vadd.xlane.f32.xlu0 %v2943
  %v2945 = vpop.xlane.xlu0 %2944
  %v2946 = vsel %vm1986, %v2942, 0.0
  %2947 = vadd.xlane.f32.xlu0 %v2946
  %v2948 = vpop.xlane.xlu0 %2947
  %v2949 = vmul.f32 %v2937, 0.125
  %v2950 = vmul.f32 %v2940, 0.125
  %v2951 = vmul.f32 %v2945, 0.125
  %v2952 = vmul.f32 %v2948, 0.125
  %v2953 = vmul.f32 %v2949, %v2949
  %v2954 = vmul.f32 %v2950, %v2950
  %v2955 = vsub.f32 %v2951, %v2953
  %v2956 = vsub.f32 %v2952, %v2954
  %v2957 = vmax.f32 %v2955, 0.0
  %v2958 = vmax.f32 %v2956, 0.0
  %v2959 = vadd.f32 %v2957, 1e-05
  %v2960 = vadd.f32 %v2958, 1e-05
  %v2961 = vrsqrt.pop %v2959
  %v2962 = vrsqrt.pop %v2960
  %v2963 = vmul.f32 %v2931, %v2961
  %v2964 = vmul.f32 %v2932, %v2962
  %v2965 = vmul.f32 %v2949, %v2963
  %v2966 = vmul.f32 %v2950, %v2964
  %v2967 = vsub.f32 %v2933, %v2965
  %v2968 = vsub.f32 %v2934, %v2966
  %2970 = vset.pattern.permute.xlu0 0
  %2971 = vperm.xlu0 %2970, %v2963
  %v2972 = vpop.permute.xlu0 %2971
  %2975 = vset.pattern.permute.xlu0 0
  %2976 = vperm.xlu0 %2975, %v2964
  %v2977 = vpop.permute.xlu0 %2976
  %v2979 = vmul.f32 %v2925, %v2972
  %v2980 = vmul.f32 %v2928, %v2977
  %2982 = vset.pattern.permute.xlu0 0
  %2983 = vperm.xlu0 %2982, %v2967
  %v2984 = vpop.permute.xlu0 %2983
  %2987 = vset.pattern.permute.xlu0 0
  %2988 = vperm.xlu0 %2987, %v2968
  %v2989 = vpop.permute.xlu0 %2988
  %v2991 = vadd.f32 %v2979, %v2984
  %v2992 = vadd.f32 %v2980, %v2989
  %v2993 = vmul.f32 %v2991, 0.2
  %v2994 = vmul.f32 %v2992, 0.2
  %v2995 = vmax.f32 %v2991, %v2993
  %v2996 = vmax.f32 %v2992, %v2994
  %v2997 = vpack.c.bf16 %v2996, %v2995
  %v2998 = vld [vmem:[%s12] sm:$0xf]
  %v3000 = vsel %vm1986, %v2997, 0
  %v3003 = vsel %vm106, %v2998, 0
  %3005 = vmatprep.subr.bf16.mxu0 0
  %3006 = vmatpush1.bf16.msra.mxu0 0
  %3007 = vmatprep.subr.bf16.mxu0 0
  %3008 = vmatpush1.bf16.msra.mxu0 0
  %3009 = vmatprep.subr.bf16.mxu0 0
  %3010 = vmatpush1.bf16.msra.mxu0 0
  %3011 = vmatprep.subr.bf16.mxu0 0
  %3012 = vmatpush1.bf16.msra.mxu0 0
  %3013 = vmatprep.subr.bf16.mxu0 0
  %3014 = vmatpush1.bf16.msra.mxu0 0
  %3015 = vmatprep.subr.bf16.mxu0 0
  %3016 = vmatpush1.bf16.msra.mxu0 0
  %3017 = vmatprep.subr.bf16.mxu0 0
  %3018 = vmatpush1.bf16.msra.mxu0 0
  %3019 = vmatprep.subr.bf16.mxu0 0
  %3020 = vmatpush1.bf16.msra.mxu0 %v3003
  %3021 = vmatprep.subr.bf16.mxu0 0
  %3022 = vmatpush2.bf16.msra.mxu0 0
  %3023 = vmatprep.subr.bf16.mxu0 0
  %3024 = vmatpush2.bf16.msra.mxu0 0
  %3025 = vmatprep.subr.bf16.mxu0 0
  %3026 = vmatpush2.bf16.msra.mxu0 0
  %3027 = vmatprep.subr.bf16.mxu0 0
  %3028 = vmatpush2.bf16.msra.mxu0 0
  %3029 = vmatprep.subr.bf16.mxu0 0
  %3030 = vmatpush2.bf16.msra.mxu0 0
  %3031 = vmatprep.subr.bf16.mxu0 0
  %3032 = vmatpush2.bf16.msra.mxu0 0
  %3033 = vmatprep.subr.bf16.mxu0 0
  %3034 = vmatpush2.bf16.msra.mxu0 0
  %3035 = vmatprep.subr.bf16.mxu0 0
  %3036 = vmatpush2.bf16.msra.mxu0 0
  %3037 = vmatprep.mubr.bf16.mxu0 0
  %3038 = vmatmul.mubr.bf16.gmra.mxu0 %v3000
  %v3039 = vpop.f32.mrf.mxu0
  %v3040 = vadd.f32 0.0, %v3039
  %v3041 = vpop.f32.mrf.mxu0
  %v3042 = vpop.f32.mrf.mxu0
  %v3043 = vadd.f32 0.0, %v3042
  %v3044 = vpop.f32.mrf.mxu0
  %3045 = vdwg.mxu0
  %3046 = vst [vmem:[#allocation4] sm:$0xff] %v3040
  %3047 = vst [vmem:[#allocation4 + $0x8] sm:$0xff] %v3043
  %s3048 = scalar_lea.vmem %s12, 4
  %v3049 = vld [vmem:[%s3048] sm:$0xf]
  %v3051 = vsel %vm106, %v3049, 0
  %3053 = vmatprep.subr.bf16.mxu0 0
  %3054 = vmatpush1.bf16.msra.mxu0 0
  %3055 = vmatprep.subr.bf16.mxu0 0
  %3056 = vmatpush1.bf16.msra.mxu0 0
  %3057 = vmatprep.subr.bf16.mxu0 0
  %3058 = vmatpush1.bf16.msra.mxu0 0
  %3059 = vmatprep.subr.bf16.mxu0 0
  %3060 = vmatpush1.bf16.msra.mxu0 0
  %3061 = vmatprep.subr.bf16.mxu0 0
  %3062 = vmatpush1.bf16.msra.mxu0 0
  %3063 = vmatprep.subr.bf16.mxu0 0
  %3064 = vmatpush1.bf16.msra.mxu0 0
  %3065 = vmatprep.subr.bf16.mxu0 0
  %3066 = vmatpush1.bf16.msra.mxu0 0
  %3067 = vmatprep.subr.bf16.mxu0 0
  %3068 = vmatpush1.bf16.msra.mxu0 %v3051
  %3069 = vmatprep.subr.bf16.mxu0 0
  %3070 = vmatpush2.bf16.msra.mxu0 0
  %3071 = vmatprep.subr.bf16.mxu0 0
  %3072 = vmatpush2.bf16.msra.mxu0 0
  %3073 = vmatprep.subr.bf16.mxu0 0
  %3074 = vmatpush2.bf16.msra.mxu0 0
  %3075 = vmatprep.subr.bf16.mxu0 0
  %3076 = vmatpush2.bf16.msra.mxu0 0
  %3077 = vmatprep.subr.bf16.mxu0 0
  %3078 = vmatpush2.bf16.msra.mxu0 0
  %3079 = vmatprep.subr.bf16.mxu0 0
  %3080 = vmatpush2.bf16.msra.mxu0 0
  %3081 = vmatprep.subr.bf16.mxu0 0
  %3082 = vmatpush2.bf16.msra.mxu0 0
  %3083 = vmatprep.subr.bf16.mxu0 0
  %3084 = vmatpush2.bf16.msra.mxu0 0
  %3085 = vmatprep.mubr.bf16.mxu0 0
  %3086 = vmatmul.mubr.bf16.gmra.mxu0 %v3000
  %v3087 = vpop.f32.mrf.mxu0
  %v3088 = vadd.f32 0.0, %v3087
  %v3089 = vpop.f32.mrf.mxu0
  %v3090 = vpop.f32.mrf.mxu0
  %v3091 = vadd.f32 0.0, %v3090
  %v3092 = vpop.f32.mrf.mxu0
  %3093 = vdwg.mxu0
  %3094 = vst [vmem:[#allocation4 + $0x10] sm:$0xff] %v3088
  %3095 = vst [vmem:[#allocation4 + $0x18] sm:$0xff] %v3091
  %s3096 = scalar_lea.vmem %s12, 8
  %v3097 = vld [vmem:[%s3096] sm:$0xf]
  %v3099 = vsel %vm106, %v3097, 0
  %3101 = vmatprep.subr.bf16.mxu0 0
  %3102 = vmatpush1.bf16.msra.mxu0 0
  %3103 = vmatprep.subr.bf16.mxu0 0
  %3104 = vmatpush1.bf16.msra.mxu0 0
  %3105 = vmatprep.subr.bf16.mxu0 0
  %3106 = vmatpush1.bf16.msra.mxu0 0
  %3107 = vmatprep.subr.bf16.mxu0 0
  %3108 = vmatpush1.bf16.msra.mxu0 0
  %3109 = vmatprep.subr.bf16.mxu0 0
  %3110 = vmatpush1.bf16.msra.mxu0 0
  %3111 = vmatprep.subr.bf16.mxu0 0
  %3112 = vmatpush1.bf16.msra.mxu0 0
  %3113 = vmatprep.subr.bf16.mxu0 0
  %3114 = vmatpush1.bf16.msra.mxu0 0
  %3115 = vmatprep.subr.bf16.mxu0 0
  %3116 = vmatpush1.bf16.msra.mxu0 %v3099
  %3117 = vmatprep.subr.bf16.mxu0 0
  %3118 = vmatpush2.bf16.msra.mxu0 0
  %3119 = vmatprep.subr.bf16.mxu0 0
  %3120 = vmatpush2.bf16.msra.mxu0 0
  %3121 = vmatprep.subr.bf16.mxu0 0
  %3122 = vmatpush2.bf16.msra.mxu0 0
  %3123 = vmatprep.subr.bf16.mxu0 0
  %3124 = vmatpush2.bf16.msra.mxu0 0
  %3125 = vmatprep.subr.bf16.mxu0 0
  %3126 = vmatpush2.bf16.msra.mxu0 0
  %3127 = vmatprep.subr.bf16.mxu0 0
  %3128 = vmatpush2.bf16.msra.mxu0 0
  %3129 = vmatprep.subr.bf16.mxu0 0
  %3130 = vmatpush2.bf16.msra.mxu0 0
  %3131 = vmatprep.subr.bf16.mxu0 0
  %3132 = vmatpush2.bf16.msra.mxu0 0
  %3133 = vmatprep.mubr.bf16.mxu0 0
  %3134 = vmatmul.mubr.bf16.gmra.mxu0 %v3000
  %v3135 = vpop.f32.mrf.mxu0
  %v3136 = vadd.f32 0.0, %v3135
  %v3137 = vpop.f32.mrf.mxu0
  %v3138 = vpop.f32.mrf.mxu0
  %v3139 = vadd.f32 0.0, %v3138
  %v3140 = vpop.f32.mrf.mxu0
  %3141 = vdwg.mxu0
  %3142 = vst [vmem:[#allocation4 + $0x20] sm:$0xff] %v3136
  %3143 = vst [vmem:[#allocation4 + $0x28] sm:$0xff] %v3139
  %s3144 = scalar_lea.vmem %s12, 12
  %v3145 = vld [vmem:[%s3144] sm:$0xf]
  %v3147 = vsel %vm106, %v3145, 0
  %3149 = vmatprep.subr.bf16.mxu0 0
  %3150 = vmatpush1.bf16.msra.mxu0 0
  %3151 = vmatprep.subr.bf16.mxu0 0
  %3152 = vmatpush1.bf16.msra.mxu0 0
  %3153 = vmatprep.subr.bf16.mxu0 0
  %3154 = vmatpush1.bf16.msra.mxu0 0
  %3155 = vmatprep.subr.bf16.mxu0 0
  %3156 = vmatpush1.bf16.msra.mxu0 0
  %3157 = vmatprep.subr.bf16.mxu0 0
  %3158 = vmatpush1.bf16.msra.mxu0 0
  %3159 = vmatprep.subr.bf16.mxu0 0
  %3160 = vmatpush1.bf16.msra.mxu0 0
  %3161 = vmatprep.subr.bf16.mxu0 0
  %3162 = vmatpush1.bf16.msra.mxu0 0
  %3163 = vmatprep.subr.bf16.mxu0 0
  %3164 = vmatpush1.bf16.msra.mxu0 %v3147
  %3165 = vmatprep.subr.bf16.mxu0 0
  %3166 = vmatpush2.bf16.msra.mxu0 0
  %3167 = vmatprep.subr.bf16.mxu0 0
  %3168 = vmatpush2.bf16.msra.mxu0 0
  %3169 = vmatprep.subr.bf16.mxu0 0
  %3170 = vmatpush2.bf16.msra.mxu0 0
  %3171 = vmatprep.subr.bf16.mxu0 0
  %3172 = vmatpush2.bf16.msra.mxu0 0
  %3173 = vmatprep.subr.bf16.mxu0 0
  %3174 = vmatpush2.bf16.msra.mxu0 0
  %3175 = vmatprep.subr.bf16.mxu0 0
  %3176 = vmatpush2.bf16.msra.mxu0 0
  %3177 = vmatprep.subr.bf16.mxu0 0
  %3178 = vmatpush2.bf16.msra.mxu0 0
  %3179 = vmatprep.subr.bf16.mxu0 0
  %3180 = vmatpush2.bf16.msra.mxu0 0
  %3181 = vmatprep.mubr.bf16.mxu0 0
  %3182 = vmatmul.mubr.bf16.gmra.mxu0 %v3000
  %v3183 = vpop.f32.mrf.mxu0
  %v3184 = vadd.f32 0.0, %v3183
  %v3185 = vpop.f32.mrf.mxu0
  %v3186 = vpop.f32.mrf.mxu0
  %v3187 = vadd.f32 0.0, %v3186
  %v3188 = vpop.f32.mrf.mxu0
  %3189 = vdwg.mxu0
  %3190 = vst [vmem:[#allocation4 + $0x30] sm:$0xff] %v3184
  %3191 = vst [vmem:[#allocation4 + $0x38] sm:$0xff] %v3187
  %v3192 = vld [vmem:[%s13] sm:$0xf]
  %v3193 = vld [vmem:[#allocation4] sm:$0xff]
  %v3194 = vld [vmem:[#allocation4 + $0x8] sm:$0xff]
  %v3195 = vld [vmem:[#allocation4 + $0x10] sm:$0xff]
  %v3196 = vld [vmem:[#allocation4 + $0x18] sm:$0xff]
  %v3197 = vld [vmem:[#allocation4 + $0x20] sm:$0xff]
  %v3198 = vld [vmem:[#allocation4 + $0x28] sm:$0xff]
  %v3199 = vld [vmem:[#allocation4 + $0x30] sm:$0xff]
  %v3200 = vld [vmem:[#allocation4 + $0x38] sm:$0xff]
  %v3201 = vpack.c.bf16 %v3194, %v3193
  %v3202 = vpack.c.bf16 %v3196, %v3195
  %v3203 = vpack.c.bf16 %v3198, %v3197
  %v3204 = vpack.c.bf16 %v3200, %v3199
  %v3205 = vld [vmem:[%s14] sm:$0xff]
  %3207 = vset.pattern.permute.xlu0 0
  %3208 = vperm.xlu0 %3207, %v3205
  %v3209 = vpop.permute.xlu0 %3208
  %v3212 = vsel %vm1848, %v3192, 0
  %3214 = vmatprep.subr.bf16.mxu0 0
  %3215 = vmatpush1.bf16.msra.mxu0 0
  %3216 = vmatprep.subr.bf16.mxu0 0
  %3217 = vmatpush1.bf16.msra.mxu0 0
  %3218 = vmatprep.subr.bf16.mxu0 0
  %3219 = vmatpush1.bf16.msra.mxu0 0
  %3220 = vmatprep.subr.bf16.mxu0 0
  %3221 = vmatpush1.bf16.msra.mxu0 0
  %3222 = vmatprep.subr.bf16.mxu0 0
  %3223 = vmatpush1.bf16.msra.mxu0 %v3204
  %3224 = vmatprep.subr.bf16.mxu0 0
  %3225 = vmatpush1.bf16.msra.mxu0 %v3203
  %3226 = vmatprep.subr.bf16.mxu0 0
  %3227 = vmatpush1.bf16.msra.mxu0 %v3202
  %3228 = vmatprep.subr.bf16.mxu0 0
  %3229 = vmatpush1.bf16.msra.mxu0 %v3201
  %3230 = vmatprep.subr.bf16.mxu0 0
  %3231 = vmatpush2.bf16.msra.mxu0 0
  %3232 = vmatprep.subr.bf16.mxu0 0
  %3233 = vmatpush2.bf16.msra.mxu0 0
  %3234 = vmatprep.subr.bf16.mxu0 0
  %3235 = vmatpush2.bf16.msra.mxu0 0
  %3236 = vmatprep.subr.bf16.mxu0 0
  %3237 = vmatpush2.bf16.msra.mxu0 0
  %3238 = vmatprep.subr.bf16.mxu0 0
  %3239 = vmatpush2.bf16.msra.mxu0 0
  %3240 = vmatprep.subr.bf16.mxu0 0
  %3241 = vmatpush2.bf16.msra.mxu0 0
  %3242 = vmatprep.subr.bf16.mxu0 0
  %3243 = vmatpush2.bf16.msra.mxu0 0
  %3244 = vmatprep.subr.bf16.mxu0 0
  %3245 = vmatpush2.bf16.msra.mxu0 0
  %3246 = vmatprep.mubr.bf16.mxu0 0
  %3247 = vmatmul.mubr.bf16.gmra.mxu0 %v3212
  %v3248 = vpop.f32.mrf.mxu0
  %v3249 = vadd.f32 %v3209, %v3248
  %v3250 = vpop.f32.mrf.mxu0
  %v3251 = vpop.f32.mrf.mxu0
  %v3252 = vpop.f32.mrf.mxu0
  %3253 = vdwg.mxu0
  %3254 = vst [vmem:[%s15] sm:$0xff] %v3249
  // Predicated region
  $region62: #{classifier_forward.1} parent=0 // pred_check
    _
  $region63: #{classifier_forward.1} parent=0 // pred_check_branch
    %3256 = sbr.rel (0) target = $region65
  $region64: #{classifier_forward.1} parent=0 // pred_region
    _
  $region65: #{classifier_forward.1} parent=0 // pred_fallthru
    _
  // Predicated region
  $region66: #{classifier_forward.1} parent=0 // pred_check
    _
  $region67: #{classifier_forward.1} parent=0 // pred_check_branch
    %3258 = sbr.rel (0) target = $region69
  $region68: #{classifier_forward.1} parent=0 // pred_region
    _
  $region69: #{classifier_forward.1} parent=0 // pred_fallthru
    _

</llo_original>
